<compile_context>
chip_gen: v6e
topology: v6e:2x2x1
jax: 0.10.0
libtpu: 0.0.40
codegen_flags: <defaults>
</compile_context>

<pallas_src>
import functools

import jax
import jax.numpy as jnp
from jax import lax
from jax.experimental import pallas as pl
from jax.experimental.pallas import tpu as pltpu

# ----------------------------- tiny BERT config ------------------------------
VOCAB = 100
MAX_POS = 128
TYPE_VOCAB = 2
HIDDEN = 32
HEADS = 4
HEAD_DIM = HIDDEN // HEADS
INTERMEDIATE = 64
LAYERS = 2
NUM_LABELS = 3
CLS_PAD = 128          # classifier output padded to 128 lanes (lane-dense store)
LN_EPS = 1e-12


# ------------------------------ fused Pallas kernel --------------------------
def _kobert_kernel(ids_ref, mask_ref,
                   word_emb_ref, pos_emb_ref, type_emb_ref,
                   emb_ln_g_ref, emb_ln_b_ref,
                   qkv_w_ref, qkv_b_ref,
                   ao_w_ref, ao_b_ref,
                   attn_ln_g_ref, attn_ln_b_ref,
                   i_w_ref, i_b_ref,
                   o_w_ref, o_b_ref,
                   out_ln_g_ref, out_ln_b_ref,
                   pool_w_ref, pool_b_ref,
                   cls_w_ref, cls_b_ref,
                   logits_ref, *, batch, seq):
    """Whole KoBERT classifier forward (ids -> logits) on VMEM-resident data."""
    bs = batch * seq

    def mm(x, w):
        # bf16 MXU operands, f32 accumulation.
        return jnp.dot(x.astype(jnp.bfloat16), w.astype(jnp.bfloat16),
                       preferred_element_type=jnp.float32)

    def layernorm(x, g, b):
        mean = jnp.mean(x, axis=-1, keepdims=True)
        c = x - mean
        var = jnp.mean(c * c, axis=-1, keepdims=True)
        return c * lax.rsqrt(var + LN_EPS) * g + b

    # ---- embeddings: one-hot MXU gather + position/type broadcast adds ----
    ids = ids_ref[...]                                               # (BS, 1) i32
    vocab_iota = lax.broadcasted_iota(jnp.int32, (bs, VOCAB), 1)
    one_hot = (vocab_iota == ids).astype(jnp.float32)                # (BS, VOCAB)
    word = jnp.dot(one_hot, word_emb_ref[...],                       # f32 matmul:
                   preferred_element_type=jnp.float32)               # exact gather
    x = word.reshape(batch, seq, HIDDEN) + pos_emb_ref[...][None]    # + positions
    x = x.reshape(bs, HIDDEN) + type_emb_ref[...]                    # + type 0 row
    x = layernorm(x, emb_ln_g_ref[...], emb_ln_b_ref[...])           # (BS, H)

    # HF-style additive mask bias computed in-kernel: (B, 1, S)
    mask_bias = ((1.0 - mask_ref[...]) * -1e9)[:, None, :]
    scale = 1.0 / float(HEAD_DIM) ** 0.5

    # ---- transformer layers (unrolled; LAYERS is tiny) ----
    for l in range(LAYERS):
        # fused Q/K/V projection: one (BS,H) @ (H,3H) matmul
        qkv = mm(x, qkv_w_ref[l]) + qkv_b_ref[l]                     # (BS, 3H) f32
        qkv16 = qkv.astype(jnp.bfloat16)                             # cast once

        ctx_heads = []
        for h in range(HEADS):                                       # unrolled
            lo = h * HEAD_DIM
            qh = qkv16[:, lo:lo + HEAD_DIM].reshape(batch, seq, HEAD_DIM)
            kh = qkv16[:, HIDDEN + lo:HIDDEN + lo + HEAD_DIM].reshape(
                batch, seq, HEAD_DIM)
            vh = qkv16[:, 2 * HIDDEN + lo:2 * HIDDEN + lo + HEAD_DIM].reshape(
                batch, seq, HEAD_DIM)

            s = jnp.einsum('bqd,bkd->bqk', qh, kh,
                           preferred_element_type=jnp.float32)       # (B,S,S) f32
            s = s * scale + mask_bias
            s = s - jnp.max(s, axis=-1, keepdims=True)
            p = jnp.exp(s)
            p = p * pl.reciprocal(jnp.sum(p, axis=-1, keepdims=True),
                                  approx=True)
            ch = jnp.einsum('bqk,bkd->bqd', p.astype(jnp.bfloat16), vh,
                            preferred_element_type=jnp.float32)
            ctx_heads.append(ch.reshape(bs, HEAD_DIM))
        ctx = jnp.concatenate(ctx_heads, axis=-1)                    # (BS, H)

        attn_out = mm(ctx, ao_w_ref[l]) + ao_b_ref[l]
        x = layernorm(attn_out + x, attn_ln_g_ref[l], attn_ln_b_ref[l])

        inter = mm(x, i_w_ref[l]) + i_b_ref[l]
        # exact (erf) GELU, as in HF BERT
        inter = 0.5 * inter * (1.0 + lax.erf(inter * 0.7071067811865476))
        ffn_out = mm(inter, o_w_ref[l]) + o_b_ref[l]
        x = layernorm(ffn_out + x, out_ln_g_ref[l], out_ln_b_ref[l])

    # ---- pooler: tanh on the [CLS] token of each sequence ----
    cls_tok = x.reshape(batch, seq, HIDDEN)[:, 0, :]                 # (B, H)
    pooled = jnp.tanh(mm(cls_tok, pool_w_ref[...]) + pool_b_ref[...])

    # ---- classifier (padded to 128 lanes -> single unmasked, lane-dense store)
    logits_ref[...] = mm(pooled, cls_w_ref[...]) + cls_b_ref[...]
    # TODO(synk): train-mode Bernoulli dropout (p=0.3) on the logits would use
    # pltpu.prng_seed/prng_random_bits; torch RNG parity is not reproducible,
    # so eval-mode (identity) semantics are implemented.


# --------------------------- parameter initialization ------------------------
def init_params(key):
    """Deterministic params already packed in the fused-kernel layout."""
    def norm(k, shape):
        return 0.02 * jax.random.normal(k, shape, dtype=jnp.float32)

    keys = iter(jax.random.split(key, 8 + LAYERS * 8))
    wdt = jnp.bfloat16   # matmul weights stored in bf16 (f32 accumulation)

    cls_w = jnp.zeros((HIDDEN, CLS_PAD), jnp.float32)
    cls_w = cls_w.at[:, :NUM_LABELS].set(norm(next(keys), (HIDDEN, NUM_LABELS)))

    params = {
        "word_emb": norm(next(keys), (VOCAB, HIDDEN)),              # f32 table
        "pos_emb": norm(next(keys), (MAX_POS, HIDDEN)),
        "type_emb": norm(next(keys), (TYPE_VOCAB, HIDDEN)),
        "emb_ln_g": jnp.ones((1, HIDDEN), jnp.float32),
        "emb_ln_b": jnp.zeros((1, HIDDEN), jnp.float32),
        "pool_w": norm(next(keys), (HIDDEN, HIDDEN)).astype(wdt),
        "pool_b": jnp.zeros((1, HIDDEN), jnp.float32),
        "cls_w": cls_w.astype(wdt),                 # zero-padded to 128 lanes
        "cls_b": jnp.zeros((1, CLS_PAD), jnp.float32),
    }

    qkv_w, ao_w, i_w, o_w = [], [], [], []
    for _ in range(LAYERS):
        q = norm(next(keys), (HIDDEN, HIDDEN))
        k = norm(next(keys), (HIDDEN, HIDDEN))
        v = norm(next(keys), (HIDDEN, HIDDEN))
        qkv_w.append(jnp.concatenate([q, k, v], axis=1))       # fused (H, 3H)
        ao_w.append(norm(next(keys), (HIDDEN, HIDDEN)))
        i_w.append(norm(next(keys), (HIDDEN, INTERMEDIATE)))
        o_w.append(norm(next(keys), (INTERMEDIATE, HIDDEN)))

    params.update({
        "qkv_w": jnp.stack(qkv_w).astype(wdt),                         # (L,H,3H)
        "qkv_b": jnp.zeros((LAYERS, 1, 3 * HIDDEN), jnp.float32),
        "ao_w": jnp.stack(ao_w).astype(wdt),                           # (L,H,H)
        "ao_b": jnp.zeros((LAYERS, 1, HIDDEN), jnp.float32),
        "attn_ln_g": jnp.ones((LAYERS, 1, HIDDEN), jnp.float32),
        "attn_ln_b": jnp.zeros((LAYERS, 1, HIDDEN), jnp.float32),
        "i_w": jnp.stack(i_w).astype(wdt),                             # (L,H,I)
        "i_b": jnp.zeros((LAYERS, 1, INTERMEDIATE), jnp.float32),
        "o_w": jnp.stack(o_w).astype(wdt),                             # (L,I,H)
        "o_b": jnp.zeros((LAYERS, 1, HIDDEN), jnp.float32),
        "out_ln_g": jnp.ones((LAYERS, 1, HIDDEN), jnp.float32),
        "out_ln_b": jnp.zeros((LAYERS, 1, HIDDEN), jnp.float32),
    })
    return params


# --------------------------------- forward -----------------------------------
def kobert_forward(params, input_ids, attention_mask):
    B, S = input_ids.shape

    ids_flat = input_ids.reshape(B * S, 1).astype(jnp.int32)   # (BS, 1)
    mask_f = attention_mask.astype(jnp.float32)                # (B, S)
    pos_slice = params["pos_emb"][:S]                          # static slice (S, H)
    type_row = params["type_emb"][0:1]                         # token_type_ids == 0

    inputs = (ids_flat, mask_f,
              params["word_emb"], pos_slice, type_row,
              params["emb_ln_g"], params["emb_ln_b"],
              params["qkv_w"], params["qkv_b"],
              params["ao_w"], params["ao_b"],
              params["attn_ln_g"], params["attn_ln_b"],
              params["i_w"], params["i_b"],
              params["o_w"], params["o_b"],
              params["out_ln_g"], params["out_ln_b"],
              params["pool_w"], params["pool_b"],
              params["cls_w"], params["cls_b"])

    logits_pad = pl.pallas_call(
        functools.partial(_kobert_kernel, batch=B, seq=S),
        out_shape=jax.ShapeDtypeStruct((B, CLS_PAD), jnp.float32),
        in_specs=[pl.BlockSpec(memory_space=pltpu.MemorySpace.VMEM)] * len(inputs),
        out_specs=pl.BlockSpec(memory_space=pltpu.MemorySpace.VMEM),
    )(*inputs)

    # self.dropout(logits): eval-mode dropout is the identity.
    return logits_pad[:, :NUM_LABELS]


# ----------------------------------- main -------------------------------------
if __name__ == "__main__":
    key = jax.random.PRNGKey(0)
    pkey, ikey = jax.random.split(key)
    params = init_params(pkey)

    B, S = 2, 8
    input_ids = jax.random.randint(ikey, (B, S), 0, VOCAB, dtype=jnp.int32)
    attention_mask = jnp.array([[1, 1, 1, 1, 1, 1, 0, 0],
                                [1, 1, 1, 1, 1, 1, 1, 1]], dtype=jnp.int32)

    logits = jax.jit(kobert_forward)(params, input_ids, attention_mask)
    logits = jax.block_until_ready(logits)
    assert logits.shape == (B, NUM_LABELS)
    assert logits.dtype == jnp.float32
    print("KERNEL_OK")
</pallas_src>

<mosaic_0001>
module attributes {stable_mosaic.version = 11 : i64} {
  func.func @_kobert_kernel(%arg0: memref<16x1xi32, #tpu.memory_space<vmem>>, %arg1: memref<2x8xf32, #tpu.memory_space<vmem>>, %arg2: memref<100x32xf32, #tpu.memory_space<vmem>>, %arg3: memref<8x32xf32, #tpu.memory_space<vmem>>, %arg4: memref<1x32xf32, #tpu.memory_space<vmem>>, %arg5: memref<1x32xf32, #tpu.memory_space<vmem>>, %arg6: memref<1x32xf32, #tpu.memory_space<vmem>>, %arg7: memref<2x32x96xbf16, #tpu.memory_space<vmem>>, %arg8: memref<2x1x96xf32, #tpu.memory_space<vmem>>, %arg9: memref<2x32x32xbf16, #tpu.memory_space<vmem>>, %arg10: memref<2x1x32xf32, #tpu.memory_space<vmem>>, %arg11: memref<2x1x32xf32, #tpu.memory_space<vmem>>, %arg12: memref<2x1x32xf32, #tpu.memory_space<vmem>>, %arg13: memref<2x32x64xbf16, #tpu.memory_space<vmem>>, %arg14: memref<2x1x64xf32, #tpu.memory_space<vmem>>, %arg15: memref<2x64x32xbf16, #tpu.memory_space<vmem>>, %arg16: memref<2x1x32xf32, #tpu.memory_space<vmem>>, %arg17: memref<2x1x32xf32, #tpu.memory_space<vmem>>, %arg18: memref<2x1x32xf32, #tpu.memory_space<vmem>>, %arg19: memref<32x32xbf16, #tpu.memory_space<vmem>>, %arg20: memref<1x32xf32, #tpu.memory_space<vmem>>, %arg21: memref<32x128xbf16, #tpu.memory_space<vmem>>, %arg22: memref<1x128xf32, #tpu.memory_space<vmem>>, %arg23: memref<2x128xf32, #tpu.memory_space<vmem>>) attributes {dimension_semantics = [], scalar_prefetch = 0 : i64, scratch_operands = 0 : i64, tpu.core_type = #tpu.core_type<tc>} {
    %c0 = arith.constant 0 : index
    %c0_0 = arith.constant 0 : index
    %0 = vector.load %arg0[%c0, %c0_0] : memref<16x1xi32, #tpu.memory_space<vmem>>, vector<16x1xi32>
    %1 = tpu.iota {dimensions = array<i32: 1>} : vector<16x100xi32>
    %2 = vector.broadcast %0 : vector<16x1xi32> to vector<16x100xi32>
    %3 = arith.cmpi eq, %1, %2 : vector<16x100xi32>
    %4 = arith.extui %3 : vector<16x100xi1> to vector<16x100xi32>
    %5 = arith.sitofp %4 : vector<16x100xi32> to vector<16x100xf32>
    %c0_1 = arith.constant 0 : index
    %c0_2 = arith.constant 0 : index
    %6 = vector.load %arg2[%c0_1, %c0_2] : memref<100x32xf32, #tpu.memory_space<vmem>>, vector<100x32xf32>
    %cst = arith.constant dense<0.000000e+00> : vector<16x32xf32>
    %7 = tpu.matmul %5, %6, %cst {dimension_numbers = #tpu.dot_dimension_numbers<[1], [0], [0], [1], [0, 0, 1, 1], [], []>} : vector<16x100xf32>, vector<100x32xf32>, vector<16x32xf32> -> vector<16x32xf32>
    %8 = vector.shape_cast %7 : vector<16x32xf32> to vector<2x8x32xf32>
    %c0_3 = arith.constant 0 : index
    %c0_4 = arith.constant 0 : index
    %9 = vector.load %arg3[%c0_3, %c0_4] : memref<8x32xf32, #tpu.memory_space<vmem>>, vector<8x32xf32>
    %10 = vector.shape_cast %9 : vector<8x32xf32> to vector<1x8x32xf32>
    %11 = vector.broadcast %10 : vector<1x8x32xf32> to vector<2x8x32xf32>
    %12 = arith.addf %8, %11 : vector<2x8x32xf32>
    %13 = vector.shape_cast %12 : vector<2x8x32xf32> to vector<16x32xf32>
    %c0_5 = arith.constant 0 : index
    %c0_6 = arith.constant 0 : index
    %14 = vector.load %arg4[%c0_5, %c0_6] : memref<1x32xf32, #tpu.memory_space<vmem>>, vector<1x32xf32>
    %15 = vector.broadcast %14 : vector<1x32xf32> to vector<16x32xf32>
    %16 = arith.addf %13, %15 : vector<16x32xf32>
    %c0_7 = arith.constant 0 : index
    %c0_8 = arith.constant 0 : index
    %17 = vector.load %arg5[%c0_7, %c0_8] : memref<1x32xf32, #tpu.memory_space<vmem>>, vector<1x32xf32>
    %c0_9 = arith.constant 0 : index
    %c0_10 = arith.constant 0 : index
    %18 = vector.load %arg6[%c0_9, %c0_10] : memref<1x32xf32, #tpu.memory_space<vmem>>, vector<1x32xf32>
    %cst_11 = arith.constant dense<0.000000e+00> : vector<16xf32>
    %19 = vector.multi_reduction <add>, %16, %cst_11 [1] : vector<16x32xf32> to vector<16xf32>
    %20 = vector.shape_cast %19 : vector<16xf32> to vector<16x1xf32>
    %cst_12 = arith.constant 3.200000e+01 : f32
    %21 = vector.broadcast %cst_12 : f32 to vector<16x1xf32>
    %22 = arith.divf %20, %21 : vector<16x1xf32>
    %23 = vector.broadcast %22 : vector<16x1xf32> to vector<16x32xf32>
    %24 = arith.subf %16, %23 : vector<16x32xf32>
    %25 = arith.mulf %24, %24 : vector<16x32xf32>
    %cst_13 = arith.constant dense<0.000000e+00> : vector<16xf32>
    %26 = vector.multi_reduction <add>, %25, %cst_13 [1] : vector<16x32xf32> to vector<16xf32>
    %27 = vector.shape_cast %26 : vector<16xf32> to vector<16x1xf32>
    %cst_14 = arith.constant 3.200000e+01 : f32
    %28 = vector.broadcast %cst_14 : f32 to vector<16x1xf32>
    %29 = arith.divf %27, %28 : vector<16x1xf32>
    %cst_15 = arith.constant 9.99999996E-13 : f32
    %30 = vector.broadcast %cst_15 : f32 to vector<16x1xf32>
    %31 = arith.addf %29, %30 : vector<16x1xf32>
    %32 = math.rsqrt %31 : vector<16x1xf32>
    %33 = vector.broadcast %32 : vector<16x1xf32> to vector<16x32xf32>
    %34 = arith.mulf %24, %33 : vector<16x32xf32>
    %35 = vector.broadcast %17 : vector<1x32xf32> to vector<16x32xf32>
    %36 = arith.mulf %34, %35 : vector<16x32xf32>
    %37 = vector.broadcast %18 : vector<1x32xf32> to vector<16x32xf32>
    %38 = arith.addf %36, %37 : vector<16x32xf32>
    %c0_16 = arith.constant 0 : index
    %c0_17 = arith.constant 0 : index
    %39 = vector.load %arg1[%c0_16, %c0_17] : memref<2x8xf32, #tpu.memory_space<vmem>>, vector<2x8xf32>
    %cst_18 = arith.constant 1.000000e+00 : f32
    %40 = vector.broadcast %cst_18 : f32 to vector<2x8xf32>
    %41 = arith.subf %40, %39 : vector<2x8xf32>
    %cst_19 = arith.constant -1.000000e+09 : f32
    %42 = vector.broadcast %cst_19 : f32 to vector<2x8xf32>
    %43 = arith.mulf %41, %42 : vector<2x8xf32>
    %44 = vector.shape_cast %43 : vector<2x8xf32> to vector<2x1x8xf32>
    %c0_20 = arith.constant 0 : index
    %c0_21 = arith.constant 0 : index
    %c0_22 = arith.constant 0 : index
    %45 = vector.load %arg7[%c0_20, %c0_21, %c0_22] : memref<2x32x96xbf16, #tpu.memory_space<vmem>>, vector<1x32x96xbf16>
    %46 = vector.shape_cast %45 : vector<1x32x96xbf16> to vector<32x96xbf16>
    %47 = arith.truncf %38 : vector<16x32xf32> to vector<16x32xbf16>
    %cst_23 = arith.constant dense<0.000000e+00> : vector<16x96xf32>
    %48 = tpu.matmul %47, %46, %cst_23 {dimension_numbers = #tpu.dot_dimension_numbers<[1], [0], [0], [1], [0, 0, 1, 1], [], []>} : vector<16x32xbf16>, vector<32x96xbf16>, vector<16x96xf32> -> vector<16x96xf32>
    %c0_24 = arith.constant 0 : index
    %c0_25 = arith.constant 0 : index
    %c0_26 = arith.constant 0 : index
    %49 = vector.load %arg8[%c0_24, %c0_25, %c0_26] : memref<2x1x96xf32, #tpu.memory_space<vmem>>, vector<1x1x96xf32>
    %50 = vector.shape_cast %49 : vector<1x1x96xf32> to vector<1x96xf32>
    %51 = vector.broadcast %50 : vector<1x96xf32> to vector<16x96xf32>
    %52 = arith.addf %48, %51 : vector<16x96xf32>
    %53 = arith.truncf %52 : vector<16x96xf32> to vector<16x96xbf16>
    %54 = vector.extract_strided_slice %53 {offsets = [0, 0], sizes = [16, 8], strides = [1, 1]} : vector<16x96xbf16> to vector<16x8xbf16>
    %55 = vector.shape_cast %54 : vector<16x8xbf16> to vector<2x8x8xbf16>
    %56 = vector.extract_strided_slice %53 {offsets = [0, 32], sizes = [16, 8], strides = [1, 1]} : vector<16x96xbf16> to vector<16x8xbf16>
    %57 = vector.shape_cast %56 : vector<16x8xbf16> to vector<2x8x8xbf16>
    %58 = vector.extract_strided_slice %53 {offsets = [0, 64], sizes = [16, 8], strides = [1, 1]} : vector<16x96xbf16> to vector<16x8xbf16>
    %59 = vector.shape_cast %58 : vector<16x8xbf16> to vector<2x8x8xbf16>
    "tpu.trace_start"() <{level = 10 : i32, message = "bqd,bkd->bqk"}> : () -> ()
    %cst_27 = arith.constant dense<0.000000e+00> : vector<2x8x8xf32>
    %60 = tpu.matmul %55, %57, %cst_27 {dimension_numbers = #tpu.dot_dimension_numbers<[2], [2], [1], [1], [0, 0, 0, 1, 1, 1], [0], [0]>} : vector<2x8x8xbf16>, vector<2x8x8xbf16>, vector<2x8x8xf32> -> vector<2x8x8xf32>
    "tpu.trace_stop"() : () -> ()
    %cst_28 = arith.constant 0.353553385 : f32
    %61 = vector.broadcast %cst_28 : f32 to vector<2x8x8xf32>
    %62 = arith.mulf %60, %61 : vector<2x8x8xf32>
    %63 = vector.broadcast %44 : vector<2x1x8xf32> to vector<2x8x8xf32>
    %64 = arith.addf %62, %63 : vector<2x8x8xf32>
    %cst_29 = arith.constant dense<0xFF800000> : vector<2x8xf32>
    %65 = vector.multi_reduction <maximumf>, %64, %cst_29 [2] : vector<2x8x8xf32> to vector<2x8xf32>
    %66 = vector.shape_cast %65 : vector<2x8xf32> to vector<2x8x1xf32>
    %67 = vector.broadcast %66 : vector<2x8x1xf32> to vector<2x8x8xf32>
    %68 = arith.subf %64, %67 : vector<2x8x8xf32>
    %69 = math.exp %68 : vector<2x8x8xf32>
    %cst_30 = arith.constant dense<0.000000e+00> : vector<2x8xf32>
    %70 = vector.multi_reduction <add>, %69, %cst_30 [2] : vector<2x8x8xf32> to vector<2x8xf32>
    %71 = vector.shape_cast %70 : vector<2x8xf32> to vector<2x8x1xf32>
    %72 = tpu.reciprocal %71 {approx = true} : vector<2x8x1xf32> -> vector<2x8x1xf32>
    %73 = vector.broadcast %72 : vector<2x8x1xf32> to vector<2x8x8xf32>
    %74 = arith.mulf %69, %73 : vector<2x8x8xf32>
    %75 = arith.truncf %74 : vector<2x8x8xf32> to vector<2x8x8xbf16>
    "tpu.trace_start"() <{level = 10 : i32, message = "bqk,bkd->bqd"}> : () -> ()
    %cst_31 = arith.constant dense<0.000000e+00> : vector<2x8x8xf32>
    %76 = tpu.matmul %75, %59, %cst_31 {dimension_numbers = #tpu.dot_dimension_numbers<[2], [1], [1], [2], [0, 0, 0, 1, 1, 2], [0], [0]>} : vector<2x8x8xbf16>, vector<2x8x8xbf16>, vector<2x8x8xf32> -> vector<2x8x8xf32>
    "tpu.trace_stop"() : () -> ()
    %77 = vector.shape_cast %76 : vector<2x8x8xf32> to vector<16x8xf32>
    %78 = vector.extract_strided_slice %53 {offsets = [0, 8], sizes = [16, 8], strides = [1, 1]} : vector<16x96xbf16> to vector<16x8xbf16>
    %79 = vector.shape_cast %78 : vector<16x8xbf16> to vector<2x8x8xbf16>
    %80 = vector.extract_strided_slice %53 {offsets = [0, 40], sizes = [16, 8], strides = [1, 1]} : vector<16x96xbf16> to vector<16x8xbf16>
    %81 = vector.shape_cast %80 : vector<16x8xbf16> to vector<2x8x8xbf16>
    %82 = vector.extract_strided_slice %53 {offsets = [0, 72], sizes = [16, 8], strides = [1, 1]} : vector<16x96xbf16> to vector<16x8xbf16>
    %83 = vector.shape_cast %82 : vector<16x8xbf16> to vector<2x8x8xbf16>
    "tpu.trace_start"() <{level = 10 : i32, message = "bqd,bkd->bqk"}> : () -> ()
    %cst_32 = arith.constant dense<0.000000e+00> : vector<2x8x8xf32>
    %84 = tpu.matmul %79, %81, %cst_32 {dimension_numbers = #tpu.dot_dimension_numbers<[2], [2], [1], [1], [0, 0, 0, 1, 1, 1], [0], [0]>} : vector<2x8x8xbf16>, vector<2x8x8xbf16>, vector<2x8x8xf32> -> vector<2x8x8xf32>
    "tpu.trace_stop"() : () -> ()
    %cst_33 = arith.constant 0.353553385 : f32
    %85 = vector.broadcast %cst_33 : f32 to vector<2x8x8xf32>
    %86 = arith.mulf %84, %85 : vector<2x8x8xf32>
    %87 = vector.broadcast %44 : vector<2x1x8xf32> to vector<2x8x8xf32>
    %88 = arith.addf %86, %87 : vector<2x8x8xf32>
    %cst_34 = arith.constant dense<0xFF800000> : vector<2x8xf32>
    %89 = vector.multi_reduction <maximumf>, %88, %cst_34 [2] : vector<2x8x8xf32> to vector<2x8xf32>
    %90 = vector.shape_cast %89 : vector<2x8xf32> to vector<2x8x1xf32>
    %91 = vector.broadcast %90 : vector<2x8x1xf32> to vector<2x8x8xf32>
    %92 = arith.subf %88, %91 : vector<2x8x8xf32>
    %93 = math.exp %92 : vector<2x8x8xf32>
    %cst_35 = arith.constant dense<0.000000e+00> : vector<2x8xf32>
    %94 = vector.multi_reduction <add>, %93, %cst_35 [2] : vector<2x8x8xf32> to vector<2x8xf32>
    %95 = vector.shape_cast %94 : vector<2x8xf32> to vector<2x8x1xf32>
    %96 = tpu.reciprocal %95 {approx = true} : vector<2x8x1xf32> -> vector<2x8x1xf32>
    %97 = vector.broadcast %96 : vector<2x8x1xf32> to vector<2x8x8xf32>
    %98 = arith.mulf %93, %97 : vector<2x8x8xf32>
    %99 = arith.truncf %98 : vector<2x8x8xf32> to vector<2x8x8xbf16>
    "tpu.trace_start"() <{level = 10 : i32, message = "bqk,bkd->bqd"}> : () -> ()
    %cst_36 = arith.constant dense<0.000000e+00> : vector<2x8x8xf32>
    %100 = tpu.matmul %99, %83, %cst_36 {dimension_numbers = #tpu.dot_dimension_numbers<[2], [1], [1], [2], [0, 0, 0, 1, 1, 2], [0], [0]>} : vector<2x8x8xbf16>, vector<2x8x8xbf16>, vector<2x8x8xf32> -> vector<2x8x8xf32>
    "tpu.trace_stop"() : () -> ()
    %101 = vector.shape_cast %100 : vector<2x8x8xf32> to vector<16x8xf32>
    %102 = vector.extract_strided_slice %53 {offsets = [0, 16], sizes = [16, 8], strides = [1, 1]} : vector<16x96xbf16> to vector<16x8xbf16>
    %103 = vector.shape_cast %102 : vector<16x8xbf16> to vector<2x8x8xbf16>
    %104 = vector.extract_strided_slice %53 {offsets = [0, 48], sizes = [16, 8], strides = [1, 1]} : vector<16x96xbf16> to vector<16x8xbf16>
    %105 = vector.shape_cast %104 : vector<16x8xbf16> to vector<2x8x8xbf16>
    %106 = vector.extract_strided_slice %53 {offsets = [0, 80], sizes = [16, 8], strides = [1, 1]} : vector<16x96xbf16> to vector<16x8xbf16>
    %107 = vector.shape_cast %106 : vector<16x8xbf16> to vector<2x8x8xbf16>
    "tpu.trace_start"() <{level = 10 : i32, message = "bqd,bkd->bqk"}> : () -> ()
    %cst_37 = arith.constant dense<0.000000e+00> : vector<2x8x8xf32>
    %108 = tpu.matmul %103, %105, %cst_37 {dimension_numbers = #tpu.dot_dimension_numbers<[2], [2], [1], [1], [0, 0, 0, 1, 1, 1], [0], [0]>} : vector<2x8x8xbf16>, vector<2x8x8xbf16>, vector<2x8x8xf32> -> vector<2x8x8xf32>
    "tpu.trace_stop"() : () -> ()
    %cst_38 = arith.constant 0.353553385 : f32
    %109 = vector.broadcast %cst_38 : f32 to vector<2x8x8xf32>
    %110 = arith.mulf %108, %109 : vector<2x8x8xf32>
    %111 = vector.broadcast %44 : vector<2x1x8xf32> to vector<2x8x8xf32>
    %112 = arith.addf %110, %111 : vector<2x8x8xf32>
    %cst_39 = arith.constant dense<0xFF800000> : vector<2x8xf32>
    %113 = vector.multi_reduction <maximumf>, %112, %cst_39 [2] : vector<2x8x8xf32> to vector<2x8xf32>
    %114 = vector.shape_cast %113 : vector<2x8xf32> to vector<2x8x1xf32>
    %115 = vector.broadcast %114 : vector<2x8x1xf32> to vector<2x8x8xf32>
    %116 = arith.subf %112, %115 : vector<2x8x8xf32>
    %117 = math.exp %116 : vector<2x8x8xf32>
    %cst_40 = arith.constant dense<0.000000e+00> : vector<2x8xf32>
    %118 = vector.multi_reduction <add>, %117, %cst_40 [2] : vector<2x8x8xf32> to vector<2x8xf32>
    %119 = vector.shape_cast %118 : vector<2x8xf32> to vector<2x8x1xf32>
    %120 = tpu.reciprocal %119 {approx = true} : vector<2x8x1xf32> -> vector<2x8x1xf32>
    %121 = vector.broadcast %120 : vector<2x8x1xf32> to vector<2x8x8xf32>
    %122 = arith.mulf %117, %121 : vector<2x8x8xf32>
    %123 = arith.truncf %122 : vector<2x8x8xf32> to vector<2x8x8xbf16>
    "tpu.trace_start"() <{level = 10 : i32, message = "bqk,bkd->bqd"}> : () -> ()
    %cst_41 = arith.constant dense<0.000000e+00> : vector<2x8x8xf32>
    %124 = tpu.matmul %123, %107, %cst_41 {dimension_numbers = #tpu.dot_dimension_numbers<[2], [1], [1], [2], [0, 0, 0, 1, 1, 2], [0], [0]>} : vector<2x8x8xbf16>, vector<2x8x8xbf16>, vector<2x8x8xf32> -> vector<2x8x8xf32>
    "tpu.trace_stop"() : () -> ()
    %125 = vector.shape_cast %124 : vector<2x8x8xf32> to vector<16x8xf32>
    %126 = vector.extract_strided_slice %53 {offsets = [0, 24], sizes = [16, 8], strides = [1, 1]} : vector<16x96xbf16> to vector<16x8xbf16>
    %127 = vector.shape_cast %126 : vector<16x8xbf16> to vector<2x8x8xbf16>
    %128 = vector.extract_strided_slice %53 {offsets = [0, 56], sizes = [16, 8], strides = [1, 1]} : vector<16x96xbf16> to vector<16x8xbf16>
    %129 = vector.shape_cast %128 : vector<16x8xbf16> to vector<2x8x8xbf16>
    %130 = vector.extract_strided_slice %53 {offsets = [0, 88], sizes = [16, 8], strides = [1, 1]} : vector<16x96xbf16> to vector<16x8xbf16>
    %131 = vector.shape_cast %130 : vector<16x8xbf16> to vector<2x8x8xbf16>
    "tpu.trace_start"() <{level = 10 : i32, message = "bqd,bkd->bqk"}> : () -> ()
    %cst_42 = arith.constant dense<0.000000e+00> : vector<2x8x8xf32>
    %132 = tpu.matmul %127, %129, %cst_42 {dimension_numbers = #tpu.dot_dimension_numbers<[2], [2], [1], [1], [0, 0, 0, 1, 1, 1], [0], [0]>} : vector<2x8x8xbf16>, vector<2x8x8xbf16>, vector<2x8x8xf32> -> vector<2x8x8xf32>
    "tpu.trace_stop"() : () -> ()
    %cst_43 = arith.constant 0.353553385 : f32
    %133 = vector.broadcast %cst_43 : f32 to vector<2x8x8xf32>
    %134 = arith.mulf %132, %133 : vector<2x8x8xf32>
    %135 = vector.broadcast %44 : vector<2x1x8xf32> to vector<2x8x8xf32>
    %136 = arith.addf %134, %135 : vector<2x8x8xf32>
    %cst_44 = arith.constant dense<0xFF800000> : vector<2x8xf32>
    %137 = vector.multi_reduction <maximumf>, %136, %cst_44 [2] : vector<2x8x8xf32> to vector<2x8xf32>
    %138 = vector.shape_cast %137 : vector<2x8xf32> to vector<2x8x1xf32>
    %139 = vector.broadcast %138 : vector<2x8x1xf32> to vector<2x8x8xf32>
    %140 = arith.subf %136, %139 : vector<2x8x8xf32>
    %141 = math.exp %140 : vector<2x8x8xf32>
    %cst_45 = arith.constant dense<0.000000e+00> : vector<2x8xf32>
    %142 = vector.multi_reduction <add>, %141, %cst_45 [2] : vector<2x8x8xf32> to vector<2x8xf32>
    %143 = vector.shape_cast %142 : vector<2x8xf32> to vector<2x8x1xf32>
    %144 = tpu.reciprocal %143 {approx = true} : vector<2x8x1xf32> -> vector<2x8x1xf32>
    %145 = vector.broadcast %144 : vector<2x8x1xf32> to vector<2x8x8xf32>
    %146 = arith.mulf %141, %145 : vector<2x8x8xf32>
    %147 = arith.truncf %146 : vector<2x8x8xf32> to vector<2x8x8xbf16>
    "tpu.trace_start"() <{level = 10 : i32, message = "bqk,bkd->bqd"}> : () -> ()
    %cst_46 = arith.constant dense<0.000000e+00> : vector<2x8x8xf32>
    %148 = tpu.matmul %147, %131, %cst_46 {dimension_numbers = #tpu.dot_dimension_numbers<[2], [1], [1], [2], [0, 0, 0, 1, 1, 2], [0], [0]>} : vector<2x8x8xbf16>, vector<2x8x8xbf16>, vector<2x8x8xf32> -> vector<2x8x8xf32>
    "tpu.trace_stop"() : () -> ()
    %149 = vector.shape_cast %148 : vector<2x8x8xf32> to vector<16x8xf32>
    %150 = tpu.concatenate %77, %101, %125, %149 in 1 : vector<16x8xf32>, vector<16x8xf32>, vector<16x8xf32>, vector<16x8xf32> -> vector<16x32xf32>
    %c0_47 = arith.constant 0 : index
    %c0_48 = arith.constant 0 : index
    %c0_49 = arith.constant 0 : index
    %151 = vector.load %arg9[%c0_47, %c0_48, %c0_49] : memref<2x32x32xbf16, #tpu.memory_space<vmem>>, vector<1x32x32xbf16>
    %152 = vector.shape_cast %151 : vector<1x32x32xbf16> to vector<32x32xbf16>
    %153 = arith.truncf %150 : vector<16x32xf32> to vector<16x32xbf16>
    %cst_50 = arith.constant dense<0.000000e+00> : vector<16x32xf32>
    %154 = tpu.matmul %153, %152, %cst_50 {dimension_numbers = #tpu.dot_dimension_numbers<[1], [0], [0], [1], [0, 0, 1, 1], [], []>} : vector<16x32xbf16>, vector<32x32xbf16>, vector<16x32xf32> -> vector<16x32xf32>
    %c0_51 = arith.constant 0 : index
    %c0_52 = arith.constant 0 : index
    %c0_53 = arith.constant 0 : index
    %155 = vector.load %arg10[%c0_51, %c0_52, %c0_53] : memref<2x1x32xf32, #tpu.memory_space<vmem>>, vector<1x1x32xf32>
    %156 = vector.shape_cast %155 : vector<1x1x32xf32> to vector<1x32xf32>
    %157 = vector.broadcast %156 : vector<1x32xf32> to vector<16x32xf32>
    %158 = arith.addf %154, %157 : vector<16x32xf32>
    %159 = arith.addf %158, %38 : vector<16x32xf32>
    %c0_54 = arith.constant 0 : index
    %c0_55 = arith.constant 0 : index
    %c0_56 = arith.constant 0 : index
    %160 = vector.load %arg11[%c0_54, %c0_55, %c0_56] : memref<2x1x32xf32, #tpu.memory_space<vmem>>, vector<1x1x32xf32>
    %161 = vector.shape_cast %160 : vector<1x1x32xf32> to vector<1x32xf32>
    %c0_57 = arith.constant 0 : index
    %c0_58 = arith.constant 0 : index
    %c0_59 = arith.constant 0 : index
    %162 = vector.load %arg12[%c0_57, %c0_58, %c0_59] : memref<2x1x32xf32, #tpu.memory_space<vmem>>, vector<1x1x32xf32>
    %163 = vector.shape_cast %162 : vector<1x1x32xf32> to vector<1x32xf32>
    %cst_60 = arith.constant dense<0.000000e+00> : vector<16xf32>
    %164 = vector.multi_reduction <add>, %159, %cst_60 [1] : vector<16x32xf32> to vector<16xf32>
    %165 = vector.shape_cast %164 : vector<16xf32> to vector<16x1xf32>
    %cst_61 = arith.constant 3.200000e+01 : f32
    %166 = vector.broadcast %cst_61 : f32 to vector<16x1xf32>
    %167 = arith.divf %165, %166 : vector<16x1xf32>
    %168 = vector.broadcast %167 : vector<16x1xf32> to vector<16x32xf32>
    %169 = arith.subf %159, %168 : vector<16x32xf32>
    %170 = arith.mulf %169, %169 : vector<16x32xf32>
    %cst_62 = arith.constant dense<0.000000e+00> : vector<16xf32>
    %171 = vector.multi_reduction <add>, %170, %cst_62 [1] : vector<16x32xf32> to vector<16xf32>
    %172 = vector.shape_cast %171 : vector<16xf32> to vector<16x1xf32>
    %cst_63 = arith.constant 3.200000e+01 : f32
    %173 = vector.broadcast %cst_63 : f32 to vector<16x1xf32>
    %174 = arith.divf %172, %173 : vector<16x1xf32>
    %cst_64 = arith.constant 9.99999996E-13 : f32
    %175 = vector.broadcast %cst_64 : f32 to vector<16x1xf32>
    %176 = arith.addf %174, %175 : vector<16x1xf32>
    %177 = math.rsqrt %176 : vector<16x1xf32>
    %178 = vector.broadcast %177 : vector<16x1xf32> to vector<16x32xf32>
    %179 = arith.mulf %169, %178 : vector<16x32xf32>
    %180 = vector.broadcast %161 : vector<1x32xf32> to vector<16x32xf32>
    %181 = arith.mulf %179, %180 : vector<16x32xf32>
    %182 = vector.broadcast %163 : vector<1x32xf32> to vector<16x32xf32>
    %183 = arith.addf %181, %182 : vector<16x32xf32>
    %c0_65 = arith.constant 0 : index
    %c0_66 = arith.constant 0 : index
    %c0_67 = arith.constant 0 : index
    %184 = vector.load %arg13[%c0_65, %c0_66, %c0_67] : memref<2x32x64xbf16, #tpu.memory_space<vmem>>, vector<1x32x64xbf16>
    %185 = vector.shape_cast %184 : vector<1x32x64xbf16> to vector<32x64xbf16>
    %186 = arith.truncf %183 : vector<16x32xf32> to vector<16x32xbf16>
    %cst_68 = arith.constant dense<0.000000e+00> : vector<16x64xf32>
    %187 = tpu.matmul %186, %185, %cst_68 {dimension_numbers = #tpu.dot_dimension_numbers<[1], [0], [0], [1], [0, 0, 1, 1], [], []>} : vector<16x32xbf16>, vector<32x64xbf16>, vector<16x64xf32> -> vector<16x64xf32>
    %c0_69 = arith.constant 0 : index
    %c0_70 = arith.constant 0 : index
    %c0_71 = arith.constant 0 : index
    %188 = vector.load %arg14[%c0_69, %c0_70, %c0_71] : memref<2x1x64xf32, #tpu.memory_space<vmem>>, vector<1x1x64xf32>
    %189 = vector.shape_cast %188 : vector<1x1x64xf32> to vector<1x64xf32>
    %190 = vector.broadcast %189 : vector<1x64xf32> to vector<16x64xf32>
    %191 = arith.addf %187, %190 : vector<16x64xf32>
    %cst_72 = arith.constant 5.000000e-01 : f32
    %192 = vector.broadcast %cst_72 : f32 to vector<16x64xf32>
    %193 = arith.mulf %192, %191 : vector<16x64xf32>
    %cst_73 = arith.constant 0.707106769 : f32
    %194 = vector.broadcast %cst_73 : f32 to vector<16x64xf32>
    %195 = arith.mulf %191, %194 : vector<16x64xf32>
    %196 = math.erf %195 : vector<16x64xf32>
    %cst_74 = arith.constant 1.000000e+00 : f32
    %197 = vector.broadcast %cst_74 : f32 to vector<16x64xf32>
    %198 = arith.addf %197, %196 : vector<16x64xf32>
    %199 = arith.mulf %193, %198 : vector<16x64xf32>
    %c0_75 = arith.constant 0 : index
    %c0_76 = arith.constant 0 : index
    %c0_77 = arith.constant 0 : index
    %200 = vector.load %arg15[%c0_75, %c0_76, %c0_77] : memref<2x64x32xbf16, #tpu.memory_space<vmem>>, vector<1x64x32xbf16>
    %201 = vector.shape_cast %200 : vector<1x64x32xbf16> to vector<64x32xbf16>
    %202 = arith.truncf %199 : vector<16x64xf32> to vector<16x64xbf16>
    %cst_78 = arith.constant dense<0.000000e+00> : vector<16x32xf32>
    %203 = tpu.matmul %202, %201, %cst_78 {dimension_numbers = #tpu.dot_dimension_numbers<[1], [0], [0], [1], [0, 0, 1, 1], [], []>} : vector<16x64xbf16>, vector<64x32xbf16>, vector<16x32xf32> -> vector<16x32xf32>
    %c0_79 = arith.constant 0 : index
    %c0_80 = arith.constant 0 : index
    %c0_81 = arith.constant 0 : index
    %204 = vector.load %arg16[%c0_79, %c0_80, %c0_81] : memref<2x1x32xf32, #tpu.memory_space<vmem>>, vector<1x1x32xf32>
    %205 = vector.shape_cast %204 : vector<1x1x32xf32> to vector<1x32xf32>
    %206 = vector.broadcast %205 : vector<1x32xf32> to vector<16x32xf32>
    %207 = arith.addf %203, %206 : vector<16x32xf32>
    %208 = arith.addf %207, %183 : vector<16x32xf32>
    %c0_82 = arith.constant 0 : index
    %c0_83 = arith.constant 0 : index
    %c0_84 = arith.constant 0 : index
    %209 = vector.load %arg17[%c0_82, %c0_83, %c0_84] : memref<2x1x32xf32, #tpu.memory_space<vmem>>, vector<1x1x32xf32>
    %210 = vector.shape_cast %209 : vector<1x1x32xf32> to vector<1x32xf32>
    %c0_85 = arith.constant 0 : index
    %c0_86 = arith.constant 0 : index
    %c0_87 = arith.constant 0 : index
    %211 = vector.load %arg18[%c0_85, %c0_86, %c0_87] : memref<2x1x32xf32, #tpu.memory_space<vmem>>, vector<1x1x32xf32>
    %212 = vector.shape_cast %211 : vector<1x1x32xf32> to vector<1x32xf32>
    %cst_88 = arith.constant dense<0.000000e+00> : vector<16xf32>
    %213 = vector.multi_reduction <add>, %208, %cst_88 [1] : vector<16x32xf32> to vector<16xf32>
    %214 = vector.shape_cast %213 : vector<16xf32> to vector<16x1xf32>
    %cst_89 = arith.constant 3.200000e+01 : f32
    %215 = vector.broadcast %cst_89 : f32 to vector<16x1xf32>
    %216 = arith.divf %214, %215 : vector<16x1xf32>
    %217 = vector.broadcast %216 : vector<16x1xf32> to vector<16x32xf32>
    %218 = arith.subf %208, %217 : vector<16x32xf32>
    %219 = arith.mulf %218, %218 : vector<16x32xf32>
    %cst_90 = arith.constant dense<0.000000e+00> : vector<16xf32>
    %220 = vector.multi_reduction <add>, %219, %cst_90 [1] : vector<16x32xf32> to vector<16xf32>
    %221 = vector.shape_cast %220 : vector<16xf32> to vector<16x1xf32>
    %cst_91 = arith.constant 3.200000e+01 : f32
    %222 = vector.broadcast %cst_91 : f32 to vector<16x1xf32>
    %223 = arith.divf %221, %222 : vector<16x1xf32>
    %cst_92 = arith.constant 9.99999996E-13 : f32
    %224 = vector.broadcast %cst_92 : f32 to vector<16x1xf32>
    %225 = arith.addf %223, %224 : vector<16x1xf32>
    %226 = math.rsqrt %225 : vector<16x1xf32>
    %227 = vector.broadcast %226 : vector<16x1xf32> to vector<16x32xf32>
    %228 = arith.mulf %218, %227 : vector<16x32xf32>
    %229 = vector.broadcast %210 : vector<1x32xf32> to vector<16x32xf32>
    %230 = arith.mulf %228, %229 : vector<16x32xf32>
    %231 = vector.broadcast %212 : vector<1x32xf32> to vector<16x32xf32>
    %232 = arith.addf %230, %231 : vector<16x32xf32>
    %c1 = arith.constant 1 : index
    %c0_93 = arith.constant 0 : index
    %c0_94 = arith.constant 0 : index
    %233 = vector.load %arg7[%c1, %c0_93, %c0_94] : memref<2x32x96xbf16, #tpu.memory_space<vmem>>, vector<1x32x96xbf16>
    %234 = vector.shape_cast %233 : vector<1x32x96xbf16> to vector<32x96xbf16>
    %235 = arith.truncf %232 : vector<16x32xf32> to vector<16x32xbf16>
    %cst_95 = arith.constant dense<0.000000e+00> : vector<16x96xf32>
    %236 = tpu.matmul %235, %234, %cst_95 {dimension_numbers = #tpu.dot_dimension_numbers<[1], [0], [0], [1], [0, 0, 1, 1], [], []>} : vector<16x32xbf16>, vector<32x96xbf16>, vector<16x96xf32> -> vector<16x96xf32>
    %c1_96 = arith.constant 1 : index
    %c0_97 = arith.constant 0 : index
    %c0_98 = arith.constant 0 : index
    %237 = vector.load %arg8[%c1_96, %c0_97, %c0_98] : memref<2x1x96xf32, #tpu.memory_space<vmem>>, vector<1x1x96xf32>
    %238 = vector.shape_cast %237 : vector<1x1x96xf32> to vector<1x96xf32>
    %239 = vector.broadcast %238 : vector<1x96xf32> to vector<16x96xf32>
    %240 = arith.addf %236, %239 : vector<16x96xf32>
    %241 = arith.truncf %240 : vector<16x96xf32> to vector<16x96xbf16>
    %242 = vector.extract_strided_slice %241 {offsets = [0, 0], sizes = [16, 8], strides = [1, 1]} : vector<16x96xbf16> to vector<16x8xbf16>
    %243 = vector.shape_cast %242 : vector<16x8xbf16> to vector<2x8x8xbf16>
    %244 = vector.extract_strided_slice %241 {offsets = [0, 32], sizes = [16, 8], strides = [1, 1]} : vector<16x96xbf16> to vector<16x8xbf16>
    %245 = vector.shape_cast %244 : vector<16x8xbf16> to vector<2x8x8xbf16>
    %246 = vector.extract_strided_slice %241 {offsets = [0, 64], sizes = [16, 8], strides = [1, 1]} : vector<16x96xbf16> to vector<16x8xbf16>
    %247 = vector.shape_cast %246 : vector<16x8xbf16> to vector<2x8x8xbf16>
    "tpu.trace_start"() <{level = 10 : i32, message = "bqd,bkd->bqk"}> : () -> ()
    %cst_99 = arith.constant dense<0.000000e+00> : vector<2x8x8xf32>
    %248 = tpu.matmul %243, %245, %cst_99 {dimension_numbers = #tpu.dot_dimension_numbers<[2], [2], [1], [1], [0, 0, 0, 1, 1, 1], [0], [0]>} : vector<2x8x8xbf16>, vector<2x8x8xbf16>, vector<2x8x8xf32> -> vector<2x8x8xf32>
    "tpu.trace_stop"() : () -> ()
    %cst_100 = arith.constant 0.353553385 : f32
    %249 = vector.broadcast %cst_100 : f32 to vector<2x8x8xf32>
    %250 = arith.mulf %248, %249 : vector<2x8x8xf32>
    %251 = vector.broadcast %44 : vector<2x1x8xf32> to vector<2x8x8xf32>
    %252 = arith.addf %250, %251 : vector<2x8x8xf32>
    %cst_101 = arith.constant dense<0xFF800000> : vector<2x8xf32>
    %253 = vector.multi_reduction <maximumf>, %252, %cst_101 [2] : vector<2x8x8xf32> to vector<2x8xf32>
    %254 = vector.shape_cast %253 : vector<2x8xf32> to vector<2x8x1xf32>
    %255 = vector.broadcast %254 : vector<2x8x1xf32> to vector<2x8x8xf32>
    %256 = arith.subf %252, %255 : vector<2x8x8xf32>
    %257 = math.exp %256 : vector<2x8x8xf32>
    %cst_102 = arith.constant dense<0.000000e+00> : vector<2x8xf32>
    %258 = vector.multi_reduction <add>, %257, %cst_102 [2] : vector<2x8x8xf32> to vector<2x8xf32>
    %259 = vector.shape_cast %258 : vector<2x8xf32> to vector<2x8x1xf32>
    %260 = tpu.reciprocal %259 {approx = true} : vector<2x8x1xf32> -> vector<2x8x1xf32>
    %261 = vector.broadcast %260 : vector<2x8x1xf32> to vector<2x8x8xf32>
    %262 = arith.mulf %257, %261 : vector<2x8x8xf32>
    %263 = arith.truncf %262 : vector<2x8x8xf32> to vector<2x8x8xbf16>
    "tpu.trace_start"() <{level = 10 : i32, message = "bqk,bkd->bqd"}> : () -> ()
    %cst_103 = arith.constant dense<0.000000e+00> : vector<2x8x8xf32>
    %264 = tpu.matmul %263, %247, %cst_103 {dimension_numbers = #tpu.dot_dimension_numbers<[2], [1], [1], [2], [0, 0, 0, 1, 1, 2], [0], [0]>} : vector<2x8x8xbf16>, vector<2x8x8xbf16>, vector<2x8x8xf32> -> vector<2x8x8xf32>
    "tpu.trace_stop"() : () -> ()
    %265 = vector.shape_cast %264 : vector<2x8x8xf32> to vector<16x8xf32>
    %266 = vector.extract_strided_slice %241 {offsets = [0, 8], sizes = [16, 8], strides = [1, 1]} : vector<16x96xbf16> to vector<16x8xbf16>
    %267 = vector.shape_cast %266 : vector<16x8xbf16> to vector<2x8x8xbf16>
    %268 = vector.extract_strided_slice %241 {offsets = [0, 40], sizes = [16, 8], strides = [1, 1]} : vector<16x96xbf16> to vector<16x8xbf16>
    %269 = vector.shape_cast %268 : vector<16x8xbf16> to vector<2x8x8xbf16>
    %270 = vector.extract_strided_slice %241 {offsets = [0, 72], sizes = [16, 8], strides = [1, 1]} : vector<16x96xbf16> to vector<16x8xbf16>
    %271 = vector.shape_cast %270 : vector<16x8xbf16> to vector<2x8x8xbf16>
    "tpu.trace_start"() <{level = 10 : i32, message = "bqd,bkd->bqk"}> : () -> ()
    %cst_104 = arith.constant dense<0.000000e+00> : vector<2x8x8xf32>
    %272 = tpu.matmul %267, %269, %cst_104 {dimension_numbers = #tpu.dot_dimension_numbers<[2], [2], [1], [1], [0, 0, 0, 1, 1, 1], [0], [0]>} : vector<2x8x8xbf16>, vector<2x8x8xbf16>, vector<2x8x8xf32> -> vector<2x8x8xf32>
    "tpu.trace_stop"() : () -> ()
    %cst_105 = arith.constant 0.353553385 : f32
    %273 = vector.broadcast %cst_105 : f32 to vector<2x8x8xf32>
    %274 = arith.mulf %272, %273 : vector<2x8x8xf32>
    %275 = vector.broadcast %44 : vector<2x1x8xf32> to vector<2x8x8xf32>
    %276 = arith.addf %274, %275 : vector<2x8x8xf32>
    %cst_106 = arith.constant dense<0xFF800000> : vector<2x8xf32>
    %277 = vector.multi_reduction <maximumf>, %276, %cst_106 [2] : vector<2x8x8xf32> to vector<2x8xf32>
    %278 = vector.shape_cast %277 : vector<2x8xf32> to vector<2x8x1xf32>
    %279 = vector.broadcast %278 : vector<2x8x1xf32> to vector<2x8x8xf32>
    %280 = arith.subf %276, %279 : vector<2x8x8xf32>
    %281 = math.exp %280 : vector<2x8x8xf32>
    %cst_107 = arith.constant dense<0.000000e+00> : vector<2x8xf32>
    %282 = vector.multi_reduction <add>, %281, %cst_107 [2] : vector<2x8x8xf32> to vector<2x8xf32>
    %283 = vector.shape_cast %282 : vector<2x8xf32> to vector<2x8x1xf32>
    %284 = tpu.reciprocal %283 {approx = true} : vector<2x8x1xf32> -> vector<2x8x1xf32>
    %285 = vector.broadcast %284 : vector<2x8x1xf32> to vector<2x8x8xf32>
    %286 = arith.mulf %281, %285 : vector<2x8x8xf32>
    %287 = arith.truncf %286 : vector<2x8x8xf32> to vector<2x8x8xbf16>
    "tpu.trace_start"() <{level = 10 : i32, message = "bqk,bkd->bqd"}> : () -> ()
    %cst_108 = arith.constant dense<0.000000e+00> : vector<2x8x8xf32>
    %288 = tpu.matmul %287, %271, %cst_108 {dimension_numbers = #tpu.dot_dimension_numbers<[2], [1], [1], [2], [0, 0, 0, 1, 1, 2], [0], [0]>} : vector<2x8x8xbf16>, vector<2x8x8xbf16>, vector<2x8x8xf32> -> vector<2x8x8xf32>
    "tpu.trace_stop"() : () -> ()
    %289 = vector.shape_cast %288 : vector<2x8x8xf32> to vector<16x8xf32>
    %290 = vector.extract_strided_slice %241 {offsets = [0, 16], sizes = [16, 8], strides = [1, 1]} : vector<16x96xbf16> to vector<16x8xbf16>
    %291 = vector.shape_cast %290 : vector<16x8xbf16> to vector<2x8x8xbf16>
    %292 = vector.extract_strided_slice %241 {offsets = [0, 48], sizes = [16, 8], strides = [1, 1]} : vector<16x96xbf16> to vector<16x8xbf16>
    %293 = vector.shape_cast %292 : vector<16x8xbf16> to vector<2x8x8xbf16>
    %294 = vector.extract_strided_slice %241 {offsets = [0, 80], sizes = [16, 8], strides = [1, 1]} : vector<16x96xbf16> to vector<16x8xbf16>
    %295 = vector.shape_cast %294 : vector<16x8xbf16> to vector<2x8x8xbf16>
    "tpu.trace_start"() <{level = 10 : i32, message = "bqd,bkd->bqk"}> : () -> ()
    %cst_109 = arith.constant dense<0.000000e+00> : vector<2x8x8xf32>
    %296 = tpu.matmul %291, %293, %cst_109 {dimension_numbers = #tpu.dot_dimension_numbers<[2], [2], [1], [1], [0, 0, 0, 1, 1, 1], [0], [0]>} : vector<2x8x8xbf16>, vector<2x8x8xbf16>, vector<2x8x8xf32> -> vector<2x8x8xf32>
    "tpu.trace_stop"() : () -> ()
    %cst_110 = arith.constant 0.353553385 : f32
    %297 = vector.broadcast %cst_110 : f32 to vector<2x8x8xf32>
    %298 = arith.mulf %296, %297 : vector<2x8x8xf32>
    %299 = vector.broadcast %44 : vector<2x1x8xf32> to vector<2x8x8xf32>
    %300 = arith.addf %298, %299 : vector<2x8x8xf32>
    %cst_111 = arith.constant dense<0xFF800000> : vector<2x8xf32>
    %301 = vector.multi_reduction <maximumf>, %300, %cst_111 [2] : vector<2x8x8xf32> to vector<2x8xf32>
    %302 = vector.shape_cast %301 : vector<2x8xf32> to vector<2x8x1xf32>
    %303 = vector.broadcast %302 : vector<2x8x1xf32> to vector<2x8x8xf32>
    %304 = arith.subf %300, %303 : vector<2x8x8xf32>
    %305 = math.exp %304 : vector<2x8x8xf32>
    %cst_112 = arith.constant dense<0.000000e+00> : vector<2x8xf32>
    %306 = vector.multi_reduction <add>, %305, %cst_112 [2] : vector<2x8x8xf32> to vector<2x8xf32>
    %307 = vector.shape_cast %306 : vector<2x8xf32> to vector<2x8x1xf32>
    %308 = tpu.reciprocal %307 {approx = true} : vector<2x8x1xf32> -> vector<2x8x1xf32>
    %309 = vector.broadcast %308 : vector<2x8x1xf32> to vector<2x8x8xf32>
    %310 = arith.mulf %305, %309 : vector<2x8x8xf32>
    %311 = arith.truncf %310 : vector<2x8x8xf32> to vector<2x8x8xbf16>
    "tpu.trace_start"() <{level = 10 : i32, message = "bqk,bkd->bqd"}> : () -> ()
    %cst_113 = arith.constant dense<0.000000e+00> : vector<2x8x8xf32>
    %312 = tpu.matmul %311, %295, %cst_113 {dimension_numbers = #tpu.dot_dimension_numbers<[2], [1], [1], [2], [0, 0, 0, 1, 1, 2], [0], [0]>} : vector<2x8x8xbf16>, vector<2x8x8xbf16>, vector<2x8x8xf32> -> vector<2x8x8xf32>
    "tpu.trace_stop"() : () -> ()
    %313 = vector.shape_cast %312 : vector<2x8x8xf32> to vector<16x8xf32>
    %314 = vector.extract_strided_slice %241 {offsets = [0, 24], sizes = [16, 8], strides = [1, 1]} : vector<16x96xbf16> to vector<16x8xbf16>
    %315 = vector.shape_cast %314 : vector<16x8xbf16> to vector<2x8x8xbf16>
    %316 = vector.extract_strided_slice %241 {offsets = [0, 56], sizes = [16, 8], strides = [1, 1]} : vector<16x96xbf16> to vector<16x8xbf16>
    %317 = vector.shape_cast %316 : vector<16x8xbf16> to vector<2x8x8xbf16>
    %318 = vector.extract_strided_slice %241 {offsets = [0, 88], sizes = [16, 8], strides = [1, 1]} : vector<16x96xbf16> to vector<16x8xbf16>
    %319 = vector.shape_cast %318 : vector<16x8xbf16> to vector<2x8x8xbf16>
    "tpu.trace_start"() <{level = 10 : i32, message = "bqd,bkd->bqk"}> : () -> ()
    %cst_114 = arith.constant dense<0.000000e+00> : vector<2x8x8xf32>
    %320 = tpu.matmul %315, %317, %cst_114 {dimension_numbers = #tpu.dot_dimension_numbers<[2], [2], [1], [1], [0, 0, 0, 1, 1, 1], [0], [0]>} : vector<2x8x8xbf16>, vector<2x8x8xbf16>, vector<2x8x8xf32> -> vector<2x8x8xf32>
    "tpu.trace_stop"() : () -> ()
    %cst_115 = arith.constant 0.353553385 : f32
    %321 = vector.broadcast %cst_115 : f32 to vector<2x8x8xf32>
    %322 = arith.mulf %320, %321 : vector<2x8x8xf32>
    %323 = vector.broadcast %44 : vector<2x1x8xf32> to vector<2x8x8xf32>
    %324 = arith.addf %322, %323 : vector<2x8x8xf32>
    %cst_116 = arith.constant dense<0xFF800000> : vector<2x8xf32>
    %325 = vector.multi_reduction <maximumf>, %324, %cst_116 [2] : vector<2x8x8xf32> to vector<2x8xf32>
    %326 = vector.shape_cast %325 : vector<2x8xf32> to vector<2x8x1xf32>
    %327 = vector.broadcast %326 : vector<2x8x1xf32> to vector<2x8x8xf32>
    %328 = arith.subf %324, %327 : vector<2x8x8xf32>
    %329 = math.exp %328 : vector<2x8x8xf32>
    %cst_117 = arith.constant dense<0.000000e+00> : vector<2x8xf32>
    %330 = vector.multi_reduction <add>, %329, %cst_117 [2] : vector<2x8x8xf32> to vector<2x8xf32>
    %331 = vector.shape_cast %330 : vector<2x8xf32> to vector<2x8x1xf32>
    %332 = tpu.reciprocal %331 {approx = true} : vector<2x8x1xf32> -> vector<2x8x1xf32>
    %333 = vector.broadcast %332 : vector<2x8x1xf32> to vector<2x8x8xf32>
    %334 = arith.mulf %329, %333 : vector<2x8x8xf32>
    %335 = arith.truncf %334 : vector<2x8x8xf32> to vector<2x8x8xbf16>
    "tpu.trace_start"() <{level = 10 : i32, message = "bqk,bkd->bqd"}> : () -> ()
    %cst_118 = arith.constant dense<0.000000e+00> : vector<2x8x8xf32>
    %336 = tpu.matmul %335, %319, %cst_118 {dimension_numbers = #tpu.dot_dimension_numbers<[2], [1], [1], [2], [0, 0, 0, 1, 1, 2], [0], [0]>} : vector<2x8x8xbf16>, vector<2x8x8xbf16>, vector<2x8x8xf32> -> vector<2x8x8xf32>
    "tpu.trace_stop"() : () -> ()
    %337 = vector.shape_cast %336 : vector<2x8x8xf32> to vector<16x8xf32>
    %338 = tpu.concatenate %265, %289, %313, %337 in 1 : vector<16x8xf32>, vector<16x8xf32>, vector<16x8xf32>, vector<16x8xf32> -> vector<16x32xf32>
    %c1_119 = arith.constant 1 : index
    %c0_120 = arith.constant 0 : index
    %c0_121 = arith.constant 0 : index
    %339 = vector.load %arg9[%c1_119, %c0_120, %c0_121] : memref<2x32x32xbf16, #tpu.memory_space<vmem>>, vector<1x32x32xbf16>
    %340 = vector.shape_cast %339 : vector<1x32x32xbf16> to vector<32x32xbf16>
    %341 = arith.truncf %338 : vector<16x32xf32> to vector<16x32xbf16>
    %cst_122 = arith.constant dense<0.000000e+00> : vector<16x32xf32>
    %342 = tpu.matmul %341, %340, %cst_122 {dimension_numbers = #tpu.dot_dimension_numbers<[1], [0], [0], [1], [0, 0, 1, 1], [], []>} : vector<16x32xbf16>, vector<32x32xbf16>, vector<16x32xf32> -> vector<16x32xf32>
    %c1_123 = arith.constant 1 : index
    %c0_124 = arith.constant 0 : index
    %c0_125 = arith.constant 0 : index
    %343 = vector.load %arg10[%c1_123, %c0_124, %c0_125] : memref<2x1x32xf32, #tpu.memory_space<vmem>>, vector<1x1x32xf32>
    %344 = vector.shape_cast %343 : vector<1x1x32xf32> to vector<1x32xf32>
    %345 = vector.broadcast %344 : vector<1x32xf32> to vector<16x32xf32>
    %346 = arith.addf %342, %345 : vector<16x32xf32>
    %347 = arith.addf %346, %232 : vector<16x32xf32>
    %c1_126 = arith.constant 1 : index
    %c0_127 = arith.constant 0 : index
    %c0_128 = arith.constant 0 : index
    %348 = vector.load %arg11[%c1_126, %c0_127, %c0_128] : memref<2x1x32xf32, #tpu.memory_space<vmem>>, vector<1x1x32xf32>
    %349 = vector.shape_cast %348 : vector<1x1x32xf32> to vector<1x32xf32>
    %c1_129 = arith.constant 1 : index
    %c0_130 = arith.constant 0 : index
    %c0_131 = arith.constant 0 : index
    %350 = vector.load %arg12[%c1_129, %c0_130, %c0_131] : memref<2x1x32xf32, #tpu.memory_space<vmem>>, vector<1x1x32xf32>
    %351 = vector.shape_cast %350 : vector<1x1x32xf32> to vector<1x32xf32>
    %cst_132 = arith.constant dense<0.000000e+00> : vector<16xf32>
    %352 = vector.multi_reduction <add>, %347, %cst_132 [1] : vector<16x32xf32> to vector<16xf32>
    %353 = vector.shape_cast %352 : vector<16xf32> to vector<16x1xf32>
    %cst_133 = arith.constant 3.200000e+01 : f32
    %354 = vector.broadcast %cst_133 : f32 to vector<16x1xf32>
    %355 = arith.divf %353, %354 : vector<16x1xf32>
    %356 = vector.broadcast %355 : vector<16x1xf32> to vector<16x32xf32>
    %357 = arith.subf %347, %356 : vector<16x32xf32>
    %358 = arith.mulf %357, %357 : vector<16x32xf32>
    %cst_134 = arith.constant dense<0.000000e+00> : vector<16xf32>
    %359 = vector.multi_reduction <add>, %358, %cst_134 [1] : vector<16x32xf32> to vector<16xf32>
    %360 = vector.shape_cast %359 : vector<16xf32> to vector<16x1xf32>
    %cst_135 = arith.constant 3.200000e+01 : f32
    %361 = vector.broadcast %cst_135 : f32 to vector<16x1xf32>
    %362 = arith.divf %360, %361 : vector<16x1xf32>
    %cst_136 = arith.constant 9.99999996E-13 : f32
    %363 = vector.broadcast %cst_136 : f32 to vector<16x1xf32>
    %364 = arith.addf %362, %363 : vector<16x1xf32>
    %365 = math.rsqrt %364 : vector<16x1xf32>
    %366 = vector.broadcast %365 : vector<16x1xf32> to vector<16x32xf32>
    %367 = arith.mulf %357, %366 : vector<16x32xf32>
    %368 = vector.broadcast %349 : vector<1x32xf32> to vector<16x32xf32>
    %369 = arith.mulf %367, %368 : vector<16x32xf32>
    %370 = vector.broadcast %351 : vector<1x32xf32> to vector<16x32xf32>
    %371 = arith.addf %369, %370 : vector<16x32xf32>
    %c1_137 = arith.constant 1 : index
    %c0_138 = arith.constant 0 : index
    %c0_139 = arith.constant 0 : index
    %372 = vector.load %arg13[%c1_137, %c0_138, %c0_139] : memref<2x32x64xbf16, #tpu.memory_space<vmem>>, vector<1x32x64xbf16>
    %373 = vector.shape_cast %372 : vector<1x32x64xbf16> to vector<32x64xbf16>
    %374 = arith.truncf %371 : vector<16x32xf32> to vector<16x32xbf16>
    %cst_140 = arith.constant dense<0.000000e+00> : vector<16x64xf32>
    %375 = tpu.matmul %374, %373, %cst_140 {dimension_numbers = #tpu.dot_dimension_numbers<[1], [0], [0], [1], [0, 0, 1, 1], [], []>} : vector<16x32xbf16>, vector<32x64xbf16>, vector<16x64xf32> -> vector<16x64xf32>
    %c1_141 = arith.constant 1 : index
    %c0_142 = arith.constant 0 : index
    %c0_143 = arith.constant 0 : index
    %376 = vector.load %arg14[%c1_141, %c0_142, %c0_143] : memref<2x1x64xf32, #tpu.memory_space<vmem>>, vector<1x1x64xf32>
    %377 = vector.shape_cast %376 : vector<1x1x64xf32> to vector<1x64xf32>
    %378 = vector.broadcast %377 : vector<1x64xf32> to vector<16x64xf32>
    %379 = arith.addf %375, %378 : vector<16x64xf32>
    %cst_144 = arith.constant 5.000000e-01 : f32
    %380 = vector.broadcast %cst_144 : f32 to vector<16x64xf32>
    %381 = arith.mulf %380, %379 : vector<16x64xf32>
    %cst_145 = arith.constant 0.707106769 : f32
    %382 = vector.broadcast %cst_145 : f32 to vector<16x64xf32>
    %383 = arith.mulf %379, %382 : vector<16x64xf32>
    %384 = math.erf %383 : vector<16x64xf32>
    %cst_146 = arith.constant 1.000000e+00 : f32
    %385 = vector.broadcast %cst_146 : f32 to vector<16x64xf32>
    %386 = arith.addf %385, %384 : vector<16x64xf32>
    %387 = arith.mulf %381, %386 : vector<16x64xf32>
    %c1_147 = arith.constant 1 : index
    %c0_148 = arith.constant 0 : index
    %c0_149 = arith.constant 0 : index
    %388 = vector.load %arg15[%c1_147, %c0_148, %c0_149] : memref<2x64x32xbf16, #tpu.memory_space<vmem>>, vector<1x64x32xbf16>
    %389 = vector.shape_cast %388 : vector<1x64x32xbf16> to vector<64x32xbf16>
    %390 = arith.truncf %387 : vector<16x64xf32> to vector<16x64xbf16>
    %cst_150 = arith.constant dense<0.000000e+00> : vector<16x32xf32>
    %391 = tpu.matmul %390, %389, %cst_150 {dimension_numbers = #tpu.dot_dimension_numbers<[1], [0], [0], [1], [0, 0, 1, 1], [], []>} : vector<16x64xbf16>, vector<64x32xbf16>, vector<16x32xf32> -> vector<16x32xf32>
    %c1_151 = arith.constant 1 : index
    %c0_152 = arith.constant 0 : index
    %c0_153 = arith.constant 0 : index
    %392 = vector.load %arg16[%c1_151, %c0_152, %c0_153] : memref<2x1x32xf32, #tpu.memory_space<vmem>>, vector<1x1x32xf32>
    %393 = vector.shape_cast %392 : vector<1x1x32xf32> to vector<1x32xf32>
    %394 = vector.broadcast %393 : vector<1x32xf32> to vector<16x32xf32>
    %395 = arith.addf %391, %394 : vector<16x32xf32>
    %396 = arith.addf %395, %371 : vector<16x32xf32>
    %c1_154 = arith.constant 1 : index
    %c0_155 = arith.constant 0 : index
    %c0_156 = arith.constant 0 : index
    %397 = vector.load %arg17[%c1_154, %c0_155, %c0_156] : memref<2x1x32xf32, #tpu.memory_space<vmem>>, vector<1x1x32xf32>
    %398 = vector.shape_cast %397 : vector<1x1x32xf32> to vector<1x32xf32>
    %c1_157 = arith.constant 1 : index
    %c0_158 = arith.constant 0 : index
    %c0_159 = arith.constant 0 : index
    %399 = vector.load %arg18[%c1_157, %c0_158, %c0_159] : memref<2x1x32xf32, #tpu.memory_space<vmem>>, vector<1x1x32xf32>
    %400 = vector.shape_cast %399 : vector<1x1x32xf32> to vector<1x32xf32>
    %cst_160 = arith.constant dense<0.000000e+00> : vector<16xf32>
    %401 = vector.multi_reduction <add>, %396, %cst_160 [1] : vector<16x32xf32> to vector<16xf32>
    %402 = vector.shape_cast %401 : vector<16xf32> to vector<16x1xf32>
    %cst_161 = arith.constant 3.200000e+01 : f32
    %403 = vector.broadcast %cst_161 : f32 to vector<16x1xf32>
    %404 = arith.divf %402, %403 : vector<16x1xf32>
    %405 = vector.broadcast %404 : vector<16x1xf32> to vector<16x32xf32>
    %406 = arith.subf %396, %405 : vector<16x32xf32>
    %407 = arith.mulf %406, %406 : vector<16x32xf32>
    %cst_162 = arith.constant dense<0.000000e+00> : vector<16xf32>
    %408 = vector.multi_reduction <add>, %407, %cst_162 [1] : vector<16x32xf32> to vector<16xf32>
    %409 = vector.shape_cast %408 : vector<16xf32> to vector<16x1xf32>
    %cst_163 = arith.constant 3.200000e+01 : f32
    %410 = vector.broadcast %cst_163 : f32 to vector<16x1xf32>
    %411 = arith.divf %409, %410 : vector<16x1xf32>
    %cst_164 = arith.constant 9.99999996E-13 : f32
    %412 = vector.broadcast %cst_164 : f32 to vector<16x1xf32>
    %413 = arith.addf %411, %412 : vector<16x1xf32>
    %414 = math.rsqrt %413 : vector<16x1xf32>
    %415 = vector.broadcast %414 : vector<16x1xf32> to vector<16x32xf32>
    %416 = arith.mulf %406, %415 : vector<16x32xf32>
    %417 = vector.broadcast %398 : vector<1x32xf32> to vector<16x32xf32>
    %418 = arith.mulf %416, %417 : vector<16x32xf32>
    %419 = vector.broadcast %400 : vector<1x32xf32> to vector<16x32xf32>
    %420 = arith.addf %418, %419 : vector<16x32xf32>
    %421 = vector.shape_cast %420 : vector<16x32xf32> to vector<2x8x32xf32>
    %422 = vector.extract_strided_slice %421 {offsets = [0, 0, 0], sizes = [2, 1, 32], strides = [1, 1, 1]} : vector<2x8x32xf32> to vector<2x1x32xf32>
    %423 = vector.shape_cast %422 : vector<2x1x32xf32> to vector<2x32xf32>
    %c0_165 = arith.constant 0 : index
    %c0_166 = arith.constant 0 : index
    %424 = vector.load %arg19[%c0_165, %c0_166] : memref<32x32xbf16, #tpu.memory_space<vmem>>, vector<32x32xbf16>
    %425 = arith.truncf %423 : vector<2x32xf32> to vector<2x32xbf16>
    %cst_167 = arith.constant dense<0.000000e+00> : vector<2x32xf32>
    %426 = tpu.matmul %425, %424, %cst_167 {dimension_numbers = #tpu.dot_dimension_numbers<[1], [0], [0], [1], [0, 0, 1, 1], [], []>} : vector<2x32xbf16>, vector<32x32xbf16>, vector<2x32xf32> -> vector<2x32xf32>
    %c0_168 = arith.constant 0 : index
    %c0_169 = arith.constant 0 : index
    %427 = vector.load %arg20[%c0_168, %c0_169] : memref<1x32xf32, #tpu.memory_space<vmem>>, vector<1x32xf32>
    %428 = vector.broadcast %427 : vector<1x32xf32> to vector<2x32xf32>
    %429 = arith.addf %426, %428 : vector<2x32xf32>
    %430 = math.tanh %429 : vector<2x32xf32>
    %c0_170 = arith.constant 0 : index
    %c0_171 = arith.constant 0 : index
    %431 = vector.load %arg21[%c0_170, %c0_171] : memref<32x128xbf16, #tpu.memory_space<vmem>>, vector<32x128xbf16>
    %432 = arith.truncf %430 : vector<2x32xf32> to vector<2x32xbf16>
    %cst_172 = arith.constant dense<0.000000e+00> : vector<2x128xf32>
    %433 = tpu.matmul %432, %431, %cst_172 {dimension_numbers = #tpu.dot_dimension_numbers<[1], [0], [0], [1], [0, 0, 1, 1], [], []>} : vector<2x32xbf16>, vector<32x128xbf16>, vector<2x128xf32> -> vector<2x128xf32>
    %c0_173 = arith.constant 0 : index
    %c0_174 = arith.constant 0 : index
    %434 = vector.load %arg22[%c0_173, %c0_174] : memref<1x128xf32, #tpu.memory_space<vmem>>, vector<1x128xf32>
    %435 = vector.broadcast %434 : vector<1x128xf32> to vector<2x128xf32>
    %436 = arith.addf %433, %435 : vector<2x128xf32>
    %c0_175 = arith.constant 0 : index
    %c0_176 = arith.constant 0 : index
    %437 = vector.load %arg23[%c0_175, %c0_176] : memref<2x128xf32, #tpu.memory_space<vmem>>, vector<2x128xf32>
    tpu.vector_store %arg23[%c0_175, %c0_176], %436 {strides = array<i32>} : memref<2x128xf32, #tpu.memory_space<vmem>>, vector<2x128xf32>,
    return
  }
}

</mosaic_0001>

<llo_original>
// kernel: kobert_forward.1
$region0: #{kobert_forward.1}
  #allocation0 [shape = 'u32[]', space=smem, size = 0x4, offset = 0x4, fixed_abs, tag = 'smem constant byte address 0x4 - core index']
  #allocation1 [shape = 'u32[144,128]{1,0:T(1,128)}', space=vmem, size = 0x12000, scoped, tag = 'internal scratch']
  %s0 = inlined_call_operand.vmem [shape: s32[16,1], index: 0, kind: input, shape index: {}]
  %s1 = inlined_call_operand.vmem [shape: f32[2,8], index: 1, kind: input, shape index: {}]
  %s2 = inlined_call_operand.vmem [shape: f32[100,32], index: 2, kind: input, shape index: {}]
  %s3 = inlined_call_operand.vmem [shape: f32[8,32], index: 3, kind: input, shape index: {}]
  %s4 = inlined_call_operand.vmem [shape: f32[1,32], index: 4, kind: input, shape index: {}]
  %s5 = inlined_call_operand.vmem [shape: f32[1,32], index: 5, kind: input, shape index: {}]
  %s6 = inlined_call_operand.vmem [shape: f32[1,32], index: 6, kind: input, shape index: {}]
  %s7 = inlined_call_operand.vmem [shape: bf16[2,32,96], index: 7, kind: input, shape index: {}]
  %s8 = inlined_call_operand.vmem [shape: f32[2,1,96], index: 8, kind: input, shape index: {}]
  %s9 = inlined_call_operand.vmem [shape: bf16[2,32,32], index: 9, kind: input, shape index: {}]
  %s10 = inlined_call_operand.vmem [shape: f32[2,1,32], index: 10, kind: input, shape index: {}]
  %s11 = inlined_call_operand.vmem [shape: f32[2,1,32], index: 11, kind: input, shape index: {}]
  %s12 = inlined_call_operand.vmem [shape: f32[2,1,32], index: 12, kind: input, shape index: {}]
  %s13 = inlined_call_operand.vmem [shape: bf16[2,32,64], index: 13, kind: input, shape index: {}]
  %s14 = inlined_call_operand.vmem [shape: f32[2,1,64], index: 14, kind: input, shape index: {}]
  %s15 = inlined_call_operand.vmem [shape: bf16[2,64,32], index: 15, kind: input, shape index: {}]
  %s16 = inlined_call_operand.vmem [shape: f32[2,1,32], index: 16, kind: input, shape index: {}]
  %s17 = inlined_call_operand.vmem [shape: f32[2,1,32], index: 17, kind: input, shape index: {}]
  %s18 = inlined_call_operand.vmem [shape: f32[2,1,32], index: 18, kind: input, shape index: {}]
  %s19 = inlined_call_operand.vmem [shape: bf16[32,32], index: 19, kind: input, shape index: {}]
  %s20 = inlined_call_operand.vmem [shape: f32[1,32], index: 20, kind: input, shape index: {}]
  %s21 = inlined_call_operand.vmem [shape: bf16[32,128], index: 21, kind: input, shape index: {}]
  %s22 = inlined_call_operand.vmem [shape: f32[1,128], index: 22, kind: input, shape index: {}]
  %s23 = inlined_call_operand.hbm [shape: f32[2,128], index: 23, kind: output, shape index: {}]
  %s24 = sld [smem:[#allocation0]]
  $region102: #{kobert_forward.1} parent=0
    _
  %s26 = ssub.s32 1, %s24
  %s27 = scalar_select 0, %s26, %s24
  $region1: #{kobert_forward.1} parent=0
    #allocation2 [shape = 'u8[1024]{0}', space=vmem, size = 0x400, scoped, tag = 'output window, operand 0, single buffered']
    #allocation3 [shape = 's32[1]{0}', space=sflag, size = 0x4, scoped, tag = 'scoped memory for kobert_forward.1']
    %28 = vsyncpa [#allocation3], 0
    // Predicated region
    $region2: #{kobert_forward.1} parent=1 // pred_check
      _
    $region3: #{kobert_forward.1} parent=1 // pred_check_branch
      %30 = sbr.rel (0) target = $region5
    $region4: #{kobert_forward.1} parent=1 // pred_region
      _
    $region5: #{kobert_forward.1} parent=1 // pred_fallthru
      _
    // Predicated region
    $region6: #{kobert_forward.1} parent=1 // pred_check
      _
    $region7: #{kobert_forward.1} parent=1 // pred_check_branch
      %32 = sbr.rel (0) target = $region9
    $region8: #{kobert_forward.1} parent=1 // pred_region
      _
    $region9: #{kobert_forward.1} parent=1 // pred_fallthru
      _
    // Predicated region
    $region10: #{kobert_forward.1} parent=1 // pred_check
      _
    $region11: #{kobert_forward.1} parent=1 // pred_check_branch
      %34 = sbr.rel (0) target = $region13
    $region12: #{kobert_forward.1} parent=1 // pred_region
      _
    $region13: #{kobert_forward.1} parent=1 // pred_fallthru
      _
    // Predicated region
    $region14: #{kobert_forward.1} parent=1 // pred_check
      _
    $region15: #{kobert_forward.1} parent=1 // pred_check_branch
      %36 = sbr.rel (0) target = $region17
    $region16: #{kobert_forward.1} parent=1 // pred_region
      _
    $region17: #{kobert_forward.1} parent=1 // pred_fallthru
      _
    // Predicated region
    $region18: #{kobert_forward.1} parent=1 // pred_check
      _
    $region19: #{kobert_forward.1} parent=1 // pred_check_branch
      %38 = sbr.rel (0) target = $region21
    $region20: #{kobert_forward.1} parent=1 // pred_region
      _
    $region21: #{kobert_forward.1} parent=1 // pred_fallthru
      _
    // Predicated region
    $region22: #{kobert_forward.1} parent=1 // pred_check
      _
    $region23: #{kobert_forward.1} parent=1 // pred_check_branch
      %40 = sbr.rel (0) target = $region25
    $region24: #{kobert_forward.1} parent=1 // pred_region
      _
    $region25: #{kobert_forward.1} parent=1 // pred_fallthru
      _
    // Predicated region
    $region26: #{kobert_forward.1} parent=1 // pred_check
      _
    $region27: #{kobert_forward.1} parent=1 // pred_check_branch
      %42 = sbr.rel (0) target = $region29
    $region28: #{kobert_forward.1} parent=1 // pred_region
      _
    $region29: #{kobert_forward.1} parent=1 // pred_fallthru
      _
    // Predicated region
    $region30: #{kobert_forward.1} parent=1 // pred_check
      _
    $region31: #{kobert_forward.1} parent=1 // pred_check_branch
      %44 = sbr.rel (0) target = $region33
    $region32: #{kobert_forward.1} parent=1 // pred_region
      _
    $region33: #{kobert_forward.1} parent=1 // pred_fallthru
      _
    // Predicated region
    $region34: #{kobert_forward.1} parent=1 // pred_check
      _
    $region35: #{kobert_forward.1} parent=1 // pred_check_branch
      %46 = sbr.rel (0) target = $region37
    $region36: #{kobert_forward.1} parent=1 // pred_region
      _
    $region37: #{kobert_forward.1} parent=1 // pred_fallthru
      _
    // Predicated region
    $region38: #{kobert_forward.1} parent=1 // pred_check
      _
    $region39: #{kobert_forward.1} parent=1 // pred_check_branch
      %48 = sbr.rel (0) target = $region41
    $region40: #{kobert_forward.1} parent=1 // pred_region
      _
    $region41: #{kobert_forward.1} parent=1 // pred_fallthru
      _
    // Predicated region
    $region42: #{kobert_forward.1} parent=1 // pred_check
      _
    $region43: #{kobert_forward.1} parent=1 // pred_check_branch
      %50 = sbr.rel (0) target = $region45
    $region44: #{kobert_forward.1} parent=1 // pred_region
      _
    $region45: #{kobert_forward.1} parent=1 // pred_fallthru
      _
    // Predicated region
    $region46: #{kobert_forward.1} parent=1 // pred_check
      _
    $region47: #{kobert_forward.1} parent=1 // pred_check_branch
      %52 = sbr.rel (0) target = $region49
    $region48: #{kobert_forward.1} parent=1 // pred_region
      _
    $region49: #{kobert_forward.1} parent=1 // pred_fallthru
      _
    // Predicated region
    $region50: #{kobert_forward.1} parent=1 // pred_check
      _
    $region51: #{kobert_forward.1} parent=1 // pred_check_branch
      %54 = sbr.rel (0) target = $region53
    $region52: #{kobert_forward.1} parent=1 // pred_region
      _
    $region53: #{kobert_forward.1} parent=1 // pred_fallthru
      _
    // Predicated region
    $region54: #{kobert_forward.1} parent=1 // pred_check
      _
    $region55: #{kobert_forward.1} parent=1 // pred_check_branch
      %56 = sbr.rel (0) target = $region57
    $region56: #{kobert_forward.1} parent=1 // pred_region
      _
    $region57: #{kobert_forward.1} parent=1 // pred_fallthru
      _
    // Predicated region
    $region58: #{kobert_forward.1} parent=1 // pred_check
      _
    $region59: #{kobert_forward.1} parent=1 // pred_check_branch
      %58 = sbr.rel (0) target = $region61
    $region60: #{kobert_forward.1} parent=1 // pred_region
      _
    $region61: #{kobert_forward.1} parent=1 // pred_fallthru
      _
    // Predicated region
    $region62: #{kobert_forward.1} parent=1 // pred_check
      _
    $region63: #{kobert_forward.1} parent=1 // pred_check_branch
      %60 = sbr.rel (0) target = $region65
    $region64: #{kobert_forward.1} parent=1 // pred_region
      _
    $region65: #{kobert_forward.1} parent=1 // pred_fallthru
      _
    // Predicated region
    $region66: #{kobert_forward.1} parent=1 // pred_check
      _
    $region67: #{kobert_forward.1} parent=1 // pred_check_branch
      %62 = sbr.rel (0) target = $region69
    $region68: #{kobert_forward.1} parent=1 // pred_region
      _
    $region69: #{kobert_forward.1} parent=1 // pred_fallthru
      _
    // Predicated region
    $region70: #{kobert_forward.1} parent=1 // pred_check
      _
    $region71: #{kobert_forward.1} parent=1 // pred_check_branch
      %64 = sbr.rel (0) target = $region73
    $region72: #{kobert_forward.1} parent=1 // pred_region
      _
    $region73: #{kobert_forward.1} parent=1 // pred_fallthru
      _
    // Predicated region
    $region74: #{kobert_forward.1} parent=1 // pred_check
      _
    $region75: #{kobert_forward.1} parent=1 // pred_check_branch
      %66 = sbr.rel (0) target = $region77
    $region76: #{kobert_forward.1} parent=1 // pred_region
      _
    $region77: #{kobert_forward.1} parent=1 // pred_fallthru
      _
    // Predicated region
    $region78: #{kobert_forward.1} parent=1 // pred_check
      _
    $region79: #{kobert_forward.1} parent=1 // pred_check_branch
      %68 = sbr.rel (0) target = $region81
    $region80: #{kobert_forward.1} parent=1 // pred_region
      _
    $region81: #{kobert_forward.1} parent=1 // pred_fallthru
      _
    // Predicated region
    $region82: #{kobert_forward.1} parent=1 // pred_check
      _
    $region83: #{kobert_forward.1} parent=1 // pred_check_branch
      %70 = sbr.rel (0) target = $region85
    $region84: #{kobert_forward.1} parent=1 // pred_region
      _
    $region85: #{kobert_forward.1} parent=1 // pred_fallthru
      _
    // Predicated region
    $region86: #{kobert_forward.1} parent=1 // pred_check
      _
    $region87: #{kobert_forward.1} parent=1 // pred_check_branch
      %72 = sbr.rel (0) target = $region89
    $region88: #{kobert_forward.1} parent=1 // pred_region
      _
    $region89: #{kobert_forward.1} parent=1 // pred_fallthru
      _
    // Predicated region
    $region90: #{kobert_forward.1} parent=1 // pred_check
      _
    $region91: #{kobert_forward.1} parent=1 // pred_check_branch
      %74 = sbr.rel (0) target = $region93
    $region92: #{kobert_forward.1} parent=1 // pred_region
      _
    $region93: #{kobert_forward.1} parent=1 // pred_fallthru
      _
    %v76 = vld [vmem:[%s0] sm:$0xff]
    %v77 = vld [vmem:[%s0 + $0x8] sm:$0xff]
    %v78 = vlaneseq
    %v79 = vand.u32 %v78, 127
    %80 = vset.pattern.permute.xlu0 0
    %81 = vperm.xlu0 %80, %v76
    %v82 = vpop.permute.xlu0 %81
    %83 = vset.pattern.permute.xlu0 0
    %84 = vperm.xlu0 %83, %v77
    %v85 = vpop.permute.xlu0 %84
    %vm86 = vcmp.eq.s32.totalorder %v79, %v82
    %vm87 = vcmp.eq.s32.totalorder %v79, %v85
    %v88 = vsel %vm86, 1, 0
    %v89 = vsel %vm87, 1, 0
    %v90 = vcvt.s32.f32 %v88
    %v91 = vcvt.s32.f32 %v89
    %v92 = vld [vmem:[%s2] sm:$0xff]
    %v93 = vld [vmem:[%s2 + $0x8] sm:$0xff]
    %v94 = vld [vmem:[%s2 + $0x10] sm:$0xff]
    %v95 = vld [vmem:[%s2 + $0x18] sm:$0xff]
    %v96 = vld [vmem:[%s2 + $0x20] sm:$0xff]
    %v97 = vld [vmem:[%s2 + $0x28] sm:$0xff]
    %v98 = vld [vmem:[%s2 + $0x30] sm:$0xff]
    %v99 = vld [vmem:[%s2 + $0x38] sm:$0xff]
    %v100 = vld [vmem:[%s2 + $0x40] sm:$0xff]
    %v101 = vld [vmem:[%s2 + $0x48] sm:$0xff]
    %v102 = vld [vmem:[%s2 + $0x50] sm:$0xff]
    %v103 = vld [vmem:[%s2 + $0x58] sm:$0xff]
    %v104 = vld [vmem:[%s2 + $0x60] sm:$0xf]
    %vm105 = vcmask 818176
    %v107 = vsel %vm105, %v90, 0
    %v110 = vsel %vm105, %v91, 0
    %vm112 = vcmask 1043456
    %v114 = vsel %vm112, %v104, 0
    %116 = vmatprep.subr.mxu0 0.0
    %117 = vmatpush1.msra.mxu0 0.0
    %118 = vmatprep.subr.mxu0 0.0
    %119 = vmatpush1.msra.mxu0 0.0
    %120 = vmatprep.subr.mxu0 0.0
    %121 = vmatpush1.msra.mxu0 0.0
    %122 = vmatprep.subr.mxu0 0.0
    %123 = vmatpush1.msra.mxu0 %v114
    %124 = vmatprep.subr.mxu0 0.0
    %125 = vmatpush1.msra.mxu0 %v103
    %126 = vmatprep.subr.mxu0 0.0
    %127 = vmatpush1.msra.mxu0 %v102
    %128 = vmatprep.subr.mxu0 0.0
    %129 = vmatpush1.msra.mxu0 %v101
    %130 = vmatprep.subr.mxu0 0.0
    %131 = vmatpush1.msra.mxu0 %v100
    %132 = vmatprep.subr.mxu0 0.0
    %133 = vmatpush1.msra.mxu0 %v99
    %134 = vmatprep.subr.mxu0 0.0
    %135 = vmatpush1.msra.mxu0 %v98
    %136 = vmatprep.subr.mxu0 0.0
    %137 = vmatpush1.msra.mxu0 %v97
    %138 = vmatprep.subr.mxu0 0.0
    %139 = vmatpush1.msra.mxu0 %v96
    %140 = vmatprep.subr.mxu0 0.0
    %141 = vmatpush1.msra.mxu0 %v95
    %142 = vmatprep.subr.mxu0 0.0
    %143 = vmatpush1.msra.mxu0 %v94
    %144 = vmatprep.subr.mxu0 0.0
    %145 = vmatpush1.msra.mxu0 %v93
    %146 = vmatprep.subr.mxu0 0.0
    %147 = vmatpush1.msra.mxu0 %v92
    %148 = vmatprep.subr.mxu0 0.0
    %149 = vmatpush2.msra.mxu0 0.0
    %150 = vmatprep.subr.mxu0 0.0
    %151 = vmatpush2.msra.mxu0 0.0
    %152 = vmatprep.subr.mxu0 0.0
    %153 = vmatpush2.msra.mxu0 0.0
    %154 = vmatprep.subr.mxu0 0.0
    %155 = vmatpush2.msra.mxu0 0.0
    %156 = vmatprep.subr.mxu0 0.0
    %157 = vmatpush2.msra.mxu0 0.0
    %158 = vmatprep.subr.mxu0 0.0
    %159 = vmatpush2.msra.mxu0 0.0
    %160 = vmatprep.subr.mxu0 0.0
    %161 = vmatpush2.msra.mxu0 0.0
    %162 = vmatprep.subr.mxu0 0.0
    %163 = vmatpush2.msra.mxu0 0.0
    %164 = vmatprep.subr.mxu0 0.0
    %165 = vmatpush2.msra.mxu0 0.0
    %166 = vmatprep.subr.mxu0 0.0
    %167 = vmatpush2.msra.mxu0 0.0
    %168 = vmatprep.subr.mxu0 0.0
    %169 = vmatpush2.msra.mxu0 0.0
    %170 = vmatprep.subr.mxu0 0.0
    %171 = vmatpush2.msra.mxu0 0.0
    %172 = vmatprep.subr.mxu0 0.0
    %173 = vmatpush2.msra.mxu0 0.0
    %174 = vmatprep.subr.mxu0 0.0
    %175 = vmatpush2.msra.mxu0 0.0
    %176 = vmatprep.subr.mxu0 0.0
    %177 = vmatpush2.msra.mxu0 0.0
    %178 = vmatprep.subr.mxu0 0.0
    %179 = vmatpush2.msra.mxu0 0.0
    %180 = vmatprep.mubr.f32.mxu0 0.0
    %181 = vmatmul.mubr.f32.gmra.mxu0 %v107
    %v182 = vpop.f32.mrf.mxu0
    %v183 = vadd.f32 0.0, %v182
    %v184 = vpop.f32.mrf.mxu0
    %185 = vmatprep.mubr.f32.mxu0 0.0
    %186 = vmatmul.mubr.f32.gmra.mxu0 %v110
    %v187 = vpop.f32.mrf.mxu0
    %v188 = vadd.f32 0.0, %v187
    %v189 = vpop.f32.mrf.mxu0
    %190 = vdwg.mxu0
    %v191 = vld [vmem:[%s3] sm:$0xff]
    %v192 = vadd.f32 %v183, %v191
    %v193 = vadd.f32 %v188, %v191
    %v194 = vld [vmem:[%s4] sm:$0x1]
    %v196 = vlaneseq
    %v197 = vshrl.u32 %v196, 7
    %v198 = vsub.s32 0, %v197
    %v199 = vrot.slane %v194, %v198
    %v201 = vadd.f32 %v192, %v199
    %v202 = vadd.f32 %v193, %v199
    %v203 = vld [vmem:[%s5] sm:$0x1]
    %v204 = vld [vmem:[%s6] sm:$0x1]
    %vm205 = vcmask 261120
    %v206 = vsel %vm205, %v201, 0.0
    %207 = vadd.xlane.f32.xlu0 %v206
    %v208 = vpop.xlane.xlu0 %207
    %v209 = vsel %vm205, %v202, 0.0
    %210 = vadd.xlane.f32.xlu0 %v209
    %v211 = vpop.xlane.xlu0 %210
    %v212 = vrcp.pop 32.0
    %v213 = vmul.f32 %v208, %v212
    %v214 = vmul.f32 %v211, %v212
    %v215 = vsub.f32 %v201, %v213
    %v216 = vsub.f32 %v202, %v214
    %v217 = vmul.f32 %v215, %v215
    %v218 = vmul.f32 %v216, %v216
    %v219 = vsel %vm205, %v217, 0.0
    %220 = vadd.xlane.f32.xlu0 %v219
    %v221 = vpop.xlane.xlu0 %220
    %v222 = vsel %vm205, %v218, 0.0
    %223 = vadd.xlane.f32.xlu0 %v222
    %v224 = vpop.xlane.xlu0 %223
    %v225 = vmul.f32 %v221, %v212
    %v226 = vmul.f32 %v224, %v212
    %v227 = vadd.f32 %v225, 1e-12
    %v228 = vadd.f32 %v226, 1e-12
    %v229 = vrsqrt.pop %v227
    %v230 = vrsqrt.pop %v228
    %v231 = vmul.f32 %v215, %v229
    %v232 = vmul.f32 %v216, %v230
    %v234 = vlaneseq
    %v235 = vshrl.u32 %v234, 7
    %v236 = vsub.s32 0, %v235
    %v237 = vrot.slane %v203, %v236
    %v239 = vmul.f32 %v231, %v237
    %v240 = vmul.f32 %v232, %v237
    %v242 = vlaneseq
    %v243 = vshrl.u32 %v242, 7
    %v244 = vsub.s32 0, %v243
    %v245 = vrot.slane %v204, %v244
    %v247 = vadd.f32 %v239, %v245
    %v248 = vadd.f32 %v240, %v245
    %v249 = vld [vmem:[%s1] sm:$0x3]
    %v250 = vsub.f32 1.0, %v249
    %v251 = vmul.f32 %v250, -1e+09
    %v254 = vunpack.c.l.s4 1966171168
    %v255 = vunpack.c.0.s8 %v254
    %v256 = vlaneseq
    %v257 = vshrl.u32 %v256, 7
    %v258 = vsub.s32 %v255, %v257
    %v259 = vrot.slane %v251, %v258
    %v260 = vcombine.high %v259, %v259
    %v262 = vunpack.c.l.s4 1966171168
    %v263 = vunpack.c.0.s8 %v262
    %v264 = vlaneseq
    %v265 = vshrl.u32 %v264, 7
    %v266 = vsub.s32 %v263, %v265
    %v267 = vrot.slane %v259, %v266
    %v269 = vunpack.c.l.s4 1966171168
    %v270 = vunpack.c.0.s8 %v269
    %v271 = vlaneseq
    %v272 = vshrl.u32 %v271, 7
    %v273 = vsub.s32 %v270, %v272
    %v274 = vrot.slane %v260, %v273
    %v275 = vld [vmem:[%s7] sm:$0xf]
    %v276 = vld [vmem:[%s7 + $0x4] sm:$0xf]
    %v277 = vld [vmem:[%s7 + $0x8] sm:$0xf]
    %v278 = vld [vmem:[%s7 + $0xc] sm:$0xf]
    %v279 = vpack.c.bf16 %v248, %v247
    %v280 = vld [vmem:[%s8] sm:$0x1]
    %v282 = vlaneseq
    %v283 = vshrl.u32 %v282, 7
    %v284 = vsub.s32 0, %v283
    %v285 = vrot.slane %v280, %v284
    %v291 = vunpack.c.l.b16 %v275
    %v292 = vunpack.c.l.b16 %v276
    %v293 = vunpack.c.l.b16 %v277
    %v294 = vunpack.c.l.b16 %v278
    %v295 = vpack.c.b16 %v292, %v291
    %v296 = vpack.c.b16 %v294, %v293
    %v300 = vsel %vm205, %v279, 0
    %302 = vmatprep.subr.bf16.mxu0 0
    %303 = vmatpush1.bf16.msra.mxu0 0
    %304 = vmatprep.subr.bf16.mxu0 0
    %305 = vmatpush1.bf16.msra.mxu0 0
    %306 = vmatprep.subr.bf16.mxu0 0
    %307 = vmatpush1.bf16.msra.mxu0 0
    %308 = vmatprep.subr.bf16.mxu0 0
    %309 = vmatpush1.bf16.msra.mxu0 0
    %310 = vmatprep.subr.bf16.mxu0 0
    %311 = vmatpush1.bf16.msra.mxu0 0
    %312 = vmatprep.subr.bf16.mxu0 0
    %313 = vmatpush1.bf16.msra.mxu0 0
    %314 = vmatprep.subr.bf16.mxu0 0
    %315 = vmatpush1.bf16.msra.mxu0 %v296
    %316 = vmatprep.subr.bf16.mxu0 0
    %317 = vmatpush1.bf16.msra.mxu0 %v295
    %318 = vmatprep.subr.bf16.mxu0 0
    %319 = vmatpush2.bf16.msra.mxu0 0
    %320 = vmatprep.subr.bf16.mxu0 0
    %321 = vmatpush2.bf16.msra.mxu0 0
    %322 = vmatprep.subr.bf16.mxu0 0
    %323 = vmatpush2.bf16.msra.mxu0 0
    %324 = vmatprep.subr.bf16.mxu0 0
    %325 = vmatpush2.bf16.msra.mxu0 0
    %326 = vmatprep.subr.bf16.mxu0 0
    %327 = vmatpush2.bf16.msra.mxu0 0
    %328 = vmatprep.subr.bf16.mxu0 0
    %329 = vmatpush2.bf16.msra.mxu0 0
    %330 = vmatprep.subr.bf16.mxu0 0
    %331 = vmatpush2.bf16.msra.mxu0 0
    %332 = vmatprep.subr.bf16.mxu0 0
    %333 = vmatpush2.bf16.msra.mxu0 0
    %334 = vmatprep.mubr.bf16.mxu0 0
    %335 = vmatmul.mubr.bf16.gmra.mxu0 %v300
    %v336 = vpop.f32.mrf.mxu0
    %v337 = vadd.f32 %v285, %v336
    %v338 = vpop.f32.mrf.mxu0
    %v339 = vpop.f32.mrf.mxu0
    %v340 = vadd.f32 %v285, %v339
    %v341 = vpop.f32.mrf.mxu0
    %342 = vdwg.mxu0
    %v343 = vpack.c.bf16 %v340, %v337
    %v345 = vunpack.c.l.b16 %v343
    %v346 = vunpack.c.h.b16 %v343
    %v347 = vpack.c.b16 %v345, %v345
    %v348 = vpack.c.b16 %v346, %v346
    %349 = vrot.lane.b32.xlu0 %v347, 96
    %v350 = vpop.permute.xlu0 %349
    %vm351 = vcmask 64512
    %v353 = vsel %vm351, %v347, 0
    %v356 = vsel %vm351, %v350, 0
    %358 = vmatprep.subr.bf16.mxu0 0
    %359 = vmatpush1.bf16.xpose.msra.mxu0 0
    %360 = vmatprep.subr.bf16.mxu0 0
    %361 = vmatpush1.bf16.xpose.msra.mxu0 0
    %362 = vmatprep.subr.bf16.mxu0 0
    %363 = vmatpush1.bf16.xpose.msra.mxu0 0
    %364 = vmatprep.subr.bf16.mxu0 0
    %365 = vmatpush1.bf16.xpose.msra.mxu0 0
    %366 = vmatprep.subr.bf16.mxu0 0
    %367 = vmatpush1.bf16.xpose.msra.mxu0 0
    %368 = vmatprep.subr.bf16.mxu0 0
    %369 = vmatpush1.bf16.xpose.msra.mxu0 0
    %370 = vmatprep.subr.bf16.mxu0 0
    %371 = vmatpush1.bf16.xpose.msra.mxu0 0
    %372 = vmatprep.subr.bf16.mxu0 0
    %373 = vmatpush1.bf16.xpose.msra.mxu0 %v356
    %374 = vmatprep.subr.bf16.mxu0 0
    %375 = vmatpush2.bf16.xpose.msra.mxu0 0
    %376 = vmatprep.subr.bf16.mxu0 0
    %377 = vmatpush2.bf16.xpose.msra.mxu0 0
    %378 = vmatprep.subr.bf16.mxu0 0
    %379 = vmatpush2.bf16.xpose.msra.mxu0 0
    %380 = vmatprep.subr.bf16.mxu0 0
    %381 = vmatpush2.bf16.xpose.msra.mxu0 0
    %382 = vmatprep.subr.bf16.mxu0 0
    %383 = vmatpush2.bf16.xpose.msra.mxu0 0
    %384 = vmatprep.subr.bf16.mxu0 0
    %385 = vmatpush2.bf16.xpose.msra.mxu0 0
    %386 = vmatprep.subr.bf16.mxu0 0
    %387 = vmatpush2.bf16.xpose.msra.mxu0 0
    %388 = vmatprep.subr.bf16.mxu0 0
    %389 = vmatpush2.bf16.xpose.msra.mxu0 0
    %390 = vmatprep.mubr.bf16.mxu0 0
    %391 = vmatmul.mubr.bf16.gmra.mxu0 %v353
    %v392 = vpop.f32.mrf.mxu0
    %v393 = vadd.f32 0.0, %v392
    %v394 = vpop.f32.mrf.mxu0
    %v395 = vpop.f32.mrf.mxu0
    %v396 = vpop.f32.mrf.mxu0
    %397 = vdwg.mxu0
    %398 = vrot.lane.b32.xlu0 %v348, 96
    %v399 = vpop.permute.xlu0 %398
    %v401 = vsel %vm351, %v348, 0
    %v404 = vsel %vm351, %v399, 0
    %406 = vmatprep.subr.bf16.mxu0 0
    %407 = vmatpush1.bf16.xpose.msra.mxu0 0
    %408 = vmatprep.subr.bf16.mxu0 0
    %409 = vmatpush1.bf16.xpose.msra.mxu0 0
    %410 = vmatprep.subr.bf16.mxu0 0
    %411 = vmatpush1.bf16.xpose.msra.mxu0 0
    %412 = vmatprep.subr.bf16.mxu0 0
    %413 = vmatpush1.bf16.xpose.msra.mxu0 0
    %414 = vmatprep.subr.bf16.mxu0 0
    %415 = vmatpush1.bf16.xpose.msra.mxu0 0
    %416 = vmatprep.subr.bf16.mxu0 0
    %417 = vmatpush1.bf16.xpose.msra.mxu0 0
    %418 = vmatprep.subr.bf16.mxu0 0
    %419 = vmatpush1.bf16.xpose.msra.mxu0 0
    %420 = vmatprep.subr.bf16.mxu0 0
    %421 = vmatpush1.bf16.xpose.msra.mxu0 %v404
    %422 = vmatprep.subr.bf16.mxu0 0
    %423 = vmatpush2.bf16.xpose.msra.mxu0 0
    %424 = vmatprep.subr.bf16.mxu0 0
    %425 = vmatpush2.bf16.xpose.msra.mxu0 0
    %426 = vmatprep.subr.bf16.mxu0 0
    %427 = vmatpush2.bf16.xpose.msra.mxu0 0
    %428 = vmatprep.subr.bf16.mxu0 0
    %429 = vmatpush2.bf16.xpose.msra.mxu0 0
    %430 = vmatprep.subr.bf16.mxu0 0
    %431 = vmatpush2.bf16.xpose.msra.mxu0 0
    %432 = vmatprep.subr.bf16.mxu0 0
    %433 = vmatpush2.bf16.xpose.msra.mxu0 0
    %434 = vmatprep.subr.bf16.mxu0 0
    %435 = vmatpush2.bf16.xpose.msra.mxu0 0
    %436 = vmatprep.subr.bf16.mxu0 0
    %437 = vmatpush2.bf16.xpose.msra.mxu0 0
    %438 = vmatprep.mubr.bf16.mxu0 0
    %439 = vmatmul.mubr.bf16.gmra.mxu0 %v401
    %v440 = vpop.f32.mrf.mxu0
    %v441 = vadd.f32 0.0, %v440
    %v442 = vpop.f32.mrf.mxu0
    %v443 = vpop.f32.mrf.mxu0
    %v444 = vpop.f32.mrf.mxu0
    %445 = vdwg.mxu0
    %v446 = vmul.f32 %v393, 0.35355338
    %v447 = vmul.f32 %v441, 0.35355338
    %v448 = vlaneseq
    %v449 = vshrl.u32 %v448, 7
    %v450 = vsub.s32 0, %v449
    %v451 = vrot.slane %v267, %v450
    %v452 = vlaneseq
    %v453 = vshrl.u32 %v452, 7
    %v454 = vsub.s32 0, %v453
    %v455 = vrot.slane %v274, %v454
    %v458 = vadd.f32 %v446, %v451
    %v459 = vadd.f32 %v447, %v455
    %v460 = vsel %vm351, %v458, -inf
    %461 = vmax.xlane.f32.xlu0 %v460
    %v462 = vpop.xlane.xlu0 %461
    %v463 = vsel %vm351, %v459, -inf
    %464 = vmax.xlane.f32.xlu0 %v463
    %v465 = vpop.xlane.xlu0 %464
    %v466 = vsub.f32 %v458, %v462
    %v467 = vsub.f32 %v459, %v465
    %v468 = vmul.f32 %v466, 1.442695
    %v469 = vpow.pop %v468
    %v470 = vmul.f32 %v467, 1.442695
    %v471 = vpow.pop %v470
    %v472 = vsel %vm351, %v469, 0.0
    %473 = vadd.xlane.f32.xlu0 %v472
    %v474 = vpop.xlane.xlu0 %473
    %v475 = vsel %vm351, %v471, 0.0
    %476 = vadd.xlane.f32.xlu0 %v475
    %v477 = vpop.xlane.xlu0 %476
    %v478 = vrcp.pop %v474
    %v479 = vrcp.pop %v477
    %v480 = vmul.f32 %v469, %v478
    %v481 = vmul.f32 %v471, %v479
    %v482 = vpack.c.bf16 %v480, %v480
    %v483 = vpack.c.bf16 %v481, %v481
    %484 = vrot.lane.b32.xlu0 %v347, 64
    %v485 = vpop.permute.xlu0 %484
    %v487 = vsel %vm351, %v482, 0
    %v490 = vsel %vm112, %v485, 0
    %492 = vmatprep.subr.bf16.mxu0 0
    %493 = vmatpush1.bf16.msra.mxu0 0
    %494 = vmatprep.subr.bf16.mxu0 0
    %495 = vmatpush1.bf16.msra.mxu0 0
    %496 = vmatprep.subr.bf16.mxu0 0
    %497 = vmatpush1.bf16.msra.mxu0 0
    %498 = vmatprep.subr.bf16.mxu0 0
    %499 = vmatpush1.bf16.msra.mxu0 0
    %500 = vmatprep.subr.bf16.mxu0 0
    %501 = vmatpush1.bf16.msra.mxu0 0
    %502 = vmatprep.subr.bf16.mxu0 0
    %503 = vmatpush1.bf16.msra.mxu0 0
    %504 = vmatprep.subr.bf16.mxu0 0
    %505 = vmatpush1.bf16.msra.mxu0 0
    %506 = vmatprep.subr.bf16.mxu0 0
    %507 = vmatpush1.bf16.msra.mxu0 %v490
    %508 = vmatprep.subr.bf16.mxu0 0
    %509 = vmatpush2.bf16.msra.mxu0 0
    %510 = vmatprep.subr.bf16.mxu0 0
    %511 = vmatpush2.bf16.msra.mxu0 0
    %512 = vmatprep.subr.bf16.mxu0 0
    %513 = vmatpush2.bf16.msra.mxu0 0
    %514 = vmatprep.subr.bf16.mxu0 0
    %515 = vmatpush2.bf16.msra.mxu0 0
    %516 = vmatprep.subr.bf16.mxu0 0
    %517 = vmatpush2.bf16.msra.mxu0 0
    %518 = vmatprep.subr.bf16.mxu0 0
    %519 = vmatpush2.bf16.msra.mxu0 0
    %520 = vmatprep.subr.bf16.mxu0 0
    %521 = vmatpush2.bf16.msra.mxu0 0
    %522 = vmatprep.subr.bf16.mxu0 0
    %523 = vmatpush2.bf16.msra.mxu0 0
    %524 = vmatprep.mubr.bf16.mxu0 0
    %525 = vmatmul.mubr.bf16.gmra.mxu0 %v487
    %v526 = vpop.f32.mrf.mxu0
    %v527 = vadd.f32 0.0, %v526
    %v528 = vpop.f32.mrf.mxu0
    %v529 = vpop.f32.mrf.mxu0
    %v530 = vpop.f32.mrf.mxu0
    %531 = vdwg.mxu0
    %532 = vrot.lane.b32.xlu0 %v348, 64
    %v533 = vpop.permute.xlu0 %532
    %v535 = vsel %vm351, %v483, 0
    %v538 = vsel %vm112, %v533, 0
    %540 = vmatprep.subr.bf16.mxu0 0
    %541 = vmatpush1.bf16.msra.mxu0 0
    %542 = vmatprep.subr.bf16.mxu0 0
    %543 = vmatpush1.bf16.msra.mxu0 0
    %544 = vmatprep.subr.bf16.mxu0 0
    %545 = vmatpush1.bf16.msra.mxu0 0
    %546 = vmatprep.subr.bf16.mxu0 0
    %547 = vmatpush1.bf16.msra.mxu0 0
    %548 = vmatprep.subr.bf16.mxu0 0
    %549 = vmatpush1.bf16.msra.mxu0 0
    %550 = vmatprep.subr.bf16.mxu0 0
    %551 = vmatpush1.bf16.msra.mxu0 0
    %552 = vmatprep.subr.bf16.mxu0 0
    %553 = vmatpush1.bf16.msra.mxu0 0
    %554 = vmatprep.subr.bf16.mxu0 0
    %555 = vmatpush1.bf16.msra.mxu0 %v538
    %556 = vmatprep.subr.bf16.mxu0 0
    %557 = vmatpush2.bf16.msra.mxu0 0
    %558 = vmatprep.subr.bf16.mxu0 0
    %559 = vmatpush2.bf16.msra.mxu0 0
    %560 = vmatprep.subr.bf16.mxu0 0
    %561 = vmatpush2.bf16.msra.mxu0 0
    %562 = vmatprep.subr.bf16.mxu0 0
    %563 = vmatpush2.bf16.msra.mxu0 0
    %564 = vmatprep.subr.bf16.mxu0 0
    %565 = vmatpush2.bf16.msra.mxu0 0
    %566 = vmatprep.subr.bf16.mxu0 0
    %567 = vmatpush2.bf16.msra.mxu0 0
    %568 = vmatprep.subr.bf16.mxu0 0
    %569 = vmatpush2.bf16.msra.mxu0 0
    %570 = vmatprep.subr.bf16.mxu0 0
    %571 = vmatpush2.bf16.msra.mxu0 0
    %572 = vmatprep.mubr.bf16.mxu0 0
    %573 = vmatmul.mubr.bf16.gmra.mxu0 %v535
    %v574 = vpop.f32.mrf.mxu0
    %v575 = vadd.f32 0.0, %v574
    %v576 = vpop.f32.mrf.mxu0
    %v577 = vpop.f32.mrf.mxu0
    %v578 = vpop.f32.mrf.mxu0
    %579 = vdwg.mxu0
    %580 = vrot.lane.b32.xlu0 %v347, 120
    %v581 = vpop.permute.xlu0 %580
    %582 = vrot.lane.b32.xlu0 %v347, 88
    %v583 = vpop.permute.xlu0 %582
    %v585 = vsel %vm351, %v581, 0
    %v588 = vsel %vm351, %v583, 0
    %590 = vmatprep.subr.bf16.mxu0 0
    %591 = vmatpush1.bf16.xpose.msra.mxu0 0
    %592 = vmatprep.subr.bf16.mxu0 0
    %593 = vmatpush1.bf16.xpose.msra.mxu0 0
    %594 = vmatprep.subr.bf16.mxu0 0
    %595 = vmatpush1.bf16.xpose.msra.mxu0 0
    %596 = vmatprep.subr.bf16.mxu0 0
    %597 = vmatpush1.bf16.xpose.msra.mxu0 0
    %598 = vmatprep.subr.bf16.mxu0 0
    %599 = vmatpush1.bf16.xpose.msra.mxu0 0
    %600 = vmatprep.subr.bf16.mxu0 0
    %601 = vmatpush1.bf16.xpose.msra.mxu0 0
    %602 = vmatprep.subr.bf16.mxu0 0
    %603 = vmatpush1.bf16.xpose.msra.mxu0 0
    %604 = vmatprep.subr.bf16.mxu0 0
    %605 = vmatpush1.bf16.xpose.msra.mxu0 %v588
    %606 = vmatprep.subr.bf16.mxu0 0
    %607 = vmatpush2.bf16.xpose.msra.mxu0 0
    %608 = vmatprep.subr.bf16.mxu0 0
    %609 = vmatpush2.bf16.xpose.msra.mxu0 0
    %610 = vmatprep.subr.bf16.mxu0 0
    %611 = vmatpush2.bf16.xpose.msra.mxu0 0
    %612 = vmatprep.subr.bf16.mxu0 0
    %613 = vmatpush2.bf16.xpose.msra.mxu0 0
    %614 = vmatprep.subr.bf16.mxu0 0
    %615 = vmatpush2.bf16.xpose.msra.mxu0 0
    %616 = vmatprep.subr.bf16.mxu0 0
    %617 = vmatpush2.bf16.xpose.msra.mxu0 0
    %618 = vmatprep.subr.bf16.mxu0 0
    %619 = vmatpush2.bf16.xpose.msra.mxu0 0
    %620 = vmatprep.subr.bf16.mxu0 0
    %621 = vmatpush2.bf16.xpose.msra.mxu0 0
    %622 = vmatprep.mubr.bf16.mxu0 0
    %623 = vmatmul.mubr.bf16.gmra.mxu0 %v585
    %v624 = vpop.f32.mrf.mxu0
    %v625 = vadd.f32 0.0, %v624
    %v626 = vpop.f32.mrf.mxu0
    %v627 = vpop.f32.mrf.mxu0
    %v628 = vpop.f32.mrf.mxu0
    %629 = vdwg.mxu0
    %630 = vrot.lane.b32.xlu0 %v348, 120
    %v631 = vpop.permute.xlu0 %630
    %632 = vrot.lane.b32.xlu0 %v348, 88
    %v633 = vpop.permute.xlu0 %632
    %v635 = vsel %vm351, %v631, 0
    %v638 = vsel %vm351, %v633, 0
    %640 = vmatprep.subr.bf16.mxu0 0
    %641 = vmatpush1.bf16.xpose.msra.mxu0 0
    %642 = vmatprep.subr.bf16.mxu0 0
    %643 = vmatpush1.bf16.xpose.msra.mxu0 0
    %644 = vmatprep.subr.bf16.mxu0 0
    %645 = vmatpush1.bf16.xpose.msra.mxu0 0
    %646 = vmatprep.subr.bf16.mxu0 0
    %647 = vmatpush1.bf16.xpose.msra.mxu0 0
    %648 = vmatprep.subr.bf16.mxu0 0
    %649 = vmatpush1.bf16.xpose.msra.mxu0 0
    %650 = vmatprep.subr.bf16.mxu0 0
    %651 = vmatpush1.bf16.xpose.msra.mxu0 0
    %652 = vmatprep.subr.bf16.mxu0 0
    %653 = vmatpush1.bf16.xpose.msra.mxu0 0
    %654 = vmatprep.subr.bf16.mxu0 0
    %655 = vmatpush1.bf16.xpose.msra.mxu0 %v638
    %656 = vmatprep.subr.bf16.mxu0 0
    %657 = vmatpush2.bf16.xpose.msra.mxu0 0
    %658 = vmatprep.subr.bf16.mxu0 0
    %659 = vmatpush2.bf16.xpose.msra.mxu0 0
    %660 = vmatprep.subr.bf16.mxu0 0
    %661 = vmatpush2.bf16.xpose.msra.mxu0 0
    %662 = vmatprep.subr.bf16.mxu0 0
    %663 = vmatpush2.bf16.xpose.msra.mxu0 0
    %664 = vmatprep.subr.bf16.mxu0 0
    %665 = vmatpush2.bf16.xpose.msra.mxu0 0
    %666 = vmatprep.subr.bf16.mxu0 0
    %667 = vmatpush2.bf16.xpose.msra.mxu0 0
    %668 = vmatprep.subr.bf16.mxu0 0
    %669 = vmatpush2.bf16.xpose.msra.mxu0 0
    %670 = vmatprep.subr.bf16.mxu0 0
    %671 = vmatpush2.bf16.xpose.msra.mxu0 0
    %672 = vmatprep.mubr.bf16.mxu0 0
    %673 = vmatmul.mubr.bf16.gmra.mxu0 %v635
    %v674 = vpop.f32.mrf.mxu0
    %v675 = vadd.f32 0.0, %v674
    %v676 = vpop.f32.mrf.mxu0
    %v677 = vpop.f32.mrf.mxu0
    %v678 = vpop.f32.mrf.mxu0
    %679 = vdwg.mxu0
    %v680 = vmul.f32 %v625, 0.35355338
    %v681 = vmul.f32 %v675, 0.35355338
    %v682 = vadd.f32 %v680, %v451
    %v683 = vadd.f32 %v681, %v455
    %v684 = vsel %vm351, %v682, -inf
    %685 = vmax.xlane.f32.xlu0 %v684
    %v686 = vpop.xlane.xlu0 %685
    %v687 = vsel %vm351, %v683, -inf
    %688 = vmax.xlane.f32.xlu0 %v687
    %v689 = vpop.xlane.xlu0 %688
    %v690 = vsub.f32 %v682, %v686
    %v691 = vsub.f32 %v683, %v689
    %v692 = vmul.f32 %v690, 1.442695
    %v693 = vpow.pop %v692
    %v694 = vmul.f32 %v691, 1.442695
    %v695 = vpow.pop %v694
    %v696 = vsel %vm351, %v693, 0.0
    %697 = vadd.xlane.f32.xlu0 %v696
    %v698 = vpop.xlane.xlu0 %697
    %v699 = vsel %vm351, %v695, 0.0
    %700 = vadd.xlane.f32.xlu0 %v699
    %v701 = vpop.xlane.xlu0 %700
    %v702 = vrcp.pop %v698
    %v703 = vrcp.pop %v701
    %v704 = vmul.f32 %v693, %v702
    %v705 = vmul.f32 %v695, %v703
    %v706 = vpack.c.bf16 %v704, %v704
    %v707 = vpack.c.bf16 %v705, %v705
    %708 = vrot.lane.b32.xlu0 %v347, 56
    %v709 = vpop.permute.xlu0 %708
    %v711 = vsel %vm351, %v706, 0
    %v714 = vsel %vm112, %v709, 0
    %716 = vmatprep.subr.bf16.mxu0 0
    %717 = vmatpush1.bf16.msra.mxu0 0
    %718 = vmatprep.subr.bf16.mxu0 0
    %719 = vmatpush1.bf16.msra.mxu0 0
    %720 = vmatprep.subr.bf16.mxu0 0
    %721 = vmatpush1.bf16.msra.mxu0 0
    %722 = vmatprep.subr.bf16.mxu0 0
    %723 = vmatpush1.bf16.msra.mxu0 0
    %724 = vmatprep.subr.bf16.mxu0 0
    %725 = vmatpush1.bf16.msra.mxu0 0
    %726 = vmatprep.subr.bf16.mxu0 0
    %727 = vmatpush1.bf16.msra.mxu0 0
    %728 = vmatprep.subr.bf16.mxu0 0
    %729 = vmatpush1.bf16.msra.mxu0 0
    %730 = vmatprep.subr.bf16.mxu0 0
    %731 = vmatpush1.bf16.msra.mxu0 %v714
    %732 = vmatprep.subr.bf16.mxu0 0
    %733 = vmatpush2.bf16.msra.mxu0 0
    %734 = vmatprep.subr.bf16.mxu0 0
    %735 = vmatpush2.bf16.msra.mxu0 0
    %736 = vmatprep.subr.bf16.mxu0 0
    %737 = vmatpush2.bf16.msra.mxu0 0
    %738 = vmatprep.subr.bf16.mxu0 0
    %739 = vmatpush2.bf16.msra.mxu0 0
    %740 = vmatprep.subr.bf16.mxu0 0
    %741 = vmatpush2.bf16.msra.mxu0 0
    %742 = vmatprep.subr.bf16.mxu0 0
    %743 = vmatpush2.bf16.msra.mxu0 0
    %744 = vmatprep.subr.bf16.mxu0 0
    %745 = vmatpush2.bf16.msra.mxu0 0
    %746 = vmatprep.subr.bf16.mxu0 0
    %747 = vmatpush2.bf16.msra.mxu0 0
    %748 = vmatprep.mubr.bf16.mxu0 0
    %749 = vmatmul.mubr.bf16.gmra.mxu0 %v711
    %v750 = vpop.f32.mrf.mxu0
    %v751 = vadd.f32 0.0, %v750
    %v752 = vpop.f32.mrf.mxu0
    %v753 = vpop.f32.mrf.mxu0
    %v754 = vpop.f32.mrf.mxu0
    %755 = vdwg.mxu0
    %756 = vrot.lane.b32.xlu0 %v348, 56
    %v757 = vpop.permute.xlu0 %756
    %v759 = vsel %vm351, %v707, 0
    %v762 = vsel %vm112, %v757, 0
    %764 = vmatprep.subr.bf16.mxu0 0
    %765 = vmatpush1.bf16.msra.mxu0 0
    %766 = vmatprep.subr.bf16.mxu0 0
    %767 = vmatpush1.bf16.msra.mxu0 0
    %768 = vmatprep.subr.bf16.mxu0 0
    %769 = vmatpush1.bf16.msra.mxu0 0
    %770 = vmatprep.subr.bf16.mxu0 0
    %771 = vmatpush1.bf16.msra.mxu0 0
    %772 = vmatprep.subr.bf16.mxu0 0
    %773 = vmatpush1.bf16.msra.mxu0 0
    %774 = vmatprep.subr.bf16.mxu0 0
    %775 = vmatpush1.bf16.msra.mxu0 0
    %776 = vmatprep.subr.bf16.mxu0 0
    %777 = vmatpush1.bf16.msra.mxu0 0
    %778 = vmatprep.subr.bf16.mxu0 0
    %779 = vmatpush1.bf16.msra.mxu0 %v762
    %780 = vmatprep.subr.bf16.mxu0 0
    %781 = vmatpush2.bf16.msra.mxu0 0
    %782 = vmatprep.subr.bf16.mxu0 0
    %783 = vmatpush2.bf16.msra.mxu0 0
    %784 = vmatprep.subr.bf16.mxu0 0
    %785 = vmatpush2.bf16.msra.mxu0 0
    %786 = vmatprep.subr.bf16.mxu0 0
    %787 = vmatpush2.bf16.msra.mxu0 0
    %788 = vmatprep.subr.bf16.mxu0 0
    %789 = vmatpush2.bf16.msra.mxu0 0
    %790 = vmatprep.subr.bf16.mxu0 0
    %791 = vmatpush2.bf16.msra.mxu0 0
    %792 = vmatprep.subr.bf16.mxu0 0
    %793 = vmatpush2.bf16.msra.mxu0 0
    %794 = vmatprep.subr.bf16.mxu0 0
    %795 = vmatpush2.bf16.msra.mxu0 0
    %796 = vmatprep.mubr.bf16.mxu0 0
    %797 = vmatmul.mubr.bf16.gmra.mxu0 %v759
    %v798 = vpop.f32.mrf.mxu0
    %v799 = vadd.f32 0.0, %v798
    %v800 = vpop.f32.mrf.mxu0
    %v801 = vpop.f32.mrf.mxu0
    %v802 = vpop.f32.mrf.mxu0
    %803 = vdwg.mxu0
    %804 = vrot.lane.b32.xlu0 %v347, 112
    %v805 = vpop.permute.xlu0 %804
    %806 = vrot.lane.b32.xlu0 %v347, 80
    %v807 = vpop.permute.xlu0 %806
    %v809 = vsel %vm351, %v805, 0
    %v812 = vsel %vm351, %v807, 0
    %814 = vmatprep.subr.bf16.mxu0 0
    %815 = vmatpush1.bf16.xpose.msra.mxu0 0
    %816 = vmatprep.subr.bf16.mxu0 0
    %817 = vmatpush1.bf16.xpose.msra.mxu0 0
    %818 = vmatprep.subr.bf16.mxu0 0
    %819 = vmatpush1.bf16.xpose.msra.mxu0 0
    %820 = vmatprep.subr.bf16.mxu0 0
    %821 = vmatpush1.bf16.xpose.msra.mxu0 0
    %822 = vmatprep.subr.bf16.mxu0 0
    %823 = vmatpush1.bf16.xpose.msra.mxu0 0
    %824 = vmatprep.subr.bf16.mxu0 0
    %825 = vmatpush1.bf16.xpose.msra.mxu0 0
    %826 = vmatprep.subr.bf16.mxu0 0
    %827 = vmatpush1.bf16.xpose.msra.mxu0 0
    %828 = vmatprep.subr.bf16.mxu0 0
    %829 = vmatpush1.bf16.xpose.msra.mxu0 %v812
    %830 = vmatprep.subr.bf16.mxu0 0
    %831 = vmatpush2.bf16.xpose.msra.mxu0 0
    %832 = vmatprep.subr.bf16.mxu0 0
    %833 = vmatpush2.bf16.xpose.msra.mxu0 0
    %834 = vmatprep.subr.bf16.mxu0 0
    %835 = vmatpush2.bf16.xpose.msra.mxu0 0
    %836 = vmatprep.subr.bf16.mxu0 0
    %837 = vmatpush2.bf16.xpose.msra.mxu0 0
    %838 = vmatprep.subr.bf16.mxu0 0
    %839 = vmatpush2.bf16.xpose.msra.mxu0 0
    %840 = vmatprep.subr.bf16.mxu0 0
    %841 = vmatpush2.bf16.xpose.msra.mxu0 0
    %842 = vmatprep.subr.bf16.mxu0 0
    %843 = vmatpush2.bf16.xpose.msra.mxu0 0
    %844 = vmatprep.subr.bf16.mxu0 0
    %845 = vmatpush2.bf16.xpose.msra.mxu0 0
    %846 = vmatprep.mubr.bf16.mxu0 0
    %847 = vmatmul.mubr.bf16.gmra.mxu0 %v809
    %v848 = vpop.f32.mrf.mxu0
    %v849 = vadd.f32 0.0, %v848
    %v850 = vpop.f32.mrf.mxu0
    %v851 = vpop.f32.mrf.mxu0
    %v852 = vpop.f32.mrf.mxu0
    %853 = vdwg.mxu0
    %854 = vrot.lane.b32.xlu0 %v348, 112
    %v855 = vpop.permute.xlu0 %854
    %856 = vrot.lane.b32.xlu0 %v348, 80
    %v857 = vpop.permute.xlu0 %856
    %v859 = vsel %vm351, %v855, 0
    %v862 = vsel %vm351, %v857, 0
    %864 = vmatprep.subr.bf16.mxu0 0
    %865 = vmatpush1.bf16.xpose.msra.mxu0 0
    %866 = vmatprep.subr.bf16.mxu0 0
    %867 = vmatpush1.bf16.xpose.msra.mxu0 0
    %868 = vmatprep.subr.bf16.mxu0 0
    %869 = vmatpush1.bf16.xpose.msra.mxu0 0
    %870 = vmatprep.subr.bf16.mxu0 0
    %871 = vmatpush1.bf16.xpose.msra.mxu0 0
    %872 = vmatprep.subr.bf16.mxu0 0
    %873 = vmatpush1.bf16.xpose.msra.mxu0 0
    %874 = vmatprep.subr.bf16.mxu0 0
    %875 = vmatpush1.bf16.xpose.msra.mxu0 0
    %876 = vmatprep.subr.bf16.mxu0 0
    %877 = vmatpush1.bf16.xpose.msra.mxu0 0
    %878 = vmatprep.subr.bf16.mxu0 0
    %879 = vmatpush1.bf16.xpose.msra.mxu0 %v862
    %880 = vmatprep.subr.bf16.mxu0 0
    %881 = vmatpush2.bf16.xpose.msra.mxu0 0
    %882 = vmatprep.subr.bf16.mxu0 0
    %883 = vmatpush2.bf16.xpose.msra.mxu0 0
    %884 = vmatprep.subr.bf16.mxu0 0
    %885 = vmatpush2.bf16.xpose.msra.mxu0 0
    %886 = vmatprep.subr.bf16.mxu0 0
    %887 = vmatpush2.bf16.xpose.msra.mxu0 0
    %888 = vmatprep.subr.bf16.mxu0 0
    %889 = vmatpush2.bf16.xpose.msra.mxu0 0
    %890 = vmatprep.subr.bf16.mxu0 0
    %891 = vmatpush2.bf16.xpose.msra.mxu0 0
    %892 = vmatprep.subr.bf16.mxu0 0
    %893 = vmatpush2.bf16.xpose.msra.mxu0 0
    %894 = vmatprep.subr.bf16.mxu0 0
    %895 = vmatpush2.bf16.xpose.msra.mxu0 0
    %896 = vmatprep.mubr.bf16.mxu0 0
    %897 = vmatmul.mubr.bf16.gmra.mxu0 %v859
    %v898 = vpop.f32.mrf.mxu0
    %v899 = vadd.f32 0.0, %v898
    %v900 = vpop.f32.mrf.mxu0
    %v901 = vpop.f32.mrf.mxu0
    %v902 = vpop.f32.mrf.mxu0
    %903 = vdwg.mxu0
    %v904 = vmul.f32 %v849, 0.35355338
    %v905 = vmul.f32 %v899, 0.35355338
    %v906 = vadd.f32 %v904, %v451
    %v907 = vadd.f32 %v905, %v455
    %v908 = vsel %vm351, %v906, -inf
    %909 = vmax.xlane.f32.xlu0 %v908
    %v910 = vpop.xlane.xlu0 %909
    %v911 = vsel %vm351, %v907, -inf
    %912 = vmax.xlane.f32.xlu0 %v911
    %v913 = vpop.xlane.xlu0 %912
    %v914 = vsub.f32 %v906, %v910
    %v915 = vsub.f32 %v907, %v913
    %v916 = vmul.f32 %v914, 1.442695
    %v917 = vpow.pop %v916
    %v918 = vmul.f32 %v915, 1.442695
    %v919 = vpow.pop %v918
    %v920 = vsel %vm351, %v917, 0.0
    %921 = vadd.xlane.f32.xlu0 %v920
    %v922 = vpop.xlane.xlu0 %921
    %v923 = vsel %vm351, %v919, 0.0
    %924 = vadd.xlane.f32.xlu0 %v923
    %v925 = vpop.xlane.xlu0 %924
    %v926 = vrcp.pop %v922
    %v927 = vrcp.pop %v925
    %v928 = vmul.f32 %v917, %v926
    %v929 = vmul.f32 %v919, %v927
    %v930 = vpack.c.bf16 %v928, %v928
    %v931 = vpack.c.bf16 %v929, %v929
    %932 = vrot.lane.b32.xlu0 %v347, 48
    %v933 = vpop.permute.xlu0 %932
    %v935 = vsel %vm351, %v930, 0
    %v938 = vsel %vm112, %v933, 0
    %940 = vmatprep.subr.bf16.mxu0 0
    %941 = vmatpush1.bf16.msra.mxu0 0
    %942 = vmatprep.subr.bf16.mxu0 0
    %943 = vmatpush1.bf16.msra.mxu0 0
    %944 = vmatprep.subr.bf16.mxu0 0
    %945 = vmatpush1.bf16.msra.mxu0 0
    %946 = vmatprep.subr.bf16.mxu0 0
    %947 = vmatpush1.bf16.msra.mxu0 0
    %948 = vmatprep.subr.bf16.mxu0 0
    %949 = vmatpush1.bf16.msra.mxu0 0
    %950 = vmatprep.subr.bf16.mxu0 0
    %951 = vmatpush1.bf16.msra.mxu0 0
    %952 = vmatprep.subr.bf16.mxu0 0
    %953 = vmatpush1.bf16.msra.mxu0 0
    %954 = vmatprep.subr.bf16.mxu0 0
    %955 = vmatpush1.bf16.msra.mxu0 %v938
    %956 = vmatprep.subr.bf16.mxu0 0
    %957 = vmatpush2.bf16.msra.mxu0 0
    %958 = vmatprep.subr.bf16.mxu0 0
    %959 = vmatpush2.bf16.msra.mxu0 0
    %960 = vmatprep.subr.bf16.mxu0 0
    %961 = vmatpush2.bf16.msra.mxu0 0
    %962 = vmatprep.subr.bf16.mxu0 0
    %963 = vmatpush2.bf16.msra.mxu0 0
    %964 = vmatprep.subr.bf16.mxu0 0
    %965 = vmatpush2.bf16.msra.mxu0 0
    %966 = vmatprep.subr.bf16.mxu0 0
    %967 = vmatpush2.bf16.msra.mxu0 0
    %968 = vmatprep.subr.bf16.mxu0 0
    %969 = vmatpush2.bf16.msra.mxu0 0
    %970 = vmatprep.subr.bf16.mxu0 0
    %971 = vmatpush2.bf16.msra.mxu0 0
    %972 = vmatprep.mubr.bf16.mxu0 0
    %973 = vmatmul.mubr.bf16.gmra.mxu0 %v935
    %v974 = vpop.f32.mrf.mxu0
    %v975 = vadd.f32 0.0, %v974
    %v976 = vpop.f32.mrf.mxu0
    %v977 = vpop.f32.mrf.mxu0
    %v978 = vpop.f32.mrf.mxu0
    %979 = vdwg.mxu0
    %980 = vrot.lane.b32.xlu0 %v348, 48
    %v981 = vpop.permute.xlu0 %980
    %v983 = vsel %vm351, %v931, 0
    %v986 = vsel %vm112, %v981, 0
    %988 = vmatprep.subr.bf16.mxu0 0
    %989 = vmatpush1.bf16.msra.mxu0 0
    %990 = vmatprep.subr.bf16.mxu0 0
    %991 = vmatpush1.bf16.msra.mxu0 0
    %992 = vmatprep.subr.bf16.mxu0 0
    %993 = vmatpush1.bf16.msra.mxu0 0
    %994 = vmatprep.subr.bf16.mxu0 0
    %995 = vmatpush1.bf16.msra.mxu0 0
    %996 = vmatprep.subr.bf16.mxu0 0
    %997 = vmatpush1.bf16.msra.mxu0 0
    %998 = vmatprep.subr.bf16.mxu0 0
    %999 = vmatpush1.bf16.msra.mxu0 0
    %1000 = vmatprep.subr.bf16.mxu0 0
    %1001 = vmatpush1.bf16.msra.mxu0 0
    %1002 = vmatprep.subr.bf16.mxu0 0
    %1003 = vmatpush1.bf16.msra.mxu0 %v986
    %1004 = vmatprep.subr.bf16.mxu0 0
    %1005 = vmatpush2.bf16.msra.mxu0 0
    %1006 = vmatprep.subr.bf16.mxu0 0
    %1007 = vmatpush2.bf16.msra.mxu0 0
    %1008 = vmatprep.subr.bf16.mxu0 0
    %1009 = vmatpush2.bf16.msra.mxu0 0
    %1010 = vmatprep.subr.bf16.mxu0 0
    %1011 = vmatpush2.bf16.msra.mxu0 0
    %1012 = vmatprep.subr.bf16.mxu0 0
    %1013 = vmatpush2.bf16.msra.mxu0 0
    %1014 = vmatprep.subr.bf16.mxu0 0
    %1015 = vmatpush2.bf16.msra.mxu0 0
    %1016 = vmatprep.subr.bf16.mxu0 0
    %1017 = vmatpush2.bf16.msra.mxu0 0
    %1018 = vmatprep.subr.bf16.mxu0 0
    %1019 = vmatpush2.bf16.msra.mxu0 0
    %1020 = vmatprep.mubr.bf16.mxu0 0
    %1021 = vmatmul.mubr.bf16.gmra.mxu0 %v983
    %v1022 = vpop.f32.mrf.mxu0
    %v1023 = vadd.f32 0.0, %v1022
    %v1024 = vpop.f32.mrf.mxu0
    %v1025 = vpop.f32.mrf.mxu0
    %v1026 = vpop.f32.mrf.mxu0
    %1027 = vdwg.mxu0
    %1028 = vrot.lane.b32.xlu0 %v347, 104
    %v1029 = vpop.permute.xlu0 %1028
    %1030 = vrot.lane.b32.xlu0 %v347, 72
    %v1031 = vpop.permute.xlu0 %1030
    %v1033 = vsel %vm351, %v1029, 0
    %v1036 = vsel %vm351, %v1031, 0
    %1038 = vmatprep.subr.bf16.mxu0 0
    %1039 = vmatpush1.bf16.xpose.msra.mxu0 0
    %1040 = vmatprep.subr.bf16.mxu0 0
    %1041 = vmatpush1.bf16.xpose.msra.mxu0 0
    %1042 = vmatprep.subr.bf16.mxu0 0
    %1043 = vmatpush1.bf16.xpose.msra.mxu0 0
    %1044 = vmatprep.subr.bf16.mxu0 0
    %1045 = vmatpush1.bf16.xpose.msra.mxu0 0
    %1046 = vmatprep.subr.bf16.mxu0 0
    %1047 = vmatpush1.bf16.xpose.msra.mxu0 0
    %1048 = vmatprep.subr.bf16.mxu0 0
    %1049 = vmatpush1.bf16.xpose.msra.mxu0 0
    %1050 = vmatprep.subr.bf16.mxu0 0
    %1051 = vmatpush1.bf16.xpose.msra.mxu0 0
    %1052 = vmatprep.subr.bf16.mxu0 0
    %1053 = vmatpush1.bf16.xpose.msra.mxu0 %v1036
    %1054 = vmatprep.subr.bf16.mxu0 0
    %1055 = vmatpush2.bf16.xpose.msra.mxu0 0
    %1056 = vmatprep.subr.bf16.mxu0 0
    %1057 = vmatpush2.bf16.xpose.msra.mxu0 0
    %1058 = vmatprep.subr.bf16.mxu0 0
    %1059 = vmatpush2.bf16.xpose.msra.mxu0 0
    %1060 = vmatprep.subr.bf16.mxu0 0
    %1061 = vmatpush2.bf16.xpose.msra.mxu0 0
    %1062 = vmatprep.subr.bf16.mxu0 0
    %1063 = vmatpush2.bf16.xpose.msra.mxu0 0
    %1064 = vmatprep.subr.bf16.mxu0 0
    %1065 = vmatpush2.bf16.xpose.msra.mxu0 0
    %1066 = vmatprep.subr.bf16.mxu0 0
    %1067 = vmatpush2.bf16.xpose.msra.mxu0 0
    %1068 = vmatprep.subr.bf16.mxu0 0
    %1069 = vmatpush2.bf16.xpose.msra.mxu0 0
    %1070 = vmatprep.mubr.bf16.mxu0 0
    %1071 = vmatmul.mubr.bf16.gmra.mxu0 %v1033
    %v1072 = vpop.f32.mrf.mxu0
    %v1073 = vadd.f32 0.0, %v1072
    %v1074 = vpop.f32.mrf.mxu0
    %v1075 = vpop.f32.mrf.mxu0
    %v1076 = vpop.f32.mrf.mxu0
    %1077 = vdwg.mxu0
    %1078 = vrot.lane.b32.xlu0 %v348, 104
    %v1079 = vpop.permute.xlu0 %1078
    %1080 = vrot.lane.b32.xlu0 %v348, 72
    %v1081 = vpop.permute.xlu0 %1080
    %v1083 = vsel %vm351, %v1079, 0
    %v1086 = vsel %vm351, %v1081, 0
    %1088 = vmatprep.subr.bf16.mxu0 0
    %1089 = vmatpush1.bf16.xpose.msra.mxu0 0
    %1090 = vmatprep.subr.bf16.mxu0 0
    %1091 = vmatpush1.bf16.xpose.msra.mxu0 0
    %1092 = vmatprep.subr.bf16.mxu0 0
    %1093 = vmatpush1.bf16.xpose.msra.mxu0 0
    %1094 = vmatprep.subr.bf16.mxu0 0
    %1095 = vmatpush1.bf16.xpose.msra.mxu0 0
    %1096 = vmatprep.subr.bf16.mxu0 0
    %1097 = vmatpush1.bf16.xpose.msra.mxu0 0
    %1098 = vmatprep.subr.bf16.mxu0 0
    %1099 = vmatpush1.bf16.xpose.msra.mxu0 0
    %1100 = vmatprep.subr.bf16.mxu0 0
    %1101 = vmatpush1.bf16.xpose.msra.mxu0 0
    %1102 = vmatprep.subr.bf16.mxu0 0
    %1103 = vmatpush1.bf16.xpose.msra.mxu0 %v1086
    %1104 = vmatprep.subr.bf16.mxu0 0
    %1105 = vmatpush2.bf16.xpose.msra.mxu0 0
    %1106 = vmatprep.subr.bf16.mxu0 0
    %1107 = vmatpush2.bf16.xpose.msra.mxu0 0
    %1108 = vmatprep.subr.bf16.mxu0 0
    %1109 = vmatpush2.bf16.xpose.msra.mxu0 0
    %1110 = vmatprep.subr.bf16.mxu0 0
    %1111 = vmatpush2.bf16.xpose.msra.mxu0 0
    %1112 = vmatprep.subr.bf16.mxu0 0
    %1113 = vmatpush2.bf16.xpose.msra.mxu0 0
    %1114 = vmatprep.subr.bf16.mxu0 0
    %1115 = vmatpush2.bf16.xpose.msra.mxu0 0
    %1116 = vmatprep.subr.bf16.mxu0 0
    %1117 = vmatpush2.bf16.xpose.msra.mxu0 0
    %1118 = vmatprep.subr.bf16.mxu0 0
    %1119 = vmatpush2.bf16.xpose.msra.mxu0 0
    %1120 = vmatprep.mubr.bf16.mxu0 0
    %1121 = vmatmul.mubr.bf16.gmra.mxu0 %v1083
    %v1122 = vpop.f32.mrf.mxu0
    %v1123 = vadd.f32 0.0, %v1122
    %v1124 = vpop.f32.mrf.mxu0
    %v1125 = vpop.f32.mrf.mxu0
    %v1126 = vpop.f32.mrf.mxu0
    %1127 = vdwg.mxu0
    %v1128 = vmul.f32 %v1073, 0.35355338
    %v1129 = vmul.f32 %v1123, 0.35355338
    %v1130 = vadd.f32 %v1128, %v451
    %v1131 = vadd.f32 %v1129, %v455
    %v1132 = vsel %vm351, %v1130, -inf
    %1133 = vmax.xlane.f32.xlu0 %v1132
    %v1134 = vpop.xlane.xlu0 %1133
    %v1135 = vsel %vm351, %v1131, -inf
    %1136 = vmax.xlane.f32.xlu0 %v1135
    %v1137 = vpop.xlane.xlu0 %1136
    %v1138 = vsub.f32 %v1130, %v1134
    %v1139 = vsub.f32 %v1131, %v1137
    %v1140 = vmul.f32 %v1138, 1.442695
    %v1141 = vpow.pop %v1140
    %v1142 = vmul.f32 %v1139, 1.442695
    %v1143 = vpow.pop %v1142
    %v1144 = vsel %vm351, %v1141, 0.0
    %1145 = vadd.xlane.f32.xlu0 %v1144
    %v1146 = vpop.xlane.xlu0 %1145
    %v1147 = vsel %vm351, %v1143, 0.0
    %1148 = vadd.xlane.f32.xlu0 %v1147
    %v1149 = vpop.xlane.xlu0 %1148
    %v1150 = vrcp.pop %v1146
    %v1151 = vrcp.pop %v1149
    %v1152 = vmul.f32 %v1141, %v1150
    %v1153 = vmul.f32 %v1143, %v1151
    %v1154 = vpack.c.bf16 %v1152, %v1152
    %v1155 = vpack.c.bf16 %v1153, %v1153
    %1156 = vrot.lane.b32.xlu0 %v347, 40
    %v1157 = vpop.permute.xlu0 %1156
    %v1159 = vsel %vm351, %v1154, 0
    %v1162 = vsel %vm112, %v1157, 0
    %1164 = vmatprep.subr.bf16.mxu0 0
    %1165 = vmatpush1.bf16.msra.mxu0 0
    %1166 = vmatprep.subr.bf16.mxu0 0
    %1167 = vmatpush1.bf16.msra.mxu0 0
    %1168 = vmatprep.subr.bf16.mxu0 0
    %1169 = vmatpush1.bf16.msra.mxu0 0
    %1170 = vmatprep.subr.bf16.mxu0 0
    %1171 = vmatpush1.bf16.msra.mxu0 0
    %1172 = vmatprep.subr.bf16.mxu0 0
    %1173 = vmatpush1.bf16.msra.mxu0 0
    %1174 = vmatprep.subr.bf16.mxu0 0
    %1175 = vmatpush1.bf16.msra.mxu0 0
    %1176 = vmatprep.subr.bf16.mxu0 0
    %1177 = vmatpush1.bf16.msra.mxu0 0
    %1178 = vmatprep.subr.bf16.mxu0 0
    %1179 = vmatpush1.bf16.msra.mxu0 %v1162
    %1180 = vmatprep.subr.bf16.mxu0 0
    %1181 = vmatpush2.bf16.msra.mxu0 0
    %1182 = vmatprep.subr.bf16.mxu0 0
    %1183 = vmatpush2.bf16.msra.mxu0 0
    %1184 = vmatprep.subr.bf16.mxu0 0
    %1185 = vmatpush2.bf16.msra.mxu0 0
    %1186 = vmatprep.subr.bf16.mxu0 0
    %1187 = vmatpush2.bf16.msra.mxu0 0
    %1188 = vmatprep.subr.bf16.mxu0 0
    %1189 = vmatpush2.bf16.msra.mxu0 0
    %1190 = vmatprep.subr.bf16.mxu0 0
    %1191 = vmatpush2.bf16.msra.mxu0 0
    %1192 = vmatprep.subr.bf16.mxu0 0
    %1193 = vmatpush2.bf16.msra.mxu0 0
    %1194 = vmatprep.subr.bf16.mxu0 0
    %1195 = vmatpush2.bf16.msra.mxu0 0
    %1196 = vmatprep.mubr.bf16.mxu0 0
    %1197 = vmatmul.mubr.bf16.gmra.mxu0 %v1159
    %v1198 = vpop.f32.mrf.mxu0
    %v1199 = vadd.f32 0.0, %v1198
    %v1200 = vpop.f32.mrf.mxu0
    %v1201 = vpop.f32.mrf.mxu0
    %v1202 = vpop.f32.mrf.mxu0
    %1203 = vdwg.mxu0
    %1204 = vrot.lane.b32.xlu0 %v348, 40
    %v1205 = vpop.permute.xlu0 %1204
    %v1207 = vsel %vm351, %v1155, 0
    %v1210 = vsel %vm112, %v1205, 0
    %1212 = vmatprep.subr.bf16.mxu0 0
    %1213 = vmatpush1.bf16.msra.mxu0 0
    %1214 = vmatprep.subr.bf16.mxu0 0
    %1215 = vmatpush1.bf16.msra.mxu0 0
    %1216 = vmatprep.subr.bf16.mxu0 0
    %1217 = vmatpush1.bf16.msra.mxu0 0
    %1218 = vmatprep.subr.bf16.mxu0 0
    %1219 = vmatpush1.bf16.msra.mxu0 0
    %1220 = vmatprep.subr.bf16.mxu0 0
    %1221 = vmatpush1.bf16.msra.mxu0 0
    %1222 = vmatprep.subr.bf16.mxu0 0
    %1223 = vmatpush1.bf16.msra.mxu0 0
    %1224 = vmatprep.subr.bf16.mxu0 0
    %1225 = vmatpush1.bf16.msra.mxu0 0
    %1226 = vmatprep.subr.bf16.mxu0 0
    %1227 = vmatpush1.bf16.msra.mxu0 %v1210
    %1228 = vmatprep.subr.bf16.mxu0 0
    %1229 = vmatpush2.bf16.msra.mxu0 0
    %1230 = vmatprep.subr.bf16.mxu0 0
    %1231 = vmatpush2.bf16.msra.mxu0 0
    %1232 = vmatprep.subr.bf16.mxu0 0
    %1233 = vmatpush2.bf16.msra.mxu0 0
    %1234 = vmatprep.subr.bf16.mxu0 0
    %1235 = vmatpush2.bf16.msra.mxu0 0
    %1236 = vmatprep.subr.bf16.mxu0 0
    %1237 = vmatpush2.bf16.msra.mxu0 0
    %1238 = vmatprep.subr.bf16.mxu0 0
    %1239 = vmatpush2.bf16.msra.mxu0 0
    %1240 = vmatprep.subr.bf16.mxu0 0
    %1241 = vmatpush2.bf16.msra.mxu0 0
    %1242 = vmatprep.subr.bf16.mxu0 0
    %1243 = vmatpush2.bf16.msra.mxu0 0
    %1244 = vmatprep.mubr.bf16.mxu0 0
    %1245 = vmatmul.mubr.bf16.gmra.mxu0 %v1207
    %v1246 = vpop.f32.mrf.mxu0
    %v1247 = vadd.f32 0.0, %v1246
    %v1248 = vpop.f32.mrf.mxu0
    %v1249 = vpop.f32.mrf.mxu0
    %v1250 = vpop.f32.mrf.mxu0
    %1251 = vdwg.mxu0
    %1254 = vrot.lane.b32.xlu0 %v751, 8
    %v1255 = vpop.permute.xlu0 %1254
    %1256 = vrot.lane.b32.xlu0 %v799, 8
    %v1257 = vpop.permute.xlu0 %1256
    %1262 = vrot.lane.b32.xlu0 %v975, 16
    %v1263 = vpop.permute.xlu0 %1262
    %1264 = vrot.lane.b32.xlu0 %v1023, 16
    %v1265 = vpop.permute.xlu0 %1264
    %1270 = vrot.lane.b32.xlu0 %v1199, 24
    %v1271 = vpop.permute.xlu0 %1270
    %1272 = vrot.lane.b32.xlu0 %v1247, 24
    %v1273 = vpop.permute.xlu0 %1272
    %v1276 = vsel %vm351, %v527, %v1255
    %v1277 = vsel %vm351, %v575, %v1257
    %vm1278 = vcmask 130048
    %v1279 = vsel %vm1278, %v1276, %v1263
    %v1280 = vsel %vm1278, %v1277, %v1265
    %vm1281 = vcmask 195584
    %v1282 = vsel %vm1281, %v1279, %v1271
    %v1283 = vsel %vm1281, %v1280, %v1273
    %v1284 = vld [vmem:[%s9] sm:$0xf]
    %v1285 = vld [vmem:[%s9 + $0x4] sm:$0xf]
    %v1286 = vld [vmem:[%s9 + $0x8] sm:$0xf]
    %v1287 = vld [vmem:[%s9 + $0xc] sm:$0xf]
    %v1288 = vpack.c.bf16 %v1283, %v1282
    %v1289 = vld [vmem:[%s10] sm:$0x1]
    %v1291 = vlaneseq
    %v1292 = vshrl.u32 %v1291, 7
    %v1293 = vsub.s32 0, %v1292
    %v1294 = vrot.slane %v1289, %v1293
    %v1300 = vunpack.c.l.b16 %v1284
    %v1301 = vunpack.c.l.b16 %v1285
    %v1302 = vunpack.c.l.b16 %v1286
    %v1303 = vunpack.c.l.b16 %v1287
    %v1304 = vpack.c.b16 %v1301, %v1300
    %v1305 = vpack.c.b16 %v1303, %v1302
    %v1309 = vsel %vm205, %v1288, 0
    %1311 = vmatprep.subr.bf16.mxu0 0
    %1312 = vmatpush1.bf16.msra.mxu0 0
    %1313 = vmatprep.subr.bf16.mxu0 0
    %1314 = vmatpush1.bf16.msra.mxu0 0
    %1315 = vmatprep.subr.bf16.mxu0 0
    %1316 = vmatpush1.bf16.msra.mxu0 0
    %1317 = vmatprep.subr.bf16.mxu0 0
    %1318 = vmatpush1.bf16.msra.mxu0 0
    %1319 = vmatprep.subr.bf16.mxu0 0
    %1320 = vmatpush1.bf16.msra.mxu0 0
    %1321 = vmatprep.subr.bf16.mxu0 0
    %1322 = vmatpush1.bf16.msra.mxu0 0
    %1323 = vmatprep.subr.bf16.mxu0 0
    %1324 = vmatpush1.bf16.msra.mxu0 %v1305
    %1325 = vmatprep.subr.bf16.mxu0 0
    %1326 = vmatpush1.bf16.msra.mxu0 %v1304
    %1327 = vmatprep.subr.bf16.mxu0 0
    %1328 = vmatpush2.bf16.msra.mxu0 0
    %1329 = vmatprep.subr.bf16.mxu0 0
    %1330 = vmatpush2.bf16.msra.mxu0 0
    %1331 = vmatprep.subr.bf16.mxu0 0
    %1332 = vmatpush2.bf16.msra.mxu0 0
    %1333 = vmatprep.subr.bf16.mxu0 0
    %1334 = vmatpush2.bf16.msra.mxu0 0
    %1335 = vmatprep.subr.bf16.mxu0 0
    %1336 = vmatpush2.bf16.msra.mxu0 0
    %1337 = vmatprep.subr.bf16.mxu0 0
    %1338 = vmatpush2.bf16.msra.mxu0 0
    %1339 = vmatprep.subr.bf16.mxu0 0
    %1340 = vmatpush2.bf16.msra.mxu0 0
    %1341 = vmatprep.subr.bf16.mxu0 0
    %1342 = vmatpush2.bf16.msra.mxu0 0
    %1343 = vmatprep.mubr.bf16.mxu0 0
    %1344 = vmatmul.mubr.bf16.gmra.mxu0 %v1309
    %v1345 = vpop.f32.mrf.mxu0
    %v1346 = vadd.f32 %v1294, %v1345
    %v1347 = vpop.f32.mrf.mxu0
    %v1348 = vpop.f32.mrf.mxu0
    %v1349 = vadd.f32 %v1294, %v1348
    %v1350 = vpop.f32.mrf.mxu0
    %1351 = vdwg.mxu0
    %v1352 = vadd.f32 %v1346, %v247
    %v1353 = vadd.f32 %v1349, %v248
    %v1354 = vld [vmem:[%s11] sm:$0x1]
    %v1355 = vld [vmem:[%s12] sm:$0x1]
    %v1356 = vsel %vm205, %v1352, 0.0
    %1357 = vadd.xlane.f32.xlu0 %v1356
    %v1358 = vpop.xlane.xlu0 %1357
    %v1359 = vsel %vm205, %v1353, 0.0
    %1360 = vadd.xlane.f32.xlu0 %v1359
    %v1361 = vpop.xlane.xlu0 %1360
    %v1362 = vmul.f32 %v1358, %v212
    %v1363 = vmul.f32 %v1361, %v212
    %v1364 = vsub.f32 %v1352, %v1362
    %v1365 = vsub.f32 %v1353, %v1363
    %v1366 = vmul.f32 %v1364, %v1364
    %v1367 = vmul.f32 %v1365, %v1365
    %v1368 = vsel %vm205, %v1366, 0.0
    %1369 = vadd.xlane.f32.xlu0 %v1368
    %v1370 = vpop.xlane.xlu0 %1369
    %v1371 = vsel %vm205, %v1367, 0.0
    %1372 = vadd.xlane.f32.xlu0 %v1371
    %v1373 = vpop.xlane.xlu0 %1372
    %v1374 = vmul.f32 %v1370, %v212
    %v1375 = vmul.f32 %v1373, %v212
    %v1376 = vadd.f32 %v1374, 1e-12
    %v1377 = vadd.f32 %v1375, 1e-12
    %v1378 = vrsqrt.pop %v1376
    %v1379 = vrsqrt.pop %v1377
    %v1380 = vmul.f32 %v1364, %v1378
    %v1381 = vmul.f32 %v1365, %v1379
    %v1383 = vlaneseq
    %v1384 = vshrl.u32 %v1383, 7
    %v1385 = vsub.s32 0, %v1384
    %v1386 = vrot.slane %v1354, %v1385
    %v1388 = vmul.f32 %v1380, %v1386
    %v1389 = vmul.f32 %v1381, %v1386
    %v1391 = vlaneseq
    %v1392 = vshrl.u32 %v1391, 7
    %v1393 = vsub.s32 0, %v1392
    %v1394 = vrot.slane %v1355, %v1393
    %v1396 = vadd.f32 %v1388, %v1394
    %v1397 = vadd.f32 %v1389, %v1394
    %v1398 = vld [vmem:[%s13] sm:$0xf]
    %v1399 = vld [vmem:[%s13 + $0x4] sm:$0xf]
    %v1400 = vld [vmem:[%s13 + $0x8] sm:$0xf]
    %v1401 = vld [vmem:[%s13 + $0xc] sm:$0xf]
    %v1402 = vpack.c.bf16 %v1397, %v1396
    %v1403 = vld [vmem:[%s14] sm:$0x1]
    %v1405 = vlaneseq
    %v1406 = vshrl.u32 %v1405, 7
    %v1407 = vsub.s32 0, %v1406
    %v1408 = vrot.slane %v1403, %v1407
    %v1414 = vunpack.c.l.b16 %v1398
    %v1415 = vunpack.c.l.b16 %v1399
    %v1416 = vunpack.c.l.b16 %v1400
    %v1417 = vunpack.c.l.b16 %v1401
    %v1418 = vpack.c.b16 %v1415, %v1414
    %v1419 = vpack.c.b16 %v1417, %v1416
    %v1423 = vsel %vm205, %v1402, 0
    %1425 = vmatprep.subr.bf16.mxu0 0
    %1426 = vmatpush1.bf16.msra.mxu0 0
    %1427 = vmatprep.subr.bf16.mxu0 0
    %1428 = vmatpush1.bf16.msra.mxu0 0
    %1429 = vmatprep.subr.bf16.mxu0 0
    %1430 = vmatpush1.bf16.msra.mxu0 0
    %1431 = vmatprep.subr.bf16.mxu0 0
    %1432 = vmatpush1.bf16.msra.mxu0 0
    %1433 = vmatprep.subr.bf16.mxu0 0
    %1434 = vmatpush1.bf16.msra.mxu0 0
    %1435 = vmatprep.subr.bf16.mxu0 0
    %1436 = vmatpush1.bf16.msra.mxu0 0
    %1437 = vmatprep.subr.bf16.mxu0 0
    %1438 = vmatpush1.bf16.msra.mxu0 %v1419
    %1439 = vmatprep.subr.bf16.mxu0 0
    %1440 = vmatpush1.bf16.msra.mxu0 %v1418
    %1441 = vmatprep.subr.bf16.mxu0 0
    %1442 = vmatpush2.bf16.msra.mxu0 0
    %1443 = vmatprep.subr.bf16.mxu0 0
    %1444 = vmatpush2.bf16.msra.mxu0 0
    %1445 = vmatprep.subr.bf16.mxu0 0
    %1446 = vmatpush2.bf16.msra.mxu0 0
    %1447 = vmatprep.subr.bf16.mxu0 0
    %1448 = vmatpush2.bf16.msra.mxu0 0
    %1449 = vmatprep.subr.bf16.mxu0 0
    %1450 = vmatpush2.bf16.msra.mxu0 0
    %1451 = vmatprep.subr.bf16.mxu0 0
    %1452 = vmatpush2.bf16.msra.mxu0 0
    %1453 = vmatprep.subr.bf16.mxu0 0
    %1454 = vmatpush2.bf16.msra.mxu0 0
    %1455 = vmatprep.subr.bf16.mxu0 0
    %1456 = vmatpush2.bf16.msra.mxu0 0
    %1457 = vmatprep.mubr.bf16.mxu0 0
    %1458 = vmatmul.mubr.bf16.gmra.mxu0 %v1423
    %v1459 = vpop.f32.mrf.mxu0
    %v1460 = vadd.f32 %v1408, %v1459
    %v1461 = vpop.f32.mrf.mxu0
    %v1462 = vpop.f32.mrf.mxu0
    %v1463 = vadd.f32 %v1408, %v1462
    %v1464 = vpop.f32.mrf.mxu0
    %1465 = vdwg.mxu0
    %v1466 = vmul.f32 %v1460, 0.5
    %v1467 = vmul.f32 %v1463, 0.5
    %v1468 = vmul.f32 %v1460, 0.70710677
    %v1469 = vmul.f32 %v1463, 0.70710677
    %v1470 = verf.f32.pop %v1468
    %v1471 = verf.f32.pop %v1469
    %v1472 = vadd.f32 %v1470, 1.0
    %v1473 = vadd.f32 %v1471, 1.0
    %v1474 = vmul.f32 %v1466, %v1472
    %v1475 = vmul.f32 %v1467, %v1473
    %v1476 = vld [vmem:[%s15] sm:$0xf]
    %v1477 = vld [vmem:[%s15 + $0x4] sm:$0xf]
    %v1478 = vld [vmem:[%s15 + $0x8] sm:$0xf]
    %v1479 = vld [vmem:[%s15 + $0xc] sm:$0xf]
    %v1480 = vld [vmem:[%s15 + $0x10] sm:$0xf]
    %v1481 = vld [vmem:[%s15 + $0x14] sm:$0xf]
    %v1482 = vld [vmem:[%s15 + $0x18] sm:$0xf]
    %v1483 = vld [vmem:[%s15 + $0x1c] sm:$0xf]
    %v1484 = vpack.c.bf16 %v1475, %v1474
    %v1485 = vld [vmem:[%s16] sm:$0x1]
    %v1487 = vlaneseq
    %v1488 = vshrl.u32 %v1487, 7
    %v1489 = vsub.s32 0, %v1488
    %v1490 = vrot.slane %v1485, %v1489
    %v1500 = vunpack.c.l.b16 %v1476
    %v1501 = vunpack.c.l.b16 %v1477
    %v1502 = vunpack.c.l.b16 %v1478
    %v1503 = vunpack.c.l.b16 %v1479
    %v1504 = vunpack.c.l.b16 %v1480
    %v1505 = vunpack.c.l.b16 %v1481
    %v1506 = vunpack.c.l.b16 %v1482
    %v1507 = vunpack.c.l.b16 %v1483
    %v1508 = vpack.c.b16 %v1501, %v1500
    %v1509 = vpack.c.b16 %v1503, %v1502
    %v1510 = vpack.c.b16 %v1505, %v1504
    %v1511 = vpack.c.b16 %v1507, %v1506
    %vm1516 = vcmask 523264
    %v1518 = vsel %vm1516, %v1484, 0
    %1520 = vmatprep.subr.bf16.mxu0 0
    %1521 = vmatpush1.bf16.msra.mxu0 0
    %1522 = vmatprep.subr.bf16.mxu0 0
    %1523 = vmatpush1.bf16.msra.mxu0 0
    %1524 = vmatprep.subr.bf16.mxu0 0
    %1525 = vmatpush1.bf16.msra.mxu0 0
    %1526 = vmatprep.subr.bf16.mxu0 0
    %1527 = vmatpush1.bf16.msra.mxu0 0
    %1528 = vmatprep.subr.bf16.mxu0 0
    %1529 = vmatpush1.bf16.msra.mxu0 %v1511
    %1530 = vmatprep.subr.bf16.mxu0 0
    %1531 = vmatpush1.bf16.msra.mxu0 %v1510
    %1532 = vmatprep.subr.bf16.mxu0 0
    %1533 = vmatpush1.bf16.msra.mxu0 %v1509
    %1534 = vmatprep.subr.bf16.mxu0 0
    %1535 = vmatpush1.bf16.msra.mxu0 %v1508
    %1536 = vmatprep.subr.bf16.mxu0 0
    %1537 = vmatpush2.bf16.msra.mxu0 0
    %1538 = vmatprep.subr.bf16.mxu0 0
    %1539 = vmatpush2.bf16.msra.mxu0 0
    %1540 = vmatprep.subr.bf16.mxu0 0
    %1541 = vmatpush2.bf16.msra.mxu0 0
    %1542 = vmatprep.subr.bf16.mxu0 0
    %1543 = vmatpush2.bf16.msra.mxu0 0
    %1544 = vmatprep.subr.bf16.mxu0 0
    %1545 = vmatpush2.bf16.msra.mxu0 0
    %1546 = vmatprep.subr.bf16.mxu0 0
    %1547 = vmatpush2.bf16.msra.mxu0 0
    %1548 = vmatprep.subr.bf16.mxu0 0
    %1549 = vmatpush2.bf16.msra.mxu0 0
    %1550 = vmatprep.subr.bf16.mxu0 0
    %1551 = vmatpush2.bf16.msra.mxu0 0
    %1552 = vmatprep.mubr.bf16.mxu0 0
    %1553 = vmatmul.mubr.bf16.gmra.mxu0 %v1518
    %v1554 = vpop.f32.mrf.mxu0
    %v1555 = vadd.f32 %v1490, %v1554
    %v1556 = vpop.f32.mrf.mxu0
    %v1557 = vpop.f32.mrf.mxu0
    %v1558 = vadd.f32 %v1490, %v1557
    %v1559 = vpop.f32.mrf.mxu0
    %1560 = vdwg.mxu0
    %v1561 = vadd.f32 %v1555, %v1396
    %v1562 = vadd.f32 %v1558, %v1397
    %v1563 = vld [vmem:[%s17] sm:$0x1]
    %v1564 = vld [vmem:[%s18] sm:$0x1]
    %v1565 = vsel %vm205, %v1561, 0.0
    %1566 = vadd.xlane.f32.xlu0 %v1565
    %v1567 = vpop.xlane.xlu0 %1566
    %v1568 = vsel %vm205, %v1562, 0.0
    %1569 = vadd.xlane.f32.xlu0 %v1568
    %v1570 = vpop.xlane.xlu0 %1569
    %v1571 = vmul.f32 %v1567, %v212
    %v1572 = vmul.f32 %v1570, %v212
    %v1573 = vsub.f32 %v1561, %v1571
    %v1574 = vsub.f32 %v1562, %v1572
    %v1575 = vmul.f32 %v1573, %v1573
    %v1576 = vmul.f32 %v1574, %v1574
    %v1577 = vsel %vm205, %v1575, 0.0
    %1578 = vadd.xlane.f32.xlu0 %v1577
    %v1579 = vpop.xlane.xlu0 %1578
    %v1580 = vsel %vm205, %v1576, 0.0
    %1581 = vadd.xlane.f32.xlu0 %v1580
    %v1582 = vpop.xlane.xlu0 %1581
    %v1583 = vmul.f32 %v1579, %v212
    %v1584 = vmul.f32 %v1582, %v212
    %v1585 = vadd.f32 %v1583, 1e-12
    %v1586 = vadd.f32 %v1584, 1e-12
    %v1587 = vrsqrt.pop %v1585
    %v1588 = vrsqrt.pop %v1586
    %v1589 = vmul.f32 %v1573, %v1587
    %v1590 = vmul.f32 %v1574, %v1588
    %v1592 = vlaneseq
    %v1593 = vshrl.u32 %v1592, 7
    %v1594 = vsub.s32 0, %v1593
    %v1595 = vrot.slane %v1563, %v1594
    %v1597 = vmul.f32 %v1589, %v1595
    %v1598 = vmul.f32 %v1590, %v1595
    %v1600 = vlaneseq
    %v1601 = vshrl.u32 %v1600, 7
    %v1602 = vsub.s32 0, %v1601
    %v1603 = vrot.slane %v1564, %v1602
    %v1605 = vadd.f32 %v1597, %v1603
    %v1606 = vadd.f32 %v1598, %v1603
    %s1607 = scalar_lea.vmem %s7, 16
    %v1608 = vld [vmem:[%s1607] sm:$0xf]
    %v1609 = vld [vmem:[%s1607 + $0x4] sm:$0xf]
    %v1610 = vld [vmem:[%s1607 + $0x8] sm:$0xf]
    %v1611 = vld [vmem:[%s1607 + $0xc] sm:$0xf]
    %v1612 = vpack.c.bf16 %v1606, %v1605
    %s1613 = scalar_lea.vmem %s8, 1
    %v1614 = vld [vmem:[%s1613] sm:$0x1]
    %v1616 = vlaneseq
    %v1617 = vshrl.u32 %v1616, 7
    %v1618 = vsub.s32 0, %v1617
    %v1619 = vrot.slane %v1614, %v1618
    %v1625 = vunpack.c.l.b16 %v1608
    %v1626 = vunpack.c.l.b16 %v1609
    %v1627 = vunpack.c.l.b16 %v1610
    %v1628 = vunpack.c.l.b16 %v1611
    %v1629 = vpack.c.b16 %v1626, %v1625
    %v1630 = vpack.c.b16 %v1628, %v1627
    %v1634 = vsel %vm205, %v1612, 0
    %1636 = vmatprep.subr.bf16.mxu0 0
    %1637 = vmatpush1.bf16.msra.mxu0 0
    %1638 = vmatprep.subr.bf16.mxu0 0
    %1639 = vmatpush1.bf16.msra.mxu0 0
    %1640 = vmatprep.subr.bf16.mxu0 0
    %1641 = vmatpush1.bf16.msra.mxu0 0
    %1642 = vmatprep.subr.bf16.mxu0 0
    %1643 = vmatpush1.bf16.msra.mxu0 0
    %1644 = vmatprep.subr.bf16.mxu0 0
    %1645 = vmatpush1.bf16.msra.mxu0 0
    %1646 = vmatprep.subr.bf16.mxu0 0
    %1647 = vmatpush1.bf16.msra.mxu0 0
    %1648 = vmatprep.subr.bf16.mxu0 0
    %1649 = vmatpush1.bf16.msra.mxu0 %v1630
    %1650 = vmatprep.subr.bf16.mxu0 0
    %1651 = vmatpush1.bf16.msra.mxu0 %v1629
    %1652 = vmatprep.subr.bf16.mxu0 0
    %1653 = vmatpush2.bf16.msra.mxu0 0
    %1654 = vmatprep.subr.bf16.mxu0 0
    %1655 = vmatpush2.bf16.msra.mxu0 0
    %1656 = vmatprep.subr.bf16.mxu0 0
    %1657 = vmatpush2.bf16.msra.mxu0 0
    %1658 = vmatprep.subr.bf16.mxu0 0
    %1659 = vmatpush2.bf16.msra.mxu0 0
    %1660 = vmatprep.subr.bf16.mxu0 0
    %1661 = vmatpush2.bf16.msra.mxu0 0
    %1662 = vmatprep.subr.bf16.mxu0 0
    %1663 = vmatpush2.bf16.msra.mxu0 0
    %1664 = vmatprep.subr.bf16.mxu0 0
    %1665 = vmatpush2.bf16.msra.mxu0 0
    %1666 = vmatprep.subr.bf16.mxu0 0
    %1667 = vmatpush2.bf16.msra.mxu0 0
    %1668 = vmatprep.mubr.bf16.mxu0 0
    %1669 = vmatmul.mubr.bf16.gmra.mxu0 %v1634
    %v1670 = vpop.f32.mrf.mxu0
    %v1671 = vadd.f32 %v1619, %v1670
    %v1672 = vpop.f32.mrf.mxu0
    %v1673 = vpop.f32.mrf.mxu0
    %v1674 = vadd.f32 %v1619, %v1673
    %v1675 = vpop.f32.mrf.mxu0
    %1676 = vdwg.mxu0
    %v1677 = vpack.c.bf16 %v1674, %v1671
    %v1679 = vunpack.c.l.b16 %v1677
    %v1680 = vunpack.c.h.b16 %v1677
    %v1681 = vpack.c.b16 %v1679, %v1679
    %v1682 = vpack.c.b16 %v1680, %v1680
    %1683 = vrot.lane.b32.xlu0 %v1681, 96
    %v1684 = vpop.permute.xlu0 %1683
    %v1686 = vsel %vm351, %v1681, 0
    %v1689 = vsel %vm351, %v1684, 0
    %1691 = vmatprep.subr.bf16.mxu0 0
    %1692 = vmatpush1.bf16.xpose.msra.mxu0 0
    %1693 = vmatprep.subr.bf16.mxu0 0
    %1694 = vmatpush1.bf16.xpose.msra.mxu0 0
    %1695 = vmatprep.subr.bf16.mxu0 0
    %1696 = vmatpush1.bf16.xpose.msra.mxu0 0
    %1697 = vmatprep.subr.bf16.mxu0 0
    %1698 = vmatpush1.bf16.xpose.msra.mxu0 0
    %1699 = vmatprep.subr.bf16.mxu0 0
    %1700 = vmatpush1.bf16.xpose.msra.mxu0 0
    %1701 = vmatprep.subr.bf16.mxu0 0
    %1702 = vmatpush1.bf16.xpose.msra.mxu0 0
    %1703 = vmatprep.subr.bf16.mxu0 0
    %1704 = vmatpush1.bf16.xpose.msra.mxu0 0
    %1705 = vmatprep.subr.bf16.mxu0 0
    %1706 = vmatpush1.bf16.xpose.msra.mxu0 %v1689
    %1707 = vmatprep.subr.bf16.mxu0 0
    %1708 = vmatpush2.bf16.xpose.msra.mxu0 0
    %1709 = vmatprep.subr.bf16.mxu0 0
    %1710 = vmatpush2.bf16.xpose.msra.mxu0 0
    %1711 = vmatprep.subr.bf16.mxu0 0
    %1712 = vmatpush2.bf16.xpose.msra.mxu0 0
    %1713 = vmatprep.subr.bf16.mxu0 0
    %1714 = vmatpush2.bf16.xpose.msra.mxu0 0
    %1715 = vmatprep.subr.bf16.mxu0 0
    %1716 = vmatpush2.bf16.xpose.msra.mxu0 0
    %1717 = vmatprep.subr.bf16.mxu0 0
    %1718 = vmatpush2.bf16.xpose.msra.mxu0 0
    %1719 = vmatprep.subr.bf16.mxu0 0
    %1720 = vmatpush2.bf16.xpose.msra.mxu0 0
    %1721 = vmatprep.subr.bf16.mxu0 0
    %1722 = vmatpush2.bf16.xpose.msra.mxu0 0
    %1723 = vmatprep.mubr.bf16.mxu0 0
    %1724 = vmatmul.mubr.bf16.gmra.mxu0 %v1686
    %v1725 = vpop.f32.mrf.mxu0
    %v1726 = vadd.f32 0.0, %v1725
    %v1727 = vpop.f32.mrf.mxu0
    %v1728 = vpop.f32.mrf.mxu0
    %v1729 = vpop.f32.mrf.mxu0
    %1730 = vdwg.mxu0
    %1731 = vrot.lane.b32.xlu0 %v1682, 96
    %v1732 = vpop.permute.xlu0 %1731
    %v1734 = vsel %vm351, %v1682, 0
    %v1737 = vsel %vm351, %v1732, 0
    %1739 = vmatprep.subr.bf16.mxu0 0
    %1740 = vmatpush1.bf16.xpose.msra.mxu0 0
    %1741 = vmatprep.subr.bf16.mxu0 0
    %1742 = vmatpush1.bf16.xpose.msra.mxu0 0
    %1743 = vmatprep.subr.bf16.mxu0 0
    %1744 = vmatpush1.bf16.xpose.msra.mxu0 0
    %1745 = vmatprep.subr.bf16.mxu0 0
    %1746 = vmatpush1.bf16.xpose.msra.mxu0 0
    %1747 = vmatprep.subr.bf16.mxu0 0
    %1748 = vmatpush1.bf16.xpose.msra.mxu0 0
    %1749 = vmatprep.subr.bf16.mxu0 0
    %1750 = vmatpush1.bf16.xpose.msra.mxu0 0
    %1751 = vmatprep.subr.bf16.mxu0 0
    %1752 = vmatpush1.bf16.xpose.msra.mxu0 0
    %1753 = vmatprep.subr.bf16.mxu0 0
    %1754 = vmatpush1.bf16.xpose.msra.mxu0 %v1737
    %1755 = vmatprep.subr.bf16.mxu0 0
    %1756 = vmatpush2.bf16.xpose.msra.mxu0 0
    %1757 = vmatprep.subr.bf16.mxu0 0
    %1758 = vmatpush2.bf16.xpose.msra.mxu0 0
    %1759 = vmatprep.subr.bf16.mxu0 0
    %1760 = vmatpush2.bf16.xpose.msra.mxu0 0
    %1761 = vmatprep.subr.bf16.mxu0 0
    %1762 = vmatpush2.bf16.xpose.msra.mxu0 0
    %1763 = vmatprep.subr.bf16.mxu0 0
    %1764 = vmatpush2.bf16.xpose.msra.mxu0 0
    %1765 = vmatprep.subr.bf16.mxu0 0
    %1766 = vmatpush2.bf16.xpose.msra.mxu0 0
    %1767 = vmatprep.subr.bf16.mxu0 0
    %1768 = vmatpush2.bf16.xpose.msra.mxu0 0
    %1769 = vmatprep.subr.bf16.mxu0 0
    %1770 = vmatpush2.bf16.xpose.msra.mxu0 0
    %1771 = vmatprep.mubr.bf16.mxu0 0
    %1772 = vmatmul.mubr.bf16.gmra.mxu0 %v1734
    %v1773 = vpop.f32.mrf.mxu0
    %v1774 = vadd.f32 0.0, %v1773
    %v1775 = vpop.f32.mrf.mxu0
    %v1776 = vpop.f32.mrf.mxu0
    %v1777 = vpop.f32.mrf.mxu0
    %1778 = vdwg.mxu0
    %v1779 = vmul.f32 %v1726, 0.35355338
    %v1780 = vmul.f32 %v1774, 0.35355338
    %v1781 = vadd.f32 %v1779, %v451
    %v1782 = vadd.f32 %v1780, %v455
    %v1783 = vsel %vm351, %v1781, -inf
    %1784 = vmax.xlane.f32.xlu0 %v1783
    %v1785 = vpop.xlane.xlu0 %1784
    %v1786 = vsel %vm351, %v1782, -inf
    %1787 = vmax.xlane.f32.xlu0 %v1786
    %v1788 = vpop.xlane.xlu0 %1787
    %v1789 = vsub.f32 %v1781, %v1785
    %v1790 = vsub.f32 %v1782, %v1788
    %v1791 = vmul.f32 %v1789, 1.442695
    %v1792 = vpow.pop %v1791
    %v1793 = vmul.f32 %v1790, 1.442695
    %v1794 = vpow.pop %v1793
    %v1795 = vsel %vm351, %v1792, 0.0
    %1796 = vadd.xlane.f32.xlu0 %v1795
    %v1797 = vpop.xlane.xlu0 %1796
    %v1798 = vsel %vm351, %v1794, 0.0
    %1799 = vadd.xlane.f32.xlu0 %v1798
    %v1800 = vpop.xlane.xlu0 %1799
    %v1801 = vrcp.pop %v1797
    %v1802 = vrcp.pop %v1800
    %v1803 = vmul.f32 %v1792, %v1801
    %v1804 = vmul.f32 %v1794, %v1802
    %v1805 = vpack.c.bf16 %v1803, %v1803
    %v1806 = vpack.c.bf16 %v1804, %v1804
    %1807 = vrot.lane.b32.xlu0 %v1681, 64
    %v1808 = vpop.permute.xlu0 %1807
    %v1810 = vsel %vm351, %v1805, 0
    %v1813 = vsel %vm112, %v1808, 0
    %1815 = vmatprep.subr.bf16.mxu0 0
    %1816 = vmatpush1.bf16.msra.mxu0 0
    %1817 = vmatprep.subr.bf16.mxu0 0
    %1818 = vmatpush1.bf16.msra.mxu0 0
    %1819 = vmatprep.subr.bf16.mxu0 0
    %1820 = vmatpush1.bf16.msra.mxu0 0
    %1821 = vmatprep.subr.bf16.mxu0 0
    %1822 = vmatpush1.bf16.msra.mxu0 0
    %1823 = vmatprep.subr.bf16.mxu0 0
    %1824 = vmatpush1.bf16.msra.mxu0 0
    %1825 = vmatprep.subr.bf16.mxu0 0
    %1826 = vmatpush1.bf16.msra.mxu0 0
    %1827 = vmatprep.subr.bf16.mxu0 0
    %1828 = vmatpush1.bf16.msra.mxu0 0
    %1829 = vmatprep.subr.bf16.mxu0 0
    %1830 = vmatpush1.bf16.msra.mxu0 %v1813
    %1831 = vmatprep.subr.bf16.mxu0 0
    %1832 = vmatpush2.bf16.msra.mxu0 0
    %1833 = vmatprep.subr.bf16.mxu0 0
    %1834 = vmatpush2.bf16.msra.mxu0 0
    %1835 = vmatprep.subr.bf16.mxu0 0
    %1836 = vmatpush2.bf16.msra.mxu0 0
    %1837 = vmatprep.subr.bf16.mxu0 0
    %1838 = vmatpush2.bf16.msra.mxu0 0
    %1839 = vmatprep.subr.bf16.mxu0 0
    %1840 = vmatpush2.bf16.msra.mxu0 0
    %1841 = vmatprep.subr.bf16.mxu0 0
    %1842 = vmatpush2.bf16.msra.mxu0 0
    %1843 = vmatprep.subr.bf16.mxu0 0
    %1844 = vmatpush2.bf16.msra.mxu0 0
    %1845 = vmatprep.subr.bf16.mxu0 0
    %1846 = vmatpush2.bf16.msra.mxu0 0
    %1847 = vmatprep.mubr.bf16.mxu0 0
    %1848 = vmatmul.mubr.bf16.gmra.mxu0 %v1810
    %v1849 = vpop.f32.mrf.mxu0
    %v1850 = vadd.f32 0.0, %v1849
    %v1851 = vpop.f32.mrf.mxu0
    %v1852 = vpop.f32.mrf.mxu0
    %v1853 = vpop.f32.mrf.mxu0
    %1854 = vdwg.mxu0
    %1855 = vrot.lane.b32.xlu0 %v1682, 64
    %v1856 = vpop.permute.xlu0 %1855
    %v1858 = vsel %vm351, %v1806, 0
    %v1861 = vsel %vm112, %v1856, 0
    %1863 = vmatprep.subr.bf16.mxu0 0
    %1864 = vmatpush1.bf16.msra.mxu0 0
    %1865 = vmatprep.subr.bf16.mxu0 0
    %1866 = vmatpush1.bf16.msra.mxu0 0
    %1867 = vmatprep.subr.bf16.mxu0 0
    %1868 = vmatpush1.bf16.msra.mxu0 0
    %1869 = vmatprep.subr.bf16.mxu0 0
    %1870 = vmatpush1.bf16.msra.mxu0 0
    %1871 = vmatprep.subr.bf16.mxu0 0
    %1872 = vmatpush1.bf16.msra.mxu0 0
    %1873 = vmatprep.subr.bf16.mxu0 0
    %1874 = vmatpush1.bf16.msra.mxu0 0
    %1875 = vmatprep.subr.bf16.mxu0 0
    %1876 = vmatpush1.bf16.msra.mxu0 0
    %1877 = vmatprep.subr.bf16.mxu0 0
    %1878 = vmatpush1.bf16.msra.mxu0 %v1861
    %1879 = vmatprep.subr.bf16.mxu0 0
    %1880 = vmatpush2.bf16.msra.mxu0 0
    %1881 = vmatprep.subr.bf16.mxu0 0
    %1882 = vmatpush2.bf16.msra.mxu0 0
    %1883 = vmatprep.subr.bf16.mxu0 0
    %1884 = vmatpush2.bf16.msra.mxu0 0
    %1885 = vmatprep.subr.bf16.mxu0 0
    %1886 = vmatpush2.bf16.msra.mxu0 0
    %1887 = vmatprep.subr.bf16.mxu0 0
    %1888 = vmatpush2.bf16.msra.mxu0 0
    %1889 = vmatprep.subr.bf16.mxu0 0
    %1890 = vmatpush2.bf16.msra.mxu0 0
    %1891 = vmatprep.subr.bf16.mxu0 0
    %1892 = vmatpush2.bf16.msra.mxu0 0
    %1893 = vmatprep.subr.bf16.mxu0 0
    %1894 = vmatpush2.bf16.msra.mxu0 0
    %1895 = vmatprep.mubr.bf16.mxu0 0
    %1896 = vmatmul.mubr.bf16.gmra.mxu0 %v1858
    %v1897 = vpop.f32.mrf.mxu0
    %v1898 = vadd.f32 0.0, %v1897
    %v1899 = vpop.f32.mrf.mxu0
    %v1900 = vpop.f32.mrf.mxu0
    %v1901 = vpop.f32.mrf.mxu0
    %1902 = vdwg.mxu0
    %1903 = vrot.lane.b32.xlu0 %v1681, 120
    %v1904 = vpop.permute.xlu0 %1903
    %1905 = vrot.lane.b32.xlu0 %v1681, 88
    %v1906 = vpop.permute.xlu0 %1905
    %v1908 = vsel %vm351, %v1904, 0
    %v1911 = vsel %vm351, %v1906, 0
    %1913 = vmatprep.subr.bf16.mxu0 0
    %1914 = vmatpush1.bf16.xpose.msra.mxu0 0
    %1915 = vmatprep.subr.bf16.mxu0 0
    %1916 = vmatpush1.bf16.xpose.msra.mxu0 0
    %1917 = vmatprep.subr.bf16.mxu0 0
    %1918 = vmatpush1.bf16.xpose.msra.mxu0 0
    %1919 = vmatprep.subr.bf16.mxu0 0
    %1920 = vmatpush1.bf16.xpose.msra.mxu0 0
    %1921 = vmatprep.subr.bf16.mxu0 0
    %1922 = vmatpush1.bf16.xpose.msra.mxu0 0
    %1923 = vmatprep.subr.bf16.mxu0 0
    %1924 = vmatpush1.bf16.xpose.msra.mxu0 0
    %1925 = vmatprep.subr.bf16.mxu0 0
    %1926 = vmatpush1.bf16.xpose.msra.mxu0 0
    %1927 = vmatprep.subr.bf16.mxu0 0
    %1928 = vmatpush1.bf16.xpose.msra.mxu0 %v1911
    %1929 = vmatprep.subr.bf16.mxu0 0
    %1930 = vmatpush2.bf16.xpose.msra.mxu0 0
    %1931 = vmatprep.subr.bf16.mxu0 0
    %1932 = vmatpush2.bf16.xpose.msra.mxu0 0
    %1933 = vmatprep.subr.bf16.mxu0 0
    %1934 = vmatpush2.bf16.xpose.msra.mxu0 0
    %1935 = vmatprep.subr.bf16.mxu0 0
    %1936 = vmatpush2.bf16.xpose.msra.mxu0 0
    %1937 = vmatprep.subr.bf16.mxu0 0
    %1938 = vmatpush2.bf16.xpose.msra.mxu0 0
    %1939 = vmatprep.subr.bf16.mxu0 0
    %1940 = vmatpush2.bf16.xpose.msra.mxu0 0
    %1941 = vmatprep.subr.bf16.mxu0 0
    %1942 = vmatpush2.bf16.xpose.msra.mxu0 0
    %1943 = vmatprep.subr.bf16.mxu0 0
    %1944 = vmatpush2.bf16.xpose.msra.mxu0 0
    %1945 = vmatprep.mubr.bf16.mxu0 0
    %1946 = vmatmul.mubr.bf16.gmra.mxu0 %v1908
    %v1947 = vpop.f32.mrf.mxu0
    %v1948 = vadd.f32 0.0, %v1947
    %v1949 = vpop.f32.mrf.mxu0
    %v1950 = vpop.f32.mrf.mxu0
    %v1951 = vpop.f32.mrf.mxu0
    %1952 = vdwg.mxu0
    %1953 = vrot.lane.b32.xlu0 %v1682, 120
    %v1954 = vpop.permute.xlu0 %1953
    %1955 = vrot.lane.b32.xlu0 %v1682, 88
    %v1956 = vpop.permute.xlu0 %1955
    %v1958 = vsel %vm351, %v1954, 0
    %v1961 = vsel %vm351, %v1956, 0
    %1963 = vmatprep.subr.bf16.mxu0 0
    %1964 = vmatpush1.bf16.xpose.msra.mxu0 0
    %1965 = vmatprep.subr.bf16.mxu0 0
    %1966 = vmatpush1.bf16.xpose.msra.mxu0 0
    %1967 = vmatprep.subr.bf16.mxu0 0
    %1968 = vmatpush1.bf16.xpose.msra.mxu0 0
    %1969 = vmatprep.subr.bf16.mxu0 0
    %1970 = vmatpush1.bf16.xpose.msra.mxu0 0
    %1971 = vmatprep.subr.bf16.mxu0 0
    %1972 = vmatpush1.bf16.xpose.msra.mxu0 0
    %1973 = vmatprep.subr.bf16.mxu0 0
    %1974 = vmatpush1.bf16.xpose.msra.mxu0 0
    %1975 = vmatprep.subr.bf16.mxu0 0
    %1976 = vmatpush1.bf16.xpose.msra.mxu0 0
    %1977 = vmatprep.subr.bf16.mxu0 0
    %1978 = vmatpush1.bf16.xpose.msra.mxu0 %v1961
    %1979 = vmatprep.subr.bf16.mxu0 0
    %1980 = vmatpush2.bf16.xpose.msra.mxu0 0
    %1981 = vmatprep.subr.bf16.mxu0 0
    %1982 = vmatpush2.bf16.xpose.msra.mxu0 0
    %1983 = vmatprep.subr.bf16.mxu0 0
    %1984 = vmatpush2.bf16.xpose.msra.mxu0 0
    %1985 = vmatprep.subr.bf16.mxu0 0
    %1986 = vmatpush2.bf16.xpose.msra.mxu0 0
    %1987 = vmatprep.subr.bf16.mxu0 0
    %1988 = vmatpush2.bf16.xpose.msra.mxu0 0
    %1989 = vmatprep.subr.bf16.mxu0 0
    %1990 = vmatpush2.bf16.xpose.msra.mxu0 0
    %1991 = vmatprep.subr.bf16.mxu0 0
    %1992 = vmatpush2.bf16.xpose.msra.mxu0 0
    %1993 = vmatprep.subr.bf16.mxu0 0
    %1994 = vmatpush2.bf16.xpose.msra.mxu0 0
    %1995 = vmatprep.mubr.bf16.mxu0 0
    %1996 = vmatmul.mubr.bf16.gmra.mxu0 %v1958
    %v1997 = vpop.f32.mrf.mxu0
    %v1998 = vadd.f32 0.0, %v1997
    %v1999 = vpop.f32.mrf.mxu0
    %v2000 = vpop.f32.mrf.mxu0
    %v2001 = vpop.f32.mrf.mxu0
    %2002 = vdwg.mxu0
    %v2003 = vmul.f32 %v1948, 0.35355338
    %v2004 = vmul.f32 %v1998, 0.35355338
    %v2005 = vadd.f32 %v2003, %v451
    %v2006 = vadd.f32 %v2004, %v455
    %v2007 = vsel %vm351, %v2005, -inf
    %2008 = vmax.xlane.f32.xlu0 %v2007
    %v2009 = vpop.xlane.xlu0 %2008
    %v2010 = vsel %vm351, %v2006, -inf
    %2011 = vmax.xlane.f32.xlu0 %v2010
    %v2012 = vpop.xlane.xlu0 %2011
    %v2013 = vsub.f32 %v2005, %v2009
    %v2014 = vsub.f32 %v2006, %v2012
    %v2015 = vmul.f32 %v2013, 1.442695
    %v2016 = vpow.pop %v2015
    %v2017 = vmul.f32 %v2014, 1.442695
    %v2018 = vpow.pop %v2017
    %v2019 = vsel %vm351, %v2016, 0.0
    %2020 = vadd.xlane.f32.xlu0 %v2019
    %v2021 = vpop.xlane.xlu0 %2020
    %v2022 = vsel %vm351, %v2018, 0.0
    %2023 = vadd.xlane.f32.xlu0 %v2022
    %v2024 = vpop.xlane.xlu0 %2023
    %v2025 = vrcp.pop %v2021
    %v2026 = vrcp.pop %v2024
    %v2027 = vmul.f32 %v2016, %v2025
    %v2028 = vmul.f32 %v2018, %v2026
    %v2029 = vpack.c.bf16 %v2027, %v2027
    %v2030 = vpack.c.bf16 %v2028, %v2028
    %2031 = vrot.lane.b32.xlu0 %v1681, 56
    %v2032 = vpop.permute.xlu0 %2031
    %v2034 = vsel %vm351, %v2029, 0
    %v2037 = vsel %vm112, %v2032, 0
    %2039 = vmatprep.subr.bf16.mxu0 0
    %2040 = vmatpush1.bf16.msra.mxu0 0
    %2041 = vmatprep.subr.bf16.mxu0 0
    %2042 = vmatpush1.bf16.msra.mxu0 0
    %2043 = vmatprep.subr.bf16.mxu0 0
    %2044 = vmatpush1.bf16.msra.mxu0 0
    %2045 = vmatprep.subr.bf16.mxu0 0
    %2046 = vmatpush1.bf16.msra.mxu0 0
    %2047 = vmatprep.subr.bf16.mxu0 0
    %2048 = vmatpush1.bf16.msra.mxu0 0
    %2049 = vmatprep.subr.bf16.mxu0 0
    %2050 = vmatpush1.bf16.msra.mxu0 0
    %2051 = vmatprep.subr.bf16.mxu0 0
    %2052 = vmatpush1.bf16.msra.mxu0 0
    %2053 = vmatprep.subr.bf16.mxu0 0
    %2054 = vmatpush1.bf16.msra.mxu0 %v2037
    %2055 = vmatprep.subr.bf16.mxu0 0
    %2056 = vmatpush2.bf16.msra.mxu0 0
    %2057 = vmatprep.subr.bf16.mxu0 0
    %2058 = vmatpush2.bf16.msra.mxu0 0
    %2059 = vmatprep.subr.bf16.mxu0 0
    %2060 = vmatpush2.bf16.msra.mxu0 0
    %2061 = vmatprep.subr.bf16.mxu0 0
    %2062 = vmatpush2.bf16.msra.mxu0 0
    %2063 = vmatprep.subr.bf16.mxu0 0
    %2064 = vmatpush2.bf16.msra.mxu0 0
    %2065 = vmatprep.subr.bf16.mxu0 0
    %2066 = vmatpush2.bf16.msra.mxu0 0
    %2067 = vmatprep.subr.bf16.mxu0 0
    %2068 = vmatpush2.bf16.msra.mxu0 0
    %2069 = vmatprep.subr.bf16.mxu0 0
    %2070 = vmatpush2.bf16.msra.mxu0 0
    %2071 = vmatprep.mubr.bf16.mxu0 0
    %2072 = vmatmul.mubr.bf16.gmra.mxu0 %v2034
    %v2073 = vpop.f32.mrf.mxu0
    %v2074 = vadd.f32 0.0, %v2073
    %v2075 = vpop.f32.mrf.mxu0
    %v2076 = vpop.f32.mrf.mxu0
    %v2077 = vpop.f32.mrf.mxu0
    %2078 = vdwg.mxu0
    %2079 = vrot.lane.b32.xlu0 %v1682, 56
    %v2080 = vpop.permute.xlu0 %2079
    %v2082 = vsel %vm351, %v2030, 0
    %v2085 = vsel %vm112, %v2080, 0
    %2087 = vmatprep.subr.bf16.mxu0 0
    %2088 = vmatpush1.bf16.msra.mxu0 0
    %2089 = vmatprep.subr.bf16.mxu0 0
    %2090 = vmatpush1.bf16.msra.mxu0 0
    %2091 = vmatprep.subr.bf16.mxu0 0
    %2092 = vmatpush1.bf16.msra.mxu0 0
    %2093 = vmatprep.subr.bf16.mxu0 0
    %2094 = vmatpush1.bf16.msra.mxu0 0
    %2095 = vmatprep.subr.bf16.mxu0 0
    %2096 = vmatpush1.bf16.msra.mxu0 0
    %2097 = vmatprep.subr.bf16.mxu0 0
    %2098 = vmatpush1.bf16.msra.mxu0 0
    %2099 = vmatprep.subr.bf16.mxu0 0
    %2100 = vmatpush1.bf16.msra.mxu0 0
    %2101 = vmatprep.subr.bf16.mxu0 0
    %2102 = vmatpush1.bf16.msra.mxu0 %v2085
    %2103 = vmatprep.subr.bf16.mxu0 0
    %2104 = vmatpush2.bf16.msra.mxu0 0
    %2105 = vmatprep.subr.bf16.mxu0 0
    %2106 = vmatpush2.bf16.msra.mxu0 0
    %2107 = vmatprep.subr.bf16.mxu0 0
    %2108 = vmatpush2.bf16.msra.mxu0 0
    %2109 = vmatprep.subr.bf16.mxu0 0
    %2110 = vmatpush2.bf16.msra.mxu0 0
    %2111 = vmatprep.subr.bf16.mxu0 0
    %2112 = vmatpush2.bf16.msra.mxu0 0
    %2113 = vmatprep.subr.bf16.mxu0 0
    %2114 = vmatpush2.bf16.msra.mxu0 0
    %2115 = vmatprep.subr.bf16.mxu0 0
    %2116 = vmatpush2.bf16.msra.mxu0 0
    %2117 = vmatprep.subr.bf16.mxu0 0
    %2118 = vmatpush2.bf16.msra.mxu0 0
    %2119 = vmatprep.mubr.bf16.mxu0 0
    %2120 = vmatmul.mubr.bf16.gmra.mxu0 %v2082
    %v2121 = vpop.f32.mrf.mxu0
    %v2122 = vadd.f32 0.0, %v2121
    %v2123 = vpop.f32.mrf.mxu0
    %v2124 = vpop.f32.mrf.mxu0
    %v2125 = vpop.f32.mrf.mxu0
    %2126 = vdwg.mxu0
    %2127 = vrot.lane.b32.xlu0 %v1681, 112
    %v2128 = vpop.permute.xlu0 %2127
    %2129 = vrot.lane.b32.xlu0 %v1681, 80
    %v2130 = vpop.permute.xlu0 %2129
    %v2132 = vsel %vm351, %v2128, 0
    %v2135 = vsel %vm351, %v2130, 0
    %2137 = vmatprep.subr.bf16.mxu0 0
    %2138 = vmatpush1.bf16.xpose.msra.mxu0 0
    %2139 = vmatprep.subr.bf16.mxu0 0
    %2140 = vmatpush1.bf16.xpose.msra.mxu0 0
    %2141 = vmatprep.subr.bf16.mxu0 0
    %2142 = vmatpush1.bf16.xpose.msra.mxu0 0
    %2143 = vmatprep.subr.bf16.mxu0 0
    %2144 = vmatpush1.bf16.xpose.msra.mxu0 0
    %2145 = vmatprep.subr.bf16.mxu0 0
    %2146 = vmatpush1.bf16.xpose.msra.mxu0 0
    %2147 = vmatprep.subr.bf16.mxu0 0
    %2148 = vmatpush1.bf16.xpose.msra.mxu0 0
    %2149 = vmatprep.subr.bf16.mxu0 0
    %2150 = vmatpush1.bf16.xpose.msra.mxu0 0
    %2151 = vmatprep.subr.bf16.mxu0 0
    %2152 = vmatpush1.bf16.xpose.msra.mxu0 %v2135
    %2153 = vmatprep.subr.bf16.mxu0 0
    %2154 = vmatpush2.bf16.xpose.msra.mxu0 0
    %2155 = vmatprep.subr.bf16.mxu0 0
    %2156 = vmatpush2.bf16.xpose.msra.mxu0 0
    %2157 = vmatprep.subr.bf16.mxu0 0
    %2158 = vmatpush2.bf16.xpose.msra.mxu0 0
    %2159 = vmatprep.subr.bf16.mxu0 0
    %2160 = vmatpush2.bf16.xpose.msra.mxu0 0
    %2161 = vmatprep.subr.bf16.mxu0 0
    %2162 = vmatpush2.bf16.xpose.msra.mxu0 0
    %2163 = vmatprep.subr.bf16.mxu0 0
    %2164 = vmatpush2.bf16.xpose.msra.mxu0 0
    %2165 = vmatprep.subr.bf16.mxu0 0
    %2166 = vmatpush2.bf16.xpose.msra.mxu0 0
    %2167 = vmatprep.subr.bf16.mxu0 0
    %2168 = vmatpush2.bf16.xpose.msra.mxu0 0
    %2169 = vmatprep.mubr.bf16.mxu0 0
    %2170 = vmatmul.mubr.bf16.gmra.mxu0 %v2132
    %v2171 = vpop.f32.mrf.mxu0
    %v2172 = vadd.f32 0.0, %v2171
    %v2173 = vpop.f32.mrf.mxu0
    %v2174 = vpop.f32.mrf.mxu0
    %v2175 = vpop.f32.mrf.mxu0
    %2176 = vdwg.mxu0
    %2177 = vrot.lane.b32.xlu0 %v1682, 112
    %v2178 = vpop.permute.xlu0 %2177
    %2179 = vrot.lane.b32.xlu0 %v1682, 80
    %v2180 = vpop.permute.xlu0 %2179
    %v2182 = vsel %vm351, %v2178, 0
    %v2185 = vsel %vm351, %v2180, 0
    %2187 = vmatprep.subr.bf16.mxu0 0
    %2188 = vmatpush1.bf16.xpose.msra.mxu0 0
    %2189 = vmatprep.subr.bf16.mxu0 0
    %2190 = vmatpush1.bf16.xpose.msra.mxu0 0
    %2191 = vmatprep.subr.bf16.mxu0 0
    %2192 = vmatpush1.bf16.xpose.msra.mxu0 0
    %2193 = vmatprep.subr.bf16.mxu0 0
    %2194 = vmatpush1.bf16.xpose.msra.mxu0 0
    %2195 = vmatprep.subr.bf16.mxu0 0
    %2196 = vmatpush1.bf16.xpose.msra.mxu0 0
    %2197 = vmatprep.subr.bf16.mxu0 0
    %2198 = vmatpush1.bf16.xpose.msra.mxu0 0
    %2199 = vmatprep.subr.bf16.mxu0 0
    %2200 = vmatpush1.bf16.xpose.msra.mxu0 0
    %2201 = vmatprep.subr.bf16.mxu0 0
    %2202 = vmatpush1.bf16.xpose.msra.mxu0 %v2185
    %2203 = vmatprep.subr.bf16.mxu0 0
    %2204 = vmatpush2.bf16.xpose.msra.mxu0 0
    %2205 = vmatprep.subr.bf16.mxu0 0
    %2206 = vmatpush2.bf16.xpose.msra.mxu0 0
    %2207 = vmatprep.subr.bf16.mxu0 0
    %2208 = vmatpush2.bf16.xpose.msra.mxu0 0
    %2209 = vmatprep.subr.bf16.mxu0 0
    %2210 = vmatpush2.bf16.xpose.msra.mxu0 0
    %2211 = vmatprep.subr.bf16.mxu0 0
    %2212 = vmatpush2.bf16.xpose.msra.mxu0 0
    %2213 = vmatprep.subr.bf16.mxu0 0
    %2214 = vmatpush2.bf16.xpose.msra.mxu0 0
    %2215 = vmatprep.subr.bf16.mxu0 0
    %2216 = vmatpush2.bf16.xpose.msra.mxu0 0
    %2217 = vmatprep.subr.bf16.mxu0 0
    %2218 = vmatpush2.bf16.xpose.msra.mxu0 0
    %2219 = vmatprep.mubr.bf16.mxu0 0
    %2220 = vmatmul.mubr.bf16.gmra.mxu0 %v2182
    %v2221 = vpop.f32.mrf.mxu0
    %v2222 = vadd.f32 0.0, %v2221
    %v2223 = vpop.f32.mrf.mxu0
    %v2224 = vpop.f32.mrf.mxu0
    %v2225 = vpop.f32.mrf.mxu0
    %2226 = vdwg.mxu0
    %v2227 = vmul.f32 %v2172, 0.35355338
    %v2228 = vmul.f32 %v2222, 0.35355338
    %v2229 = vadd.f32 %v2227, %v451
    %v2230 = vadd.f32 %v2228, %v455
    %v2231 = vsel %vm351, %v2229, -inf
    %2232 = vmax.xlane.f32.xlu0 %v2231
    %v2233 = vpop.xlane.xlu0 %2232
    %v2234 = vsel %vm351, %v2230, -inf
    %2235 = vmax.xlane.f32.xlu0 %v2234
    %v2236 = vpop.xlane.xlu0 %2235
    %v2237 = vsub.f32 %v2229, %v2233
    %v2238 = vsub.f32 %v2230, %v2236
    %v2239 = vmul.f32 %v2237, 1.442695
    %v2240 = vpow.pop %v2239
    %v2241 = vmul.f32 %v2238, 1.442695
    %v2242 = vpow.pop %v2241
    %v2243 = vsel %vm351, %v2240, 0.0
    %2244 = vadd.xlane.f32.xlu0 %v2243
    %v2245 = vpop.xlane.xlu0 %2244
    %v2246 = vsel %vm351, %v2242, 0.0
    %2247 = vadd.xlane.f32.xlu0 %v2246
    %v2248 = vpop.xlane.xlu0 %2247
    %v2249 = vrcp.pop %v2245
    %v2250 = vrcp.pop %v2248
    %v2251 = vmul.f32 %v2240, %v2249
    %v2252 = vmul.f32 %v2242, %v2250
    %v2253 = vpack.c.bf16 %v2251, %v2251
    %v2254 = vpack.c.bf16 %v2252, %v2252
    %2255 = vrot.lane.b32.xlu0 %v1681, 48
    %v2256 = vpop.permute.xlu0 %2255
    %v2258 = vsel %vm351, %v2253, 0
    %v2261 = vsel %vm112, %v2256, 0
    %2263 = vmatprep.subr.bf16.mxu0 0
    %2264 = vmatpush1.bf16.msra.mxu0 0
    %2265 = vmatprep.subr.bf16.mxu0 0
    %2266 = vmatpush1.bf16.msra.mxu0 0
    %2267 = vmatprep.subr.bf16.mxu0 0
    %2268 = vmatpush1.bf16.msra.mxu0 0
    %2269 = vmatprep.subr.bf16.mxu0 0
    %2270 = vmatpush1.bf16.msra.mxu0 0
    %2271 = vmatprep.subr.bf16.mxu0 0
    %2272 = vmatpush1.bf16.msra.mxu0 0
    %2273 = vmatprep.subr.bf16.mxu0 0
    %2274 = vmatpush1.bf16.msra.mxu0 0
    %2275 = vmatprep.subr.bf16.mxu0 0
    %2276 = vmatpush1.bf16.msra.mxu0 0
    %2277 = vmatprep.subr.bf16.mxu0 0
    %2278 = vmatpush1.bf16.msra.mxu0 %v2261
    %2279 = vmatprep.subr.bf16.mxu0 0
    %2280 = vmatpush2.bf16.msra.mxu0 0
    %2281 = vmatprep.subr.bf16.mxu0 0
    %2282 = vmatpush2.bf16.msra.mxu0 0
    %2283 = vmatprep.subr.bf16.mxu0 0
    %2284 = vmatpush2.bf16.msra.mxu0 0
    %2285 = vmatprep.subr.bf16.mxu0 0
    %2286 = vmatpush2.bf16.msra.mxu0 0
    %2287 = vmatprep.subr.bf16.mxu0 0
    %2288 = vmatpush2.bf16.msra.mxu0 0
    %2289 = vmatprep.subr.bf16.mxu0 0
    %2290 = vmatpush2.bf16.msra.mxu0 0
    %2291 = vmatprep.subr.bf16.mxu0 0
    %2292 = vmatpush2.bf16.msra.mxu0 0
    %2293 = vmatprep.subr.bf16.mxu0 0
    %2294 = vmatpush2.bf16.msra.mxu0 0
    %2295 = vmatprep.mubr.bf16.mxu0 0
    %2296 = vmatmul.mubr.bf16.gmra.mxu0 %v2258
    %v2297 = vpop.f32.mrf.mxu0
    %v2298 = vadd.f32 0.0, %v2297
    %v2299 = vpop.f32.mrf.mxu0
    %v2300 = vpop.f32.mrf.mxu0
    %v2301 = vpop.f32.mrf.mxu0
    %2302 = vdwg.mxu0
    %2303 = vrot.lane.b32.xlu0 %v1682, 48
    %v2304 = vpop.permute.xlu0 %2303
    %v2306 = vsel %vm351, %v2254, 0
    %v2309 = vsel %vm112, %v2304, 0
    %2311 = vmatprep.subr.bf16.mxu0 0
    %2312 = vmatpush1.bf16.msra.mxu0 0
    %2313 = vmatprep.subr.bf16.mxu0 0
    %2314 = vmatpush1.bf16.msra.mxu0 0
    %2315 = vmatprep.subr.bf16.mxu0 0
    %2316 = vmatpush1.bf16.msra.mxu0 0
    %2317 = vmatprep.subr.bf16.mxu0 0
    %2318 = vmatpush1.bf16.msra.mxu0 0
    %2319 = vmatprep.subr.bf16.mxu0 0
    %2320 = vmatpush1.bf16.msra.mxu0 0
    %2321 = vmatprep.subr.bf16.mxu0 0
    %2322 = vmatpush1.bf16.msra.mxu0 0
    %2323 = vmatprep.subr.bf16.mxu0 0
    %2324 = vmatpush1.bf16.msra.mxu0 0
    %2325 = vmatprep.subr.bf16.mxu0 0
    %2326 = vmatpush1.bf16.msra.mxu0 %v2309
    %2327 = vmatprep.subr.bf16.mxu0 0
    %2328 = vmatpush2.bf16.msra.mxu0 0
    %2329 = vmatprep.subr.bf16.mxu0 0
    %2330 = vmatpush2.bf16.msra.mxu0 0
    %2331 = vmatprep.subr.bf16.mxu0 0
    %2332 = vmatpush2.bf16.msra.mxu0 0
    %2333 = vmatprep.subr.bf16.mxu0 0
    %2334 = vmatpush2.bf16.msra.mxu0 0
    %2335 = vmatprep.subr.bf16.mxu0 0
    %2336 = vmatpush2.bf16.msra.mxu0 0
    %2337 = vmatprep.subr.bf16.mxu0 0
    %2338 = vmatpush2.bf16.msra.mxu0 0
    %2339 = vmatprep.subr.bf16.mxu0 0
    %2340 = vmatpush2.bf16.msra.mxu0 0
    %2341 = vmatprep.subr.bf16.mxu0 0
    %2342 = vmatpush2.bf16.msra.mxu0 0
    %2343 = vmatprep.mubr.bf16.mxu0 0
    %2344 = vmatmul.mubr.bf16.gmra.mxu0 %v2306
    %v2345 = vpop.f32.mrf.mxu0
    %v2346 = vadd.f32 0.0, %v2345
    %v2347 = vpop.f32.mrf.mxu0
    %v2348 = vpop.f32.mrf.mxu0
    %v2349 = vpop.f32.mrf.mxu0
    %2350 = vdwg.mxu0
    %2351 = vrot.lane.b32.xlu0 %v1681, 104
    %v2352 = vpop.permute.xlu0 %2351
    %2353 = vrot.lane.b32.xlu0 %v1681, 72
    %v2354 = vpop.permute.xlu0 %2353
    %v2356 = vsel %vm351, %v2352, 0
    %v2359 = vsel %vm351, %v2354, 0
    %2361 = vmatprep.subr.bf16.mxu0 0
    %2362 = vmatpush1.bf16.xpose.msra.mxu0 0
    %2363 = vmatprep.subr.bf16.mxu0 0
    %2364 = vmatpush1.bf16.xpose.msra.mxu0 0
    %2365 = vmatprep.subr.bf16.mxu0 0
    %2366 = vmatpush1.bf16.xpose.msra.mxu0 0
    %2367 = vmatprep.subr.bf16.mxu0 0
    %2368 = vmatpush1.bf16.xpose.msra.mxu0 0
    %2369 = vmatprep.subr.bf16.mxu0 0
    %2370 = vmatpush1.bf16.xpose.msra.mxu0 0
    %2371 = vmatprep.subr.bf16.mxu0 0
    %2372 = vmatpush1.bf16.xpose.msra.mxu0 0
    %2373 = vmatprep.subr.bf16.mxu0 0
    %2374 = vmatpush1.bf16.xpose.msra.mxu0 0
    %2375 = vmatprep.subr.bf16.mxu0 0
    %2376 = vmatpush1.bf16.xpose.msra.mxu0 %v2359
    %2377 = vmatprep.subr.bf16.mxu0 0
    %2378 = vmatpush2.bf16.xpose.msra.mxu0 0
    %2379 = vmatprep.subr.bf16.mxu0 0
    %2380 = vmatpush2.bf16.xpose.msra.mxu0 0
    %2381 = vmatprep.subr.bf16.mxu0 0
    %2382 = vmatpush2.bf16.xpose.msra.mxu0 0
    %2383 = vmatprep.subr.bf16.mxu0 0
    %2384 = vmatpush2.bf16.xpose.msra.mxu0 0
    %2385 = vmatprep.subr.bf16.mxu0 0
    %2386 = vmatpush2.bf16.xpose.msra.mxu0 0
    %2387 = vmatprep.subr.bf16.mxu0 0
    %2388 = vmatpush2.bf16.xpose.msra.mxu0 0
    %2389 = vmatprep.subr.bf16.mxu0 0
    %2390 = vmatpush2.bf16.xpose.msra.mxu0 0
    %2391 = vmatprep.subr.bf16.mxu0 0
    %2392 = vmatpush2.bf16.xpose.msra.mxu0 0
    %2393 = vmatprep.mubr.bf16.mxu0 0
    %2394 = vmatmul.mubr.bf16.gmra.mxu0 %v2356
    %v2395 = vpop.f32.mrf.mxu0
    %v2396 = vadd.f32 0.0, %v2395
    %v2397 = vpop.f32.mrf.mxu0
    %v2398 = vpop.f32.mrf.mxu0
    %v2399 = vpop.f32.mrf.mxu0
    %2400 = vdwg.mxu0
    %2401 = vrot.lane.b32.xlu0 %v1682, 104
    %v2402 = vpop.permute.xlu0 %2401
    %2403 = vrot.lane.b32.xlu0 %v1682, 72
    %v2404 = vpop.permute.xlu0 %2403
    %v2406 = vsel %vm351, %v2402, 0
    %v2409 = vsel %vm351, %v2404, 0
    %2411 = vmatprep.subr.bf16.mxu0 0
    %2412 = vmatpush1.bf16.xpose.msra.mxu0 0
    %2413 = vmatprep.subr.bf16.mxu0 0
    %2414 = vmatpush1.bf16.xpose.msra.mxu0 0
    %2415 = vmatprep.subr.bf16.mxu0 0
    %2416 = vmatpush1.bf16.xpose.msra.mxu0 0
    %2417 = vmatprep.subr.bf16.mxu0 0
    %2418 = vmatpush1.bf16.xpose.msra.mxu0 0
    %2419 = vmatprep.subr.bf16.mxu0 0
    %2420 = vmatpush1.bf16.xpose.msra.mxu0 0
    %2421 = vmatprep.subr.bf16.mxu0 0
    %2422 = vmatpush1.bf16.xpose.msra.mxu0 0
    %2423 = vmatprep.subr.bf16.mxu0 0
    %2424 = vmatpush1.bf16.xpose.msra.mxu0 0
    %2425 = vmatprep.subr.bf16.mxu0 0
    %2426 = vmatpush1.bf16.xpose.msra.mxu0 %v2409
    %2427 = vmatprep.subr.bf16.mxu0 0
    %2428 = vmatpush2.bf16.xpose.msra.mxu0 0
    %2429 = vmatprep.subr.bf16.mxu0 0
    %2430 = vmatpush2.bf16.xpose.msra.mxu0 0
    %2431 = vmatprep.subr.bf16.mxu0 0
    %2432 = vmatpush2.bf16.xpose.msra.mxu0 0
    %2433 = vmatprep.subr.bf16.mxu0 0
    %2434 = vmatpush2.bf16.xpose.msra.mxu0 0
    %2435 = vmatprep.subr.bf16.mxu0 0
    %2436 = vmatpush2.bf16.xpose.msra.mxu0 0
    %2437 = vmatprep.subr.bf16.mxu0 0
    %2438 = vmatpush2.bf16.xpose.msra.mxu0 0
    %2439 = vmatprep.subr.bf16.mxu0 0
    %2440 = vmatpush2.bf16.xpose.msra.mxu0 0
    %2441 = vmatprep.subr.bf16.mxu0 0
    %2442 = vmatpush2.bf16.xpose.msra.mxu0 0
    %2443 = vmatprep.mubr.bf16.mxu0 0
    %2444 = vmatmul.mubr.bf16.gmra.mxu0 %v2406
    %v2445 = vpop.f32.mrf.mxu0
    %v2446 = vadd.f32 0.0, %v2445
    %v2447 = vpop.f32.mrf.mxu0
    %v2448 = vpop.f32.mrf.mxu0
    %v2449 = vpop.f32.mrf.mxu0
    %2450 = vdwg.mxu0
    %v2451 = vmul.f32 %v2396, 0.35355338
    %v2452 = vmul.f32 %v2446, 0.35355338
    %v2453 = vadd.f32 %v2451, %v451
    %v2454 = vadd.f32 %v2452, %v455
    %v2455 = vsel %vm351, %v2453, -inf
    %2456 = vmax.xlane.f32.xlu0 %v2455
    %v2457 = vpop.xlane.xlu0 %2456
    %v2458 = vsel %vm351, %v2454, -inf
    %2459 = vmax.xlane.f32.xlu0 %v2458
    %v2460 = vpop.xlane.xlu0 %2459
    %v2461 = vsub.f32 %v2453, %v2457
    %v2462 = vsub.f32 %v2454, %v2460
    %v2463 = vmul.f32 %v2461, 1.442695
    %v2464 = vpow.pop %v2463
    %v2465 = vmul.f32 %v2462, 1.442695
    %v2466 = vpow.pop %v2465
    %v2467 = vsel %vm351, %v2464, 0.0
    %2468 = vadd.xlane.f32.xlu0 %v2467
    %v2469 = vpop.xlane.xlu0 %2468
    %v2470 = vsel %vm351, %v2466, 0.0
    %2471 = vadd.xlane.f32.xlu0 %v2470
    %v2472 = vpop.xlane.xlu0 %2471
    %v2473 = vrcp.pop %v2469
    %v2474 = vrcp.pop %v2472
    %v2475 = vmul.f32 %v2464, %v2473
    %v2476 = vmul.f32 %v2466, %v2474
    %v2477 = vpack.c.bf16 %v2475, %v2475
    %v2478 = vpack.c.bf16 %v2476, %v2476
    %2479 = vrot.lane.b32.xlu0 %v1681, 40
    %v2480 = vpop.permute.xlu0 %2479
    %v2482 = vsel %vm351, %v2477, 0
    %v2485 = vsel %vm112, %v2480, 0
    %2487 = vmatprep.subr.bf16.mxu0 0
    %2488 = vmatpush1.bf16.msra.mxu0 0
    %2489 = vmatprep.subr.bf16.mxu0 0
    %2490 = vmatpush1.bf16.msra.mxu0 0
    %2491 = vmatprep.subr.bf16.mxu0 0
    %2492 = vmatpush1.bf16.msra.mxu0 0
    %2493 = vmatprep.subr.bf16.mxu0 0
    %2494 = vmatpush1.bf16.msra.mxu0 0
    %2495 = vmatprep.subr.bf16.mxu0 0
    %2496 = vmatpush1.bf16.msra.mxu0 0
    %2497 = vmatprep.subr.bf16.mxu0 0
    %2498 = vmatpush1.bf16.msra.mxu0 0
    %2499 = vmatprep.subr.bf16.mxu0 0
    %2500 = vmatpush1.bf16.msra.mxu0 0
    %2501 = vmatprep.subr.bf16.mxu0 0
    %2502 = vmatpush1.bf16.msra.mxu0 %v2485
    %2503 = vmatprep.subr.bf16.mxu0 0
    %2504 = vmatpush2.bf16.msra.mxu0 0
    %2505 = vmatprep.subr.bf16.mxu0 0
    %2506 = vmatpush2.bf16.msra.mxu0 0
    %2507 = vmatprep.subr.bf16.mxu0 0
    %2508 = vmatpush2.bf16.msra.mxu0 0
    %2509 = vmatprep.subr.bf16.mxu0 0
    %2510 = vmatpush2.bf16.msra.mxu0 0
    %2511 = vmatprep.subr.bf16.mxu0 0
    %2512 = vmatpush2.bf16.msra.mxu0 0
    %2513 = vmatprep.subr.bf16.mxu0 0
    %2514 = vmatpush2.bf16.msra.mxu0 0
    %2515 = vmatprep.subr.bf16.mxu0 0
    %2516 = vmatpush2.bf16.msra.mxu0 0
    %2517 = vmatprep.subr.bf16.mxu0 0
    %2518 = vmatpush2.bf16.msra.mxu0 0
    %2519 = vmatprep.mubr.bf16.mxu0 0
    %2520 = vmatmul.mubr.bf16.gmra.mxu0 %v2482
    %v2521 = vpop.f32.mrf.mxu0
    %v2522 = vadd.f32 0.0, %v2521
    %v2523 = vpop.f32.mrf.mxu0
    %v2524 = vpop.f32.mrf.mxu0
    %v2525 = vpop.f32.mrf.mxu0
    %2526 = vdwg.mxu0
    %2527 = vrot.lane.b32.xlu0 %v1682, 40
    %v2528 = vpop.permute.xlu0 %2527
    %v2530 = vsel %vm351, %v2478, 0
    %v2533 = vsel %vm112, %v2528, 0
    %2535 = vmatprep.subr.bf16.mxu0 0
    %2536 = vmatpush1.bf16.msra.mxu0 0
    %2537 = vmatprep.subr.bf16.mxu0 0
    %2538 = vmatpush1.bf16.msra.mxu0 0
    %2539 = vmatprep.subr.bf16.mxu0 0
    %2540 = vmatpush1.bf16.msra.mxu0 0
    %2541 = vmatprep.subr.bf16.mxu0 0
    %2542 = vmatpush1.bf16.msra.mxu0 0
    %2543 = vmatprep.subr.bf16.mxu0 0
    %2544 = vmatpush1.bf16.msra.mxu0 0
    %2545 = vmatprep.subr.bf16.mxu0 0
    %2546 = vmatpush1.bf16.msra.mxu0 0
    %2547 = vmatprep.subr.bf16.mxu0 0
    %2548 = vmatpush1.bf16.msra.mxu0 0
    %2549 = vmatprep.subr.bf16.mxu0 0
    %2550 = vmatpush1.bf16.msra.mxu0 %v2533
    %2551 = vmatprep.subr.bf16.mxu0 0
    %2552 = vmatpush2.bf16.msra.mxu0 0
    %2553 = vmatprep.subr.bf16.mxu0 0
    %2554 = vmatpush2.bf16.msra.mxu0 0
    %2555 = vmatprep.subr.bf16.mxu0 0
    %2556 = vmatpush2.bf16.msra.mxu0 0
    %2557 = vmatprep.subr.bf16.mxu0 0
    %2558 = vmatpush2.bf16.msra.mxu0 0
    %2559 = vmatprep.subr.bf16.mxu0 0
    %2560 = vmatpush2.bf16.msra.mxu0 0
    %2561 = vmatprep.subr.bf16.mxu0 0
    %2562 = vmatpush2.bf16.msra.mxu0 0
    %2563 = vmatprep.subr.bf16.mxu0 0
    %2564 = vmatpush2.bf16.msra.mxu0 0
    %2565 = vmatprep.subr.bf16.mxu0 0
    %2566 = vmatpush2.bf16.msra.mxu0 0
    %2567 = vmatprep.mubr.bf16.mxu0 0
    %2568 = vmatmul.mubr.bf16.gmra.mxu0 %v2530
    %v2569 = vpop.f32.mrf.mxu0
    %v2570 = vadd.f32 0.0, %v2569
    %v2571 = vpop.f32.mrf.mxu0
    %v2572 = vpop.f32.mrf.mxu0
    %v2573 = vpop.f32.mrf.mxu0
    %2574 = vdwg.mxu0
    %2577 = vrot.lane.b32.xlu0 %v2074, 8
    %v2578 = vpop.permute.xlu0 %2577
    %2579 = vrot.lane.b32.xlu0 %v2122, 8
    %v2580 = vpop.permute.xlu0 %2579
    %2585 = vrot.lane.b32.xlu0 %v2298, 16
    %v2586 = vpop.permute.xlu0 %2585
    %2587 = vrot.lane.b32.xlu0 %v2346, 16
    %v2588 = vpop.permute.xlu0 %2587
    %2593 = vrot.lane.b32.xlu0 %v2522, 24
    %v2594 = vpop.permute.xlu0 %2593
    %2595 = vrot.lane.b32.xlu0 %v2570, 24
    %v2596 = vpop.permute.xlu0 %2595
    %v2599 = vsel %vm351, %v1850, %v2578
    %v2600 = vsel %vm351, %v1898, %v2580
    %v2601 = vsel %vm1278, %v2599, %v2586
    %v2602 = vsel %vm1278, %v2600, %v2588
    %v2603 = vsel %vm1281, %v2601, %v2594
    %v2604 = vsel %vm1281, %v2602, %v2596
    %s2605 = scalar_lea.vmem %s9, 16
    %v2606 = vld [vmem:[%s2605] sm:$0xf]
    %v2607 = vld [vmem:[%s2605 + $0x4] sm:$0xf]
    %v2608 = vld [vmem:[%s2605 + $0x8] sm:$0xf]
    %v2609 = vld [vmem:[%s2605 + $0xc] sm:$0xf]
    %v2610 = vpack.c.bf16 %v2604, %v2603
    %s2611 = scalar_lea.vmem %s10, 1
    %v2612 = vld [vmem:[%s2611] sm:$0x1]
    %v2614 = vlaneseq
    %v2615 = vshrl.u32 %v2614, 7
    %v2616 = vsub.s32 0, %v2615
    %v2617 = vrot.slane %v2612, %v2616
    %v2623 = vunpack.c.l.b16 %v2606
    %v2624 = vunpack.c.l.b16 %v2607
    %v2625 = vunpack.c.l.b16 %v2608
    %v2626 = vunpack.c.l.b16 %v2609
    %v2627 = vpack.c.b16 %v2624, %v2623
    %v2628 = vpack.c.b16 %v2626, %v2625
    %v2632 = vsel %vm205, %v2610, 0
    %2634 = vmatprep.subr.bf16.mxu0 0
    %2635 = vmatpush1.bf16.msra.mxu0 0
    %2636 = vmatprep.subr.bf16.mxu0 0
    %2637 = vmatpush1.bf16.msra.mxu0 0
    %2638 = vmatprep.subr.bf16.mxu0 0
    %2639 = vmatpush1.bf16.msra.mxu0 0
    %2640 = vmatprep.subr.bf16.mxu0 0
    %2641 = vmatpush1.bf16.msra.mxu0 0
    %2642 = vmatprep.subr.bf16.mxu0 0
    %2643 = vmatpush1.bf16.msra.mxu0 0
    %2644 = vmatprep.subr.bf16.mxu0 0
    %2645 = vmatpush1.bf16.msra.mxu0 0
    %2646 = vmatprep.subr.bf16.mxu0 0
    %2647 = vmatpush1.bf16.msra.mxu0 %v2628
    %2648 = vmatprep.subr.bf16.mxu0 0
    %2649 = vmatpush1.bf16.msra.mxu0 %v2627
    %2650 = vmatprep.subr.bf16.mxu0 0
    %2651 = vmatpush2.bf16.msra.mxu0 0
    %2652 = vmatprep.subr.bf16.mxu0 0
    %2653 = vmatpush2.bf16.msra.mxu0 0
    %2654 = vmatprep.subr.bf16.mxu0 0
    %2655 = vmatpush2.bf16.msra.mxu0 0
    %2656 = vmatprep.subr.bf16.mxu0 0
    %2657 = vmatpush2.bf16.msra.mxu0 0
    %2658 = vmatprep.subr.bf16.mxu0 0
    %2659 = vmatpush2.bf16.msra.mxu0 0
    %2660 = vmatprep.subr.bf16.mxu0 0
    %2661 = vmatpush2.bf16.msra.mxu0 0
    %2662 = vmatprep.subr.bf16.mxu0 0
    %2663 = vmatpush2.bf16.msra.mxu0 0
    %2664 = vmatprep.subr.bf16.mxu0 0
    %2665 = vmatpush2.bf16.msra.mxu0 0
    %2666 = vmatprep.mubr.bf16.mxu0 0
    %2667 = vmatmul.mubr.bf16.gmra.mxu0 %v2632
    %v2668 = vpop.f32.mrf.mxu0
    %v2669 = vadd.f32 %v2617, %v2668
    %v2670 = vpop.f32.mrf.mxu0
    %v2671 = vpop.f32.mrf.mxu0
    %v2672 = vadd.f32 %v2617, %v2671
    %v2673 = vpop.f32.mrf.mxu0
    %2674 = vdwg.mxu0
    %v2675 = vadd.f32 %v2669, %v1605
    %v2676 = vadd.f32 %v2672, %v1606
    %s2677 = scalar_lea.vmem %s11, 1
    %v2678 = vld [vmem:[%s2677] sm:$0x1]
    %s2679 = scalar_lea.vmem %s12, 1
    %v2680 = vld [vmem:[%s2679] sm:$0x1]
    %v2681 = vsel %vm205, %v2675, 0.0
    %2682 = vadd.xlane.f32.xlu0 %v2681
    %v2683 = vpop.xlane.xlu0 %2682
    %v2684 = vsel %vm205, %v2676, 0.0
    %2685 = vadd.xlane.f32.xlu0 %v2684
    %v2686 = vpop.xlane.xlu0 %2685
    %v2687 = vmul.f32 %v2683, %v212
    %v2688 = vmul.f32 %v2686, %v212
    %v2689 = vsub.f32 %v2675, %v2687
    %v2690 = vsub.f32 %v2676, %v2688
    %v2691 = vmul.f32 %v2689, %v2689
    %v2692 = vmul.f32 %v2690, %v2690
    %v2693 = vsel %vm205, %v2691, 0.0
    %2694 = vadd.xlane.f32.xlu0 %v2693
    %v2695 = vpop.xlane.xlu0 %2694
    %v2696 = vsel %vm205, %v2692, 0.0
    %2697 = vadd.xlane.f32.xlu0 %v2696
    %v2698 = vpop.xlane.xlu0 %2697
    %v2699 = vmul.f32 %v2695, %v212
    %v2700 = vmul.f32 %v2698, %v212
    %v2701 = vadd.f32 %v2699, 1e-12
    %v2702 = vadd.f32 %v2700, 1e-12
    %v2703 = vrsqrt.pop %v2701
    %v2704 = vrsqrt.pop %v2702
    %v2705 = vmul.f32 %v2689, %v2703
    %v2706 = vmul.f32 %v2690, %v2704
    %v2708 = vlaneseq
    %v2709 = vshrl.u32 %v2708, 7
    %v2710 = vsub.s32 0, %v2709
    %v2711 = vrot.slane %v2678, %v2710
    %v2713 = vmul.f32 %v2705, %v2711
    %v2714 = vmul.f32 %v2706, %v2711
    %v2716 = vlaneseq
    %v2717 = vshrl.u32 %v2716, 7
    %v2718 = vsub.s32 0, %v2717
    %v2719 = vrot.slane %v2680, %v2718
    %v2721 = vadd.f32 %v2713, %v2719
    %v2722 = vadd.f32 %v2714, %v2719
    %s2723 = scalar_lea.vmem %s13, 16
    %v2724 = vld [vmem:[%s2723] sm:$0xf]
    %v2725 = vld [vmem:[%s2723 + $0x4] sm:$0xf]
    %v2726 = vld [vmem:[%s2723 + $0x8] sm:$0xf]
    %v2727 = vld [vmem:[%s2723 + $0xc] sm:$0xf]
    %v2728 = vpack.c.bf16 %v2722, %v2721
    %s2729 = scalar_lea.vmem %s14, 1
    %v2730 = vld [vmem:[%s2729] sm:$0x1]
    %v2732 = vlaneseq
    %v2733 = vshrl.u32 %v2732, 7
    %v2734 = vsub.s32 0, %v2733
    %v2735 = vrot.slane %v2730, %v2734
    %v2741 = vunpack.c.l.b16 %v2724
    %v2742 = vunpack.c.l.b16 %v2725
    %v2743 = vunpack.c.l.b16 %v2726
    %v2744 = vunpack.c.l.b16 %v2727
    %v2745 = vpack.c.b16 %v2742, %v2741
    %v2746 = vpack.c.b16 %v2744, %v2743
    %v2750 = vsel %vm205, %v2728, 0
    %2752 = vmatprep.subr.bf16.mxu0 0
    %2753 = vmatpush1.bf16.msra.mxu0 0
    %2754 = vmatprep.subr.bf16.mxu0 0
    %2755 = vmatpush1.bf16.msra.mxu0 0
    %2756 = vmatprep.subr.bf16.mxu0 0
    %2757 = vmatpush1.bf16.msra.mxu0 0
    %2758 = vmatprep.subr.bf16.mxu0 0
    %2759 = vmatpush1.bf16.msra.mxu0 0
    %2760 = vmatprep.subr.bf16.mxu0 0
    %2761 = vmatpush1.bf16.msra.mxu0 0
    %2762 = vmatprep.subr.bf16.mxu0 0
    %2763 = vmatpush1.bf16.msra.mxu0 0
    %2764 = vmatprep.subr.bf16.mxu0 0
    %2765 = vmatpush1.bf16.msra.mxu0 %v2746
    %2766 = vmatprep.subr.bf16.mxu0 0
    %2767 = vmatpush1.bf16.msra.mxu0 %v2745
    %2768 = vmatprep.subr.bf16.mxu0 0
    %2769 = vmatpush2.bf16.msra.mxu0 0
    %2770 = vmatprep.subr.bf16.mxu0 0
    %2771 = vmatpush2.bf16.msra.mxu0 0
    %2772 = vmatprep.subr.bf16.mxu0 0
    %2773 = vmatpush2.bf16.msra.mxu0 0
    %2774 = vmatprep.subr.bf16.mxu0 0
    %2775 = vmatpush2.bf16.msra.mxu0 0
    %2776 = vmatprep.subr.bf16.mxu0 0
    %2777 = vmatpush2.bf16.msra.mxu0 0
    %2778 = vmatprep.subr.bf16.mxu0 0
    %2779 = vmatpush2.bf16.msra.mxu0 0
    %2780 = vmatprep.subr.bf16.mxu0 0
    %2781 = vmatpush2.bf16.msra.mxu0 0
    %2782 = vmatprep.subr.bf16.mxu0 0
    %2783 = vmatpush2.bf16.msra.mxu0 0
    %2784 = vmatprep.mubr.bf16.mxu0 0
    %2785 = vmatmul.mubr.bf16.gmra.mxu0 %v2750
    %v2786 = vpop.f32.mrf.mxu0
    %v2787 = vadd.f32 %v2735, %v2786
    %v2788 = vpop.f32.mrf.mxu0
    %v2789 = vpop.f32.mrf.mxu0
    %v2790 = vadd.f32 %v2735, %v2789
    %v2791 = vpop.f32.mrf.mxu0
    %2792 = vdwg.mxu0
    %v2793 = vmul.f32 %v2787, 0.5
    %v2794 = vmul.f32 %v2790, 0.5
    %v2795 = vmul.f32 %v2787, 0.70710677
    %v2796 = vmul.f32 %v2790, 0.70710677
    %v2797 = verf.f32.pop %v2795
    %v2798 = verf.f32.pop %v2796
    %v2799 = vadd.f32 %v2797, 1.0
    %v2800 = vadd.f32 %v2798, 1.0
    %v2801 = vmul.f32 %v2793, %v2799
    %v2802 = vmul.f32 %v2794, %v2800
    %s2803 = scalar_lea.vmem %s15, 32
    %v2804 = vld [vmem:[%s2803] sm:$0xf]
    %v2805 = vld [vmem:[%s2803 + $0x4] sm:$0xf]
    %v2806 = vld [vmem:[%s2803 + $0x8] sm:$0xf]
    %v2807 = vld [vmem:[%s2803 + $0xc] sm:$0xf]
    %v2808 = vld [vmem:[%s2803 + $0x10] sm:$0xf]
    %v2809 = vld [vmem:[%s2803 + $0x14] sm:$0xf]
    %v2810 = vld [vmem:[%s2803 + $0x18] sm:$0xf]
    %v2811 = vld [vmem:[%s2803 + $0x1c] sm:$0xf]
    %v2812 = vpack.c.bf16 %v2802, %v2801
    %s2813 = scalar_lea.vmem %s16, 1
    %v2814 = vld [vmem:[%s2813] sm:$0x1]
    %v2816 = vlaneseq
    %v2817 = vshrl.u32 %v2816, 7
    %v2818 = vsub.s32 0, %v2817
    %v2819 = vrot.slane %v2814, %v2818
    %v2829 = vunpack.c.l.b16 %v2804
    %v2830 = vunpack.c.l.b16 %v2805
    %v2831 = vunpack.c.l.b16 %v2806
    %v2832 = vunpack.c.l.b16 %v2807
    %v2833 = vunpack.c.l.b16 %v2808
    %v2834 = vunpack.c.l.b16 %v2809
    %v2835 = vunpack.c.l.b16 %v2810
    %v2836 = vunpack.c.l.b16 %v2811
    %v2837 = vpack.c.b16 %v2830, %v2829
    %v2838 = vpack.c.b16 %v2832, %v2831
    %v2839 = vpack.c.b16 %v2834, %v2833
    %v2840 = vpack.c.b16 %v2836, %v2835
    %v2846 = vsel %vm1516, %v2812, 0
    %2848 = vmatprep.subr.bf16.mxu0 0
    %2849 = vmatpush1.bf16.msra.mxu0 0
    %2850 = vmatprep.subr.bf16.mxu0 0
    %2851 = vmatpush1.bf16.msra.mxu0 0
    %2852 = vmatprep.subr.bf16.mxu0 0
    %2853 = vmatpush1.bf16.msra.mxu0 0
    %2854 = vmatprep.subr.bf16.mxu0 0
    %2855 = vmatpush1.bf16.msra.mxu0 0
    %2856 = vmatprep.subr.bf16.mxu0 0
    %2857 = vmatpush1.bf16.msra.mxu0 %v2840
    %2858 = vmatprep.subr.bf16.mxu0 0
    %2859 = vmatpush1.bf16.msra.mxu0 %v2839
    %2860 = vmatprep.subr.bf16.mxu0 0
    %2861 = vmatpush1.bf16.msra.mxu0 %v2838
    %2862 = vmatprep.subr.bf16.mxu0 0
    %2863 = vmatpush1.bf16.msra.mxu0 %v2837
    %2864 = vmatprep.subr.bf16.mxu0 0
    %2865 = vmatpush2.bf16.msra.mxu0 0
    %2866 = vmatprep.subr.bf16.mxu0 0
    %2867 = vmatpush2.bf16.msra.mxu0 0
    %2868 = vmatprep.subr.bf16.mxu0 0
    %2869 = vmatpush2.bf16.msra.mxu0 0
    %2870 = vmatprep.subr.bf16.mxu0 0
    %2871 = vmatpush2.bf16.msra.mxu0 0
    %2872 = vmatprep.subr.bf16.mxu0 0
    %2873 = vmatpush2.bf16.msra.mxu0 0
    %2874 = vmatprep.subr.bf16.mxu0 0
    %2875 = vmatpush2.bf16.msra.mxu0 0
    %2876 = vmatprep.subr.bf16.mxu0 0
    %2877 = vmatpush2.bf16.msra.mxu0 0
    %2878 = vmatprep.subr.bf16.mxu0 0
    %2879 = vmatpush2.bf16.msra.mxu0 0
    %2880 = vmatprep.mubr.bf16.mxu0 0
    %2881 = vmatmul.mubr.bf16.gmra.mxu0 %v2846
    %v2882 = vpop.f32.mrf.mxu0
    %v2883 = vadd.f32 %v2819, %v2882
    %v2884 = vpop.f32.mrf.mxu0
    %v2885 = vpop.f32.mrf.mxu0
    %v2886 = vadd.f32 %v2819, %v2885
    %v2887 = vpop.f32.mrf.mxu0
    %2888 = vdwg.mxu0
    %v2889 = vadd.f32 %v2883, %v2721
    %v2890 = vadd.f32 %v2886, %v2722
    %s2891 = scalar_lea.vmem %s17, 1
    %v2892 = vld [vmem:[%s2891] sm:$0x1]
    %s2893 = scalar_lea.vmem %s18, 1
    %v2894 = vld [vmem:[%s2893] sm:$0x1]
    %v2895 = vsel %vm205, %v2889, 0.0
    %2896 = vadd.xlane.f32.xlu0 %v2895
    %v2897 = vpop.xlane.xlu0 %2896
    %v2898 = vsel %vm205, %v2890, 0.0
    %2899 = vadd.xlane.f32.xlu0 %v2898
    %v2900 = vpop.xlane.xlu0 %2899
    %v2901 = vmul.f32 %v2897, %v212
    %v2902 = vmul.f32 %v2900, %v212
    %v2903 = vsub.f32 %v2889, %v2901
    %v2904 = vsub.f32 %v2890, %v2902
    %v2905 = vmul.f32 %v2903, %v2903
    %v2906 = vmul.f32 %v2904, %v2904
    %v2907 = vsel %vm205, %v2905, 0.0
    %2908 = vadd.xlane.f32.xlu0 %v2907
    %v2909 = vpop.xlane.xlu0 %2908
    %v2910 = vsel %vm205, %v2906, 0.0
    %2911 = vadd.xlane.f32.xlu0 %v2910
    %v2912 = vpop.xlane.xlu0 %2911
    %v2913 = vmul.f32 %v2909, %v212
    %v2914 = vmul.f32 %v2912, %v212
    %v2915 = vadd.f32 %v2913, 1e-12
    %v2916 = vadd.f32 %v2914, 1e-12
    %v2917 = vrsqrt.pop %v2915
    %v2918 = vrsqrt.pop %v2916
    %v2919 = vmul.f32 %v2903, %v2917
    %v2920 = vmul.f32 %v2904, %v2918
    %v2922 = vlaneseq
    %v2923 = vshrl.u32 %v2922, 7
    %v2924 = vsub.s32 0, %v2923
    %v2925 = vrot.slane %v2892, %v2924
    %v2927 = vmul.f32 %v2919, %v2925
    %v2928 = vmul.f32 %v2920, %v2925
    %v2930 = vlaneseq
    %v2931 = vshrl.u32 %v2930, 7
    %v2932 = vsub.s32 0, %v2931
    %v2933 = vrot.slane %v2894, %v2932
    %v2935 = vadd.f32 %v2927, %v2933
    %v2936 = vadd.f32 %v2928, %v2933
    %v2937 = vld [vmem:[%s19] sm:$0xf]
    %v2938 = vld [vmem:[%s19 + $0x4] sm:$0xf]
    %v2939 = vld [vmem:[%s19 + $0x8] sm:$0xf]
    %v2940 = vld [vmem:[%s19 + $0xc] sm:$0xf]
    %v2941 = vpack.c.bf16 %v2935, %v2935
    %v2942 = vpack.c.bf16 %v2936, %v2936
    %v2943 = vld [vmem:[%s20] sm:$0x1]
    %v2945 = vlaneseq
    %v2946 = vshrl.u32 %v2945, 7
    %v2947 = vsub.s32 0, %v2946
    %v2948 = vrot.slane %v2943, %v2947
    %v2952 = vunpack.c.l.b16 %v2941
    %v2953 = vunpack.c.l.b16 %v2942
    %v2954 = vrot.slane %v2953, 7
    %vm2955 = vcmask 1041409
    %v2956 = vsel %vm2955, %v2954, %v2952
    %v2957 = vpack.c.b16 %v2956, %v2956
    %v2962 = vunpack.c.l.b16 %v2937
    %v2963 = vunpack.c.l.b16 %v2938
    %v2964 = vunpack.c.l.b16 %v2939
    %v2965 = vunpack.c.l.b16 %v2940
    %v2966 = vpack.c.b16 %v2963, %v2962
    %v2967 = vpack.c.b16 %v2965, %v2964
    %v2971 = vsel %vm205, %v2957, 0
    %2973 = vmatprep.subr.bf16.mxu0 0
    %2974 = vmatpush1.bf16.msra.mxu0 0
    %2975 = vmatprep.subr.bf16.mxu0 0
    %2976 = vmatpush1.bf16.msra.mxu0 0
    %2977 = vmatprep.subr.bf16.mxu0 0
    %2978 = vmatpush1.bf16.msra.mxu0 0
    %2979 = vmatprep.subr.bf16.mxu0 0
    %2980 = vmatpush1.bf16.msra.mxu0 0
    %2981 = vmatprep.subr.bf16.mxu0 0
    %2982 = vmatpush1.bf16.msra.mxu0 0
    %2983 = vmatprep.subr.bf16.mxu0 0
    %2984 = vmatpush1.bf16.msra.mxu0 0
    %2985 = vmatprep.subr.bf16.mxu0 0
    %2986 = vmatpush1.bf16.msra.mxu0 %v2967
    %2987 = vmatprep.subr.bf16.mxu0 0
    %2988 = vmatpush1.bf16.msra.mxu0 %v2966
    %2989 = vmatprep.subr.bf16.mxu0 0
    %2990 = vmatpush2.bf16.msra.mxu0 0
    %2991 = vmatprep.subr.bf16.mxu0 0
    %2992 = vmatpush2.bf16.msra.mxu0 0
    %2993 = vmatprep.subr.bf16.mxu0 0
    %2994 = vmatpush2.bf16.msra.mxu0 0
    %2995 = vmatprep.subr.bf16.mxu0 0
    %2996 = vmatpush2.bf16.msra.mxu0 0
    %2997 = vmatprep.subr.bf16.mxu0 0
    %2998 = vmatpush2.bf16.msra.mxu0 0
    %2999 = vmatprep.subr.bf16.mxu0 0
    %3000 = vmatpush2.bf16.msra.mxu0 0
    %3001 = vmatprep.subr.bf16.mxu0 0
    %3002 = vmatpush2.bf16.msra.mxu0 0
    %3003 = vmatprep.subr.bf16.mxu0 0
    %3004 = vmatpush2.bf16.msra.mxu0 0
    %3005 = vmatprep.mubr.bf16.mxu0 0
    %3006 = vmatmul.mubr.bf16.gmra.mxu0 %v2971
    %v3007 = vpop.f32.mrf.mxu0
    %v3008 = vadd.f32 %v2948, %v3007
    %v3009 = vpop.f32.mrf.mxu0
    %v3010 = vpop.f32.mrf.mxu0
    %v3011 = vpop.f32.mrf.mxu0
    %3012 = vdwg.mxu0
    %v3013 = vtanh.pop %v3008
    %v3014 = vld [vmem:[%s21] sm:$0xf]
    %v3015 = vld [vmem:[%s21 + $0x4] sm:$0xf]
    %v3016 = vld [vmem:[%s21 + $0x8] sm:$0xf]
    %v3017 = vld [vmem:[%s21 + $0xc] sm:$0xf]
    %v3018 = vpack.c.bf16 %v3013, %v3013
    %v3019 = vld [vmem:[%s22] sm:$0x1]
    %v3021 = vlaneseq
    %v3022 = vshrl.u32 %v3021, 7
    %v3023 = vsub.s32 0, %v3022
    %v3024 = vrot.slane %v3019, %v3023
    %v3030 = vunpack.c.l.b16 %v3014
    %v3031 = vunpack.c.l.b16 %v3015
    %v3032 = vunpack.c.l.b16 %v3016
    %v3033 = vunpack.c.l.b16 %v3017
    %v3034 = vpack.c.b16 %v3031, %v3030
    %v3035 = vpack.c.b16 %v3033, %v3032
    %v3039 = vsel %vm205, %v3018, 0
    %3041 = vmatprep.subr.bf16.mxu0 0
    %3042 = vmatpush1.bf16.msra.mxu0 0
    %3043 = vmatprep.subr.bf16.mxu0 0
    %3044 = vmatpush1.bf16.msra.mxu0 0
    %3045 = vmatprep.subr.bf16.mxu0 0
    %3046 = vmatpush1.bf16.msra.mxu0 0
    %3047 = vmatprep.subr.bf16.mxu0 0
    %3048 = vmatpush1.bf16.msra.mxu0 0
    %3049 = vmatprep.subr.bf16.mxu0 0
    %3050 = vmatpush1.bf16.msra.mxu0 0
    %3051 = vmatprep.subr.bf16.mxu0 0
    %3052 = vmatpush1.bf16.msra.mxu0 0
    %3053 = vmatprep.subr.bf16.mxu0 0
    %3054 = vmatpush1.bf16.msra.mxu0 %v3035
    %3055 = vmatprep.subr.bf16.mxu0 0
    %3056 = vmatpush1.bf16.msra.mxu0 %v3034
    %3057 = vmatprep.subr.bf16.mxu0 0
    %3058 = vmatpush2.bf16.msra.mxu0 0
    %3059 = vmatprep.subr.bf16.mxu0 0
    %3060 = vmatpush2.bf16.msra.mxu0 0
    %3061 = vmatprep.subr.bf16.mxu0 0
    %3062 = vmatpush2.bf16.msra.mxu0 0
    %3063 = vmatprep.subr.bf16.mxu0 0
    %3064 = vmatpush2.bf16.msra.mxu0 0
    %3065 = vmatprep.subr.bf16.mxu0 0
    %3066 = vmatpush2.bf16.msra.mxu0 0
    %3067 = vmatprep.subr.bf16.mxu0 0
    %3068 = vmatpush2.bf16.msra.mxu0 0
    %3069 = vmatprep.subr.bf16.mxu0 0
    %3070 = vmatpush2.bf16.msra.mxu0 0
    %3071 = vmatprep.subr.bf16.mxu0 0
    %3072 = vmatpush2.bf16.msra.mxu0 0
    %3073 = vmatprep.mubr.bf16.mxu0 0
    %3074 = vmatmul.mubr.bf16.gmra.mxu0 %v3039
    %v3075 = vpop.f32.mrf.mxu0
    %v3076 = vadd.f32 %v3024, %v3075
    %v3077 = vpop.f32.mrf.mxu0
    %v3078 = vpop.f32.mrf.mxu0
    %v3079 = vpop.f32.mrf.mxu0
    %3080 = vdwg.mxu0
    %3081 = vst [vmem:[#allocation2] sm:$0x3] %v3076
    // Predicated region
    $region94: #{kobert_forward.1} parent=1 // pred_check
      _
    $region95: #{kobert_forward.1} parent=1 // pred_check_branch
      %3083 = sbr.rel (0) target = $region97
    $region96: #{kobert_forward.1} parent=1 // pred_region
      %s3085 = ssub.s32 32, 32
      %3086 = vsyncadd [#allocation3], %s3085
      %s3088 = sshll.u32 [#allocation2], 4
      %s3089 = int_to_ptr.vmem [resolvable:$true] %s3088
      %3091 = dma.vmem_to_hbm [thread:$0]  %s3089, 32, %s23, [#allocation3]
    $region97: #{kobert_forward.1} parent=1 // pred_fallthru
      _
    // Predicated region
    $region98: #{kobert_forward.1} parent=1 // pred_check
      _
    $region99: #{kobert_forward.1} parent=1 // pred_check_branch
      %3093 = sbr.rel (0) target = $region101
    $region100: #{kobert_forward.1} parent=1 // pred_region
      %3094 = dma.done [#allocation3], 32
    $region101: #{kobert_forward.1} parent=1 // pred_fallthru
      _
    %3095 = vsyncpa [#allocation3], 1

</llo_original>
